<compile_context>
chip_gen: v7x
topology: tpu7x:2x2x1
jax: 0.10.0
libtpu: 0.0.40
codegen_flags: <defaults>
</compile_context>

<pallas_src>
import jax
import jax.numpy as jnp
from jax.experimental import pallas as pl
from jax.experimental.pallas import tpu as pltpu

# ------------------------- problem sizes (small) -----------------------------
ATOM_FDIM = 32
BOND_FDIM = 16
HIDDEN = 32
DEPTH = 2
AGN_NUM = 2
N_ATOMS = 16        # atom 0 is the padding atom (its message row is zeroed)
N_BONDS = 32        # bond 0 is the padding bond (all-zero features)
MAX_NB = 4
LN_EPS = 1e-5

assert ATOM_FDIM == HIDDEN  # packing puts W_i / W_ah0 weights in the HxH slab

_HIGHEST = jax.lax.Precision.HIGHEST


# ----------------------- packed-parameter layout ------------------------------
_MAT_IDX, _VEC_IDX, _ALPHA_IDX = {}, {}, {}


def _register_param_layout():
    def reg(d, name):
        d[name] = len(d)

    reg(_MAT_IDX, "W_i")
    reg(_VEC_IDX, "W_i.b")
    for d in range(DEPTH):
        reg(_MAT_IDX, f"W_h{d}.0.wa")
        reg(_VEC_IDX, f"W_h{d}.0.b")
        for j in range(1, AGN_NUM):
            reg(_VEC_IDX, f"W_h{d}.{j}.g")
            reg(_VEC_IDX, f"W_h{d}.{j}.beta")
            reg(_ALPHA_IDX, f"W_h{d}.{j}.alpha")
            reg(_MAT_IDX, f"W_h{d}.{j}.w")
            reg(_VEC_IDX, f"W_h{d}.{j}.b")
    reg(_VEC_IDX, "tune.g")
    reg(_VEC_IDX, "tune.beta")
    reg(_ALPHA_IDX, "tune.alpha")
    for i in range(DEPTH):
        reg(_MAT_IDX, f"W_ah{i}.w")
        reg(_VEC_IDX, f"W_ah{i}.b")
        reg(_VEC_IDX, f"W_ah{i}.g")
        reg(_VEC_IDX, f"W_ah{i}.beta")
        reg(_ALPHA_IDX, f"W_ah{i}.alpha")
    reg(_MAT_IDX, "W_o.w_cc")
    reg(_MAT_IDX, "W_o.w_am")
    reg(_VEC_IDX, "W_o.b")
    reg(_VEC_IDX, "W_o.g")
    reg(_VEC_IDX, "W_o.beta")
    reg(_ALPHA_IDX, "W_o.alpha")


_register_param_layout()
N_MATS, N_VECS, N_ALPHAS = len(_MAT_IDX), len(_VEC_IDX), len(_ALPHA_IDX)


def pack_params(params):
    """Collapse the nested param tree into 4 packed slabs (see header)."""
    mat_d, vec_d, alpha_d = {}, {}, {}
    matb_list = []

    mat_d["W_i"] = params["W_i"]["w"]
    vec_d["W_i.b"] = params["W_i"]["b"][0]

    for d in range(DEPTH):
        blocks = params["W_h"][d]
        b0 = blocks[0]
        mat_d[f"W_h{d}.0.wa"] = b0["w"][:HIDDEN, :]
        matb_list.append(b0["w"][HIDDEN:, :])
        vec_d[f"W_h{d}.0.b"] = b0["b"][0]
        for j in range(1, AGN_NUM):
            blk = blocks[j]
            vec_d[f"W_h{d}.{j}.g"] = blk["g"][0]
            vec_d[f"W_h{d}.{j}.beta"] = blk["beta"][0]
            alpha_d[f"W_h{d}.{j}.alpha"] = blk["alpha"][0, 0]
            mat_d[f"W_h{d}.{j}.w"] = blk["w"]
            vec_d[f"W_h{d}.{j}.b"] = blk["b"][0]

    vec_d["tune.g"] = params["tune"]["g"][0]
    vec_d["tune.beta"] = params["tune"]["beta"][0]
    alpha_d["tune.alpha"] = params["tune"]["alpha"][0, 0]

    for i in range(DEPTH):
        blk = params["W_ah"][i]
        mat_d[f"W_ah{i}.w"] = blk["w"]
        vec_d[f"W_ah{i}.b"] = blk["b"][0]
        vec_d[f"W_ah{i}.g"] = blk["g"][0]
        vec_d[f"W_ah{i}.beta"] = blk["beta"][0]
        alpha_d[f"W_ah{i}.alpha"] = blk["alpha"][0, 0]

    wo = params["W_o"]
    mat_d["W_o.w_cc"] = wo["w"][:HIDDEN, :]
    mat_d["W_o.w_am"] = wo["w"][HIDDEN:, :]
    vec_d["W_o.b"] = wo["b"][0]
    vec_d["W_o.g"] = wo["g"][0]
    vec_d["W_o.beta"] = wo["beta"][0]
    alpha_d["W_o.alpha"] = wo["alpha"][0, 0]

    def ordered(d, idx):
        return [d[n] for n, _ in sorted(idx.items(), key=lambda kv: kv[1])]

    mats = jnp.stack(ordered(mat_d, _MAT_IDX)).astype(jnp.bfloat16)
    matb = jnp.stack(matb_list).astype(jnp.bfloat16)
    vecs = jnp.stack(ordered(vec_d, _VEC_IDX)).astype(jnp.float32)
    alphas = jnp.stack(ordered(alpha_d, _ALPHA_IDX)).astype(jnp.float32)
    return mats, matb, vecs, alphas


# --------------------------- in-kernel helpers --------------------------------
def _dot_bf16(a, w_bf16):
    # Dense Linear: bf16 operands, f32 MXU accumulation (single bf16 pass).
    return jnp.dot(a.astype(jnp.bfloat16), w_bf16,
                   preferred_element_type=jnp.float32)


def _dot_f32(a, b):
    # Exact-ish gather matmul (counts are tiny integers): keep f32 / HIGHEST.
    return jnp.dot(a, b, preferred_element_type=jnp.float32, precision=_HIGHEST)


def _layernorm(x, g, beta):
    mu = jnp.mean(x, axis=-1, keepdims=True)
    var = jnp.mean(jnp.square(x - mu), axis=-1, keepdims=True)
    return (x - mu) * jax.lax.rsqrt(var + LN_EPS) * g + beta   # rsqrt -> EUP slot


def _prelu(x, alpha):
    return jnp.where(x >= 0.0, x, alpha * x)


def _one_hot_counts(idx, n_src):
    # counts[i, s] = #{j : idx[i, j] == s}  =>  counts @ src == gather-sum(src, idx)
    m, _ = idx.shape
    iota = jax.lax.broadcasted_iota(jnp.int32, (m, n_src), 1)
    counts = jnp.zeros((m, n_src), jnp.float32)
    for j in range(MAX_NB):                    # MAX_NB is small and static
        counts = counts + (idx[:, j:j + 1] == iota).astype(jnp.float32)
    return counts


# ------------------------------ fused kernel ----------------------------------
def _fused_mpn_kernel(alphas_ref, a2a_ref, a2b_ref, f_atoms_ref, f_bonds_ref,
                      mats_ref, matb_ref, vecs_ref, out_ref):
    def mat(name):                             # (H, H) bf16
        return mats_ref[_MAT_IDX[name]]

    def vec(name):                             # (1, H) f32 (bias / LN gamma / beta)
        return vecs_ref[pl.ds(_VEC_IDX[name], 1), :]

    def alpha(name):                           # scalar f32 from SMEM
        return alphas_ref[_ALPHA_IDX[name]]

    f_atoms = f_atoms_ref[...]                 # [A, ATOM_FDIM] f32
    f_bonds = f_bonds_ref[...]                 # [B, BOND_FDIM] f32
    a2a = a2a_ref[...]                         # [A, MAX_NB] int32
    a2b = a2b_ref[...]                         # [A, MAX_NB] int32

    n_atoms = f_atoms.shape[0]
    # in-kernel mask that zeroes the padding atom (row 0): one VPU select
    row_keep = (jax.lax.broadcasted_iota(jnp.int32, (n_atoms, 1), 0) != 0
                ).astype(jnp.float32)

    # gather-as-matmul count matrices, built once and reused
    counts_a = _one_hot_counts(a2a, n_atoms)             # [A, A]
    counts_b = _one_hot_counts(a2b, f_bonds.shape[0])    # [A, B]

    # input = W_i(f_atoms); self_message = message = input with row 0 = 0
    inp = _dot_bf16(f_atoms, mat("W_i")) + vec("W_i.b")
    self_message = inp * row_keep
    message = self_message

    # loop-invariant bond gather, hoisted out of the depth loop (exact, f32)
    nei_b = _dot_f32(counts_b, f_bonds)                  # [A, BOND_FDIM]

    for d in range(DEPTH):
        nei_a = _dot_f32(counts_a, message)              # [A, HIDDEN]
        # cat([nei_a, nei_b], -1) @ W == nei_a @ W[:H] + nei_b @ W[H:]
        h = (_dot_bf16(nei_a, mat(f"W_h{d}.0.wa"))
             + _dot_bf16(nei_b, matb_ref[d])
             + vec(f"W_h{d}.0.b"))
        for j in range(1, AGN_NUM):                      # LN -> PReLU -> Linear
            h = _prelu(_layernorm(h, vec(f"W_h{d}.{j}.g"), vec(f"W_h{d}.{j}.beta")),
                       alpha(f"W_h{d}.{j}.alpha"))
            h = _dot_bf16(h, mat(f"W_h{d}.{j}.w")) + vec(f"W_h{d}.{j}.b")
        self_message = (self_message + h) * row_keep     # residual + zero row 0
        message = self_message

    # tune = LayerNorm + PReLU on the final neighbor-summed message
    nei_a = _dot_f32(counts_a, message)
    a_message = _prelu(_layernorm(nei_a, vec("tune.g"), vec("tune.beta")),
                       alpha("tune.alpha"))

    # W_ah tower on the raw atom features
    cc = f_atoms
    for i in range(DEPTH):
        cc = _prelu(
            _layernorm(_dot_bf16(cc, mat(f"W_ah{i}.w")) + vec(f"W_ah{i}.b"),
                       vec(f"W_ah{i}.g"), vec(f"W_ah{i}.beta")),
            alpha(f"W_ah{i}.alpha"))

    # W_o head: cat([cc, a_message], -1) @ W == split-weight matmuls
    y = (_dot_bf16(cc, mat("W_o.w_cc")) + _dot_bf16(a_message, mat("W_o.w_am"))
         + vec("W_o.b"))
    out_ref[...] = _prelu(_layernorm(y, vec("W_o.g"), vec("W_o.beta")),
                          alpha("W_o.alpha"))


# ------------------------------ host wrapper -----------------------------------
def _cost_estimate(n_atoms, n_bonds):
    def mm(m, k, n):
        return 2 * m * k * n

    flops = (mm(n_atoms, ATOM_FDIM, HIDDEN)                      # W_i
             + mm(n_atoms, n_bonds, BOND_FDIM)                   # counts_b @ f_bonds
             + DEPTH * (mm(n_atoms, n_atoms, HIDDEN)             # counts_a @ message
                        + mm(n_atoms, HIDDEN, HIDDEN)            # wa
                        + mm(n_atoms, BOND_FDIM, HIDDEN)         # wb
                        + (AGN_NUM - 1) * mm(n_atoms, HIDDEN, HIDDEN))
             + mm(n_atoms, n_atoms, HIDDEN)                      # final gather
             + DEPTH * mm(n_atoms, HIDDEN, HIDDEN)               # W_ah tower
             + 2 * mm(n_atoms, HIDDEN, HIDDEN)                   # W_o split
             + 2 * MAX_NB * (n_atoms * n_atoms + n_atoms * n_bonds))  # one-hot counts
    n_ln = DEPTH * (AGN_NUM - 1) + 1 + DEPTH + 1
    transcendentals = n_ln * n_atoms                             # rsqrt per LN row
    bytes_accessed = (N_MATS * HIDDEN * HIDDEN * 2 + DEPTH * BOND_FDIM * HIDDEN * 2
                      + N_VECS * HIDDEN * 4 + N_ALPHAS * 4
                      + n_atoms * ATOM_FDIM * 4 + n_bonds * BOND_FDIM * 4
                      + 2 * n_atoms * MAX_NB * 4
                      + n_atoms * HIDDEN * 4)
    return pl.CostEstimate(flops=flops, transcendentals=transcendentals,
                           bytes_accessed=bytes_accessed)


@jax.jit
def _mpn_forward_fused(params, f_atoms, f_bonds, a2a, a2b):
    mats, matb, vecs, alphas = pack_params(params)
    n_atoms = f_atoms.shape[0]

    vmem = pl.BlockSpec(memory_space=pltpu.MemorySpace.VMEM)
    smem = pl.BlockSpec(memory_space=pltpu.MemorySpace.SMEM)

    return pl.pallas_call(
        _fused_mpn_kernel,
        out_shape=jax.ShapeDtypeStruct((n_atoms, HIDDEN), jnp.float32),
        in_specs=[smem, vmem, vmem, vmem, vmem, vmem, vmem, vmem],
        out_specs=vmem,
        cost_estimate=_cost_estimate(n_atoms, f_bonds.shape[0]),
    )(alphas, a2a, a2b, f_atoms, f_bonds, mats, matb, vecs)


def mpn_forward(params, f_atoms, f_bonds, a2a, a2b, a_scope):
    atom_hiddens = _mpn_forward_fused(params, f_atoms, f_bonds, a2a, a2b)
    return atom_hiddens, a_scope               # a_scope is Python-side metadata


# ------------------------------ parameters ------------------------------------
def init_params(key):
    keys = iter(jax.random.split(key, 64))

    def lin(fin, fout):
        w = jax.random.normal(next(keys), (fin, fout), jnp.float32) / jnp.sqrt(
            jnp.float32(fin))
        b = 0.1 * jax.random.normal(next(keys), (1, fout), jnp.float32)
        return {"w": w, "b": b}

    def ln(dim):
        g = 1.0 + 0.1 * jax.random.normal(next(keys), (1, dim), jnp.float32)
        bta = 0.1 * jax.random.normal(next(keys), (1, dim), jnp.float32)
        return {"g": g, "beta": bta}

    def prelu():
        return jnp.full((1, 1), 0.25, jnp.float32)   # PyTorch PReLU default

    params = {
        "W_i": lin(ATOM_FDIM, HIDDEN),
        "tune": {**ln(HIDDEN), "alpha": prelu()},
        "W_o": {**lin(2 * HIDDEN, HIDDEN), **ln(HIDDEN), "alpha": prelu()},
    }
    # W_ah = [Linear(ATOM_FDIM,H), LN, PReLU] + (depth-1)*[Linear(H,H), LN, PReLU]
    wah = [{**lin(ATOM_FDIM, HIDDEN), **ln(HIDDEN), "alpha": prelu()}]
    for _ in range(DEPTH - 1):
        wah.append({**lin(HIDDEN, HIDDEN), **ln(HIDDEN), "alpha": prelu()})
    params["W_ah"] = wah
    # W_h{d} = Linear(H+BOND_FDIM,H) + (agn_num-1)*[LN, PReLU, Linear(H,H)]
    whs = []
    for _ in range(DEPTH):
        blocks = [lin(HIDDEN + BOND_FDIM, HIDDEN)]
        for _ in range(AGN_NUM - 1):
            blocks.append({**ln(HIDDEN), "alpha": prelu(), **lin(HIDDEN, HIDDEN)})
        whs.append(blocks)
    params["W_h"] = whs
    return params


# ------------------------- pure-JAX reference (for checking) -------------------
# Uses exact gathers (jnp.take, faithful to index_select_ND) and the SAME bf16
# operand rounding / f32 accumulation for the dense Linears as the kernel, so
# the structural check stays tight.
@jax.jit
def ref_forward(params, f_atoms, f_bonds, a2a, a2b):
    def lin(x, p):
        return jnp.dot(x.astype(jnp.bfloat16), p["w"].astype(jnp.bfloat16),
                       preferred_element_type=jnp.float32) + p["b"]

    def lnf(x, p):
        mu = x.mean(-1, keepdims=True)
        var = ((x - mu) ** 2).mean(-1, keepdims=True)
        return (x - mu) * jax.lax.rsqrt(var + LN_EPS) * p["g"] + p["beta"]

    def prelu(x, a):
        return jnp.where(x >= 0.0, x, a * x)

    def gsum(idx, src):
        m, k = idx.shape
        return jnp.take(src, idx.reshape(-1), axis=0).reshape(m, k, -1).sum(1)

    inp = lin(f_atoms, params["W_i"])
    self_message = inp.at[0].set(0.0)
    message = self_message
    for d in range(DEPTH):
        h = jnp.concatenate([gsum(a2a, message), gsum(a2b, f_bonds)], axis=1)
        blocks = params["W_h"][d]
        h = lin(h, blocks[0])
        for blk in blocks[1:]:
            h = lin(prelu(lnf(h, blk), blk["alpha"]), blk)
        self_message = (self_message + h).at[0].set(0.0)
        message = self_message
    a_message = prelu(lnf(gsum(a2a, message), params["tune"]),
                      params["tune"]["alpha"])
    cc = f_atoms
    for blk in params["W_ah"]:
        cc = prelu(lnf(lin(cc, blk), blk), blk["alpha"])
    a_input = jnp.concatenate([cc, a_message], axis=1)
    wo = params["W_o"]
    return prelu(lnf(lin(a_input, wo), wo), wo["alpha"])


# ----------------------------------- main ---------------------------------------
if __name__ == "__main__":
    key = jax.random.PRNGKey(0)
    k_param, k_fa, k_fb, k_a2a, k_a2b = jax.random.split(key, 5)

    params = init_params(k_param)

    f_atoms = jax.random.normal(k_fa, (N_ATOMS, ATOM_FDIM), jnp.float32)
    f_bonds = jax.random.normal(k_fb, (N_BONDS, BOND_FDIM), jnp.float32)
    # chemprop-style padding: row 0 of atom/bond features is the all-zero pad row
    f_atoms = f_atoms.at[0].set(0.0)
    f_bonds = f_bonds.at[0].set(0.0)
    a2a = jax.random.randint(k_a2a, (N_ATOMS, MAX_NB), 0, N_ATOMS, jnp.int32)
    a2b = jax.random.randint(k_a2b, (N_ATOMS, MAX_NB), 0, N_BONDS, jnp.int32)
    a2a = a2a.at[0].set(0)     # padding atom points at padding entries
    a2b = a2b.at[0].set(0)
    a_scope = [(1, N_ATOMS - 1)]   # single molecule occupying atoms 1..N-1

    atom_hiddens, scope_out = mpn_forward(params, f_atoms, f_bonds, a2a, a2b,
                                          a_scope)
    atom_hiddens = jax.block_until_ready(atom_hiddens)
    assert atom_hiddens.shape == (N_ATOMS, HIDDEN)
    assert atom_hiddens.dtype == jnp.float32

    ref = jax.block_until_ready(ref_forward(params, f_atoms, f_bonds, a2a, a2b))
    max_err = float(jnp.max(jnp.abs(atom_hiddens - ref)))
    assert jnp.allclose(atom_hiddens, ref, atol=5e-4, rtol=5e-4), max_err

    print("KERNEL_OK")
</pallas_src>

<mosaic_0001>
module attributes {stable_mosaic.version = 11 : i64} {
  func.func @_fused_mpn_kernel(%arg0: memref<6xf32, #tpu.memory_space<smem>>, %arg1: memref<16x4xi32, #tpu.memory_space<vmem>>, %arg2: memref<16x4xi32, #tpu.memory_space<vmem>>, %arg3: memref<16x32xf32, #tpu.memory_space<vmem>>, %arg4: memref<32x16xf32, #tpu.memory_space<vmem>>, %arg5: memref<9x32x32xbf16, #tpu.memory_space<vmem>>, %arg6: memref<2x16x32xbf16, #tpu.memory_space<vmem>>, %arg7: memref<20x32xf32, #tpu.memory_space<vmem>>, %arg8: memref<16x32xf32, #tpu.memory_space<vmem>>) attributes {dimension_semantics = [], scalar_prefetch = 0 : i64, scratch_operands = 0 : i64, tpu.core_type = #tpu.core_type<tc>} {
    %c0 = arith.constant 0 : index
    %c0_0 = arith.constant 0 : index
    %0 = vector.load %arg3[%c0, %c0_0] : memref<16x32xf32, #tpu.memory_space<vmem>>, vector<16x32xf32>
    %c0_1 = arith.constant 0 : index
    %c0_2 = arith.constant 0 : index
    %1 = vector.load %arg4[%c0_1, %c0_2] : memref<32x16xf32, #tpu.memory_space<vmem>>, vector<32x16xf32>
    %c0_3 = arith.constant 0 : index
    %c0_4 = arith.constant 0 : index
    %2 = vector.load %arg1[%c0_3, %c0_4] : memref<16x4xi32, #tpu.memory_space<vmem>>, vector<16x4xi32>
    %c0_5 = arith.constant 0 : index
    %c0_6 = arith.constant 0 : index
    %3 = vector.load %arg2[%c0_5, %c0_6] : memref<16x4xi32, #tpu.memory_space<vmem>>, vector<16x4xi32>
    %4 = tpu.iota {dimensions = array<i32: 0>} : vector<16x1xi32>
    %c0_i32 = arith.constant 0 : i32
    %5 = vector.broadcast %c0_i32 : i32 to vector<16x1xi32>
    %6 = arith.cmpi ne, %4, %5 : vector<16x1xi32>
    %7 = arith.extui %6 : vector<16x1xi1> to vector<16x1xi32>
    %8 = arith.sitofp %7 : vector<16x1xi32> to vector<16x1xf32>
    %9 = tpu.iota {dimensions = array<i32: 1>} : vector<16x16xi32>
    %cst = arith.constant 0.000000e+00 : f32
    %10 = vector.broadcast %cst : f32 to vector<16x16xf32>
    %11 = vector.extract_strided_slice %2 {offsets = [0, 0], sizes = [16, 1], strides = [1, 1]} : vector<16x4xi32> to vector<16x1xi32>
    %12 = vector.broadcast %11 : vector<16x1xi32> to vector<16x16xi32>
    %13 = arith.cmpi eq, %12, %9 : vector<16x16xi32>
    %14 = arith.extui %13 : vector<16x16xi1> to vector<16x16xi32>
    %15 = arith.sitofp %14 : vector<16x16xi32> to vector<16x16xf32>
    %16 = arith.addf %10, %15 : vector<16x16xf32>
    %17 = vector.extract_strided_slice %2 {offsets = [0, 1], sizes = [16, 1], strides = [1, 1]} : vector<16x4xi32> to vector<16x1xi32>
    %18 = vector.broadcast %17 : vector<16x1xi32> to vector<16x16xi32>
    %19 = arith.cmpi eq, %18, %9 : vector<16x16xi32>
    %20 = arith.extui %19 : vector<16x16xi1> to vector<16x16xi32>
    %21 = arith.sitofp %20 : vector<16x16xi32> to vector<16x16xf32>
    %22 = arith.addf %16, %21 : vector<16x16xf32>
    %23 = vector.extract_strided_slice %2 {offsets = [0, 2], sizes = [16, 1], strides = [1, 1]} : vector<16x4xi32> to vector<16x1xi32>
    %24 = vector.broadcast %23 : vector<16x1xi32> to vector<16x16xi32>
    %25 = arith.cmpi eq, %24, %9 : vector<16x16xi32>
    %26 = arith.extui %25 : vector<16x16xi1> to vector<16x16xi32>
    %27 = arith.sitofp %26 : vector<16x16xi32> to vector<16x16xf32>
    %28 = arith.addf %22, %27 : vector<16x16xf32>
    %29 = vector.extract_strided_slice %2 {offsets = [0, 3], sizes = [16, 1], strides = [1, 1]} : vector<16x4xi32> to vector<16x1xi32>
    %30 = vector.broadcast %29 : vector<16x1xi32> to vector<16x16xi32>
    %31 = arith.cmpi eq, %30, %9 : vector<16x16xi32>
    %32 = arith.extui %31 : vector<16x16xi1> to vector<16x16xi32>
    %33 = arith.sitofp %32 : vector<16x16xi32> to vector<16x16xf32>
    %34 = arith.addf %28, %33 : vector<16x16xf32>
    %35 = tpu.iota {dimensions = array<i32: 1>} : vector<16x32xi32>
    %cst_7 = arith.constant 0.000000e+00 : f32
    %36 = vector.broadcast %cst_7 : f32 to vector<16x32xf32>
    %37 = vector.extract_strided_slice %3 {offsets = [0, 0], sizes = [16, 1], strides = [1, 1]} : vector<16x4xi32> to vector<16x1xi32>
    %38 = vector.broadcast %37 : vector<16x1xi32> to vector<16x32xi32>
    %39 = arith.cmpi eq, %38, %35 : vector<16x32xi32>
    %40 = arith.extui %39 : vector<16x32xi1> to vector<16x32xi32>
    %41 = arith.sitofp %40 : vector<16x32xi32> to vector<16x32xf32>
    %42 = arith.addf %36, %41 : vector<16x32xf32>
    %43 = vector.extract_strided_slice %3 {offsets = [0, 1], sizes = [16, 1], strides = [1, 1]} : vector<16x4xi32> to vector<16x1xi32>
    %44 = vector.broadcast %43 : vector<16x1xi32> to vector<16x32xi32>
    %45 = arith.cmpi eq, %44, %35 : vector<16x32xi32>
    %46 = arith.extui %45 : vector<16x32xi1> to vector<16x32xi32>
    %47 = arith.sitofp %46 : vector<16x32xi32> to vector<16x32xf32>
    %48 = arith.addf %42, %47 : vector<16x32xf32>
    %49 = vector.extract_strided_slice %3 {offsets = [0, 2], sizes = [16, 1], strides = [1, 1]} : vector<16x4xi32> to vector<16x1xi32>
    %50 = vector.broadcast %49 : vector<16x1xi32> to vector<16x32xi32>
    %51 = arith.cmpi eq, %50, %35 : vector<16x32xi32>
    %52 = arith.extui %51 : vector<16x32xi1> to vector<16x32xi32>
    %53 = arith.sitofp %52 : vector<16x32xi32> to vector<16x32xf32>
    %54 = arith.addf %48, %53 : vector<16x32xf32>
    %55 = vector.extract_strided_slice %3 {offsets = [0, 3], sizes = [16, 1], strides = [1, 1]} : vector<16x4xi32> to vector<16x1xi32>
    %56 = vector.broadcast %55 : vector<16x1xi32> to vector<16x32xi32>
    %57 = arith.cmpi eq, %56, %35 : vector<16x32xi32>
    %58 = arith.extui %57 : vector<16x32xi1> to vector<16x32xi32>
    %59 = arith.sitofp %58 : vector<16x32xi32> to vector<16x32xf32>
    %60 = arith.addf %54, %59 : vector<16x32xf32>
    %c0_8 = arith.constant 0 : index
    %c0_9 = arith.constant 0 : index
    %c0_10 = arith.constant 0 : index
    %61 = vector.load %arg5[%c0_8, %c0_9, %c0_10] : memref<9x32x32xbf16, #tpu.memory_space<vmem>>, vector<1x32x32xbf16>
    %62 = vector.shape_cast %61 : vector<1x32x32xbf16> to vector<32x32xbf16>
    %63 = arith.truncf %0 : vector<16x32xf32> to vector<16x32xbf16>
    %cst_11 = arith.constant dense<0.000000e+00> : vector<16x32xf32>
    %64 = tpu.matmul %63, %62, %cst_11 {dimension_numbers = #tpu.dot_dimension_numbers<[1], [0], [0], [1], [0, 0, 1, 1], [], []>} : vector<16x32xbf16>, vector<32x32xbf16>, vector<16x32xf32> -> vector<16x32xf32>
    %c0_12 = arith.constant 0 : index
    %c0_13 = arith.constant 0 : index
    %65 = vector.load %arg7[%c0_12, %c0_13] : memref<20x32xf32, #tpu.memory_space<vmem>>, vector<1x32xf32>
    %66 = vector.broadcast %65 : vector<1x32xf32> to vector<16x32xf32>
    %67 = arith.addf %64, %66 : vector<16x32xf32>
    %68 = vector.broadcast %8 : vector<16x1xf32> to vector<16x32xf32>
    %69 = arith.mulf %67, %68 : vector<16x32xf32>
    %cst_14 = arith.constant dense<0.000000e+00> : vector<16x16xf32>
    %70 = tpu.matmul %60, %1, %cst_14 {dimension_numbers = #tpu.dot_dimension_numbers<[1], [0], [0], [1], [0, 0, 1, 1], [], []>, precision = #tpu.contract_precision<fp32>} : vector<16x32xf32>, vector<32x16xf32>, vector<16x16xf32> -> vector<16x16xf32>
    %cst_15 = arith.constant dense<0.000000e+00> : vector<16x32xf32>
    %71 = tpu.matmul %34, %69, %cst_15 {dimension_numbers = #tpu.dot_dimension_numbers<[1], [0], [0], [1], [0, 0, 1, 1], [], []>, precision = #tpu.contract_precision<fp32>} : vector<16x16xf32>, vector<16x32xf32>, vector<16x32xf32> -> vector<16x32xf32>
    %c1 = arith.constant 1 : index
    %c0_16 = arith.constant 0 : index
    %c0_17 = arith.constant 0 : index
    %72 = vector.load %arg5[%c1, %c0_16, %c0_17] : memref<9x32x32xbf16, #tpu.memory_space<vmem>>, vector<1x32x32xbf16>
    %73 = vector.shape_cast %72 : vector<1x32x32xbf16> to vector<32x32xbf16>
    %74 = arith.truncf %71 : vector<16x32xf32> to vector<16x32xbf16>
    %cst_18 = arith.constant dense<0.000000e+00> : vector<16x32xf32>
    %75 = tpu.matmul %74, %73, %cst_18 {dimension_numbers = #tpu.dot_dimension_numbers<[1], [0], [0], [1], [0, 0, 1, 1], [], []>} : vector<16x32xbf16>, vector<32x32xbf16>, vector<16x32xf32> -> vector<16x32xf32>
    %c0_19 = arith.constant 0 : index
    %c0_20 = arith.constant 0 : index
    %c0_21 = arith.constant 0 : index
    %76 = vector.load %arg6[%c0_19, %c0_20, %c0_21] : memref<2x16x32xbf16, #tpu.memory_space<vmem>>, vector<1x16x32xbf16>
    %77 = vector.shape_cast %76 : vector<1x16x32xbf16> to vector<16x32xbf16>
    %78 = arith.truncf %70 : vector<16x16xf32> to vector<16x16xbf16>
    %cst_22 = arith.constant dense<0.000000e+00> : vector<16x32xf32>
    %79 = tpu.matmul %78, %77, %cst_22 {dimension_numbers = #tpu.dot_dimension_numbers<[1], [0], [0], [1], [0, 0, 1, 1], [], []>} : vector<16x16xbf16>, vector<16x32xbf16>, vector<16x32xf32> -> vector<16x32xf32>
    %80 = arith.addf %75, %79 : vector<16x32xf32>
    %c1_23 = arith.constant 1 : index
    %c0_24 = arith.constant 0 : index
    %81 = vector.load %arg7[%c1_23, %c0_24] : memref<20x32xf32, #tpu.memory_space<vmem>>, vector<1x32xf32>
    %82 = vector.broadcast %81 : vector<1x32xf32> to vector<16x32xf32>
    %83 = arith.addf %80, %82 : vector<16x32xf32>
    %c2 = arith.constant 2 : index
    %c0_25 = arith.constant 0 : index
    %84 = vector.load %arg7[%c2, %c0_25] : memref<20x32xf32, #tpu.memory_space<vmem>>, vector<1x32xf32>
    %c3 = arith.constant 3 : index
    %c0_26 = arith.constant 0 : index
    %85 = vector.load %arg7[%c3, %c0_26] : memref<20x32xf32, #tpu.memory_space<vmem>>, vector<1x32xf32>
    %cst_27 = arith.constant dense<0.000000e+00> : vector<16xf32>
    %86 = vector.multi_reduction <add>, %83, %cst_27 [1] : vector<16x32xf32> to vector<16xf32>
    %87 = vector.shape_cast %86 : vector<16xf32> to vector<16x1xf32>
    %cst_28 = arith.constant 3.200000e+01 : f32
    %88 = vector.broadcast %cst_28 : f32 to vector<16x1xf32>
    %89 = arith.divf %87, %88 : vector<16x1xf32>
    %90 = vector.broadcast %89 : vector<16x1xf32> to vector<16x32xf32>
    %91 = arith.subf %83, %90 : vector<16x32xf32>
    %92 = arith.mulf %91, %91 : vector<16x32xf32>
    %cst_29 = arith.constant dense<0.000000e+00> : vector<16xf32>
    %93 = vector.multi_reduction <add>, %92, %cst_29 [1] : vector<16x32xf32> to vector<16xf32>
    %94 = vector.shape_cast %93 : vector<16xf32> to vector<16x1xf32>
    %cst_30 = arith.constant 3.200000e+01 : f32
    %95 = vector.broadcast %cst_30 : f32 to vector<16x1xf32>
    %96 = arith.divf %94, %95 : vector<16x1xf32>
    %97 = vector.broadcast %89 : vector<16x1xf32> to vector<16x32xf32>
    %98 = arith.subf %83, %97 : vector<16x32xf32>
    %cst_31 = arith.constant 9.99999974E-6 : f32
    %99 = vector.broadcast %cst_31 : f32 to vector<16x1xf32>
    %100 = arith.addf %96, %99 : vector<16x1xf32>
    %101 = math.rsqrt %100 : vector<16x1xf32>
    %102 = vector.broadcast %101 : vector<16x1xf32> to vector<16x32xf32>
    %103 = arith.mulf %98, %102 : vector<16x32xf32>
    %104 = vector.broadcast %84 : vector<1x32xf32> to vector<16x32xf32>
    %105 = arith.mulf %103, %104 : vector<16x32xf32>
    %106 = vector.broadcast %85 : vector<1x32xf32> to vector<16x32xf32>
    %107 = arith.addf %105, %106 : vector<16x32xf32>
    %c0_32 = arith.constant 0 : index
    %108 = memref.load %arg0[%c0_32] : memref<6xf32, #tpu.memory_space<smem>>
    %cst_33 = arith.constant 0.000000e+00 : f32
    %109 = vector.broadcast %cst_33 : f32 to vector<16x32xf32>
    %110 = arith.cmpf oge, %107, %109 : vector<16x32xf32>
    %111 = vector.broadcast %108 : f32 to vector<16x32xf32>
    %112 = arith.mulf %111, %107 : vector<16x32xf32>
    %113 = arith.select %110, %107, %112 : vector<16x32xi1>, vector<16x32xf32>
    %c2_34 = arith.constant 2 : index
    %c0_35 = arith.constant 0 : index
    %c0_36 = arith.constant 0 : index
    %114 = vector.load %arg5[%c2_34, %c0_35, %c0_36] : memref<9x32x32xbf16, #tpu.memory_space<vmem>>, vector<1x32x32xbf16>
    %115 = vector.shape_cast %114 : vector<1x32x32xbf16> to vector<32x32xbf16>
    %116 = arith.truncf %113 : vector<16x32xf32> to vector<16x32xbf16>
    %cst_37 = arith.constant dense<0.000000e+00> : vector<16x32xf32>
    %117 = tpu.matmul %116, %115, %cst_37 {dimension_numbers = #tpu.dot_dimension_numbers<[1], [0], [0], [1], [0, 0, 1, 1], [], []>} : vector<16x32xbf16>, vector<32x32xbf16>, vector<16x32xf32> -> vector<16x32xf32>
    %c4 = arith.constant 4 : index
    %c0_38 = arith.constant 0 : index
    %118 = vector.load %arg7[%c4, %c0_38] : memref<20x32xf32, #tpu.memory_space<vmem>>, vector<1x32xf32>
    %119 = vector.broadcast %118 : vector<1x32xf32> to vector<16x32xf32>
    %120 = arith.addf %117, %119 : vector<16x32xf32>
    %121 = arith.addf %69, %120 : vector<16x32xf32>
    %122 = vector.broadcast %8 : vector<16x1xf32> to vector<16x32xf32>
    %123 = arith.mulf %121, %122 : vector<16x32xf32>
    %cst_39 = arith.constant dense<0.000000e+00> : vector<16x32xf32>
    %124 = tpu.matmul %34, %123, %cst_39 {dimension_numbers = #tpu.dot_dimension_numbers<[1], [0], [0], [1], [0, 0, 1, 1], [], []>, precision = #tpu.contract_precision<fp32>} : vector<16x16xf32>, vector<16x32xf32>, vector<16x32xf32> -> vector<16x32xf32>
    %c3_40 = arith.constant 3 : index
    %c0_41 = arith.constant 0 : index
    %c0_42 = arith.constant 0 : index
    %125 = vector.load %arg5[%c3_40, %c0_41, %c0_42] : memref<9x32x32xbf16, #tpu.memory_space<vmem>>, vector<1x32x32xbf16>
    %126 = vector.shape_cast %125 : vector<1x32x32xbf16> to vector<32x32xbf16>
    %127 = arith.truncf %124 : vector<16x32xf32> to vector<16x32xbf16>
    %cst_43 = arith.constant dense<0.000000e+00> : vector<16x32xf32>
    %128 = tpu.matmul %127, %126, %cst_43 {dimension_numbers = #tpu.dot_dimension_numbers<[1], [0], [0], [1], [0, 0, 1, 1], [], []>} : vector<16x32xbf16>, vector<32x32xbf16>, vector<16x32xf32> -> vector<16x32xf32>
    %c1_44 = arith.constant 1 : index
    %c0_45 = arith.constant 0 : index
    %c0_46 = arith.constant 0 : index
    %129 = vector.load %arg6[%c1_44, %c0_45, %c0_46] : memref<2x16x32xbf16, #tpu.memory_space<vmem>>, vector<1x16x32xbf16>
    %130 = vector.shape_cast %129 : vector<1x16x32xbf16> to vector<16x32xbf16>
    %131 = arith.truncf %70 : vector<16x16xf32> to vector<16x16xbf16>
    %cst_47 = arith.constant dense<0.000000e+00> : vector<16x32xf32>
    %132 = tpu.matmul %131, %130, %cst_47 {dimension_numbers = #tpu.dot_dimension_numbers<[1], [0], [0], [1], [0, 0, 1, 1], [], []>} : vector<16x16xbf16>, vector<16x32xbf16>, vector<16x32xf32> -> vector<16x32xf32>
    %133 = arith.addf %128, %132 : vector<16x32xf32>
    %c5 = arith.constant 5 : index
    %c0_48 = arith.constant 0 : index
    %134 = vector.load %arg7[%c5, %c0_48] : memref<20x32xf32, #tpu.memory_space<vmem>>, vector<1x32xf32>
    %135 = vector.broadcast %134 : vector<1x32xf32> to vector<16x32xf32>
    %136 = arith.addf %133, %135 : vector<16x32xf32>
    %c6 = arith.constant 6 : index
    %c0_49 = arith.constant 0 : index
    %137 = vector.load %arg7[%c6, %c0_49] : memref<20x32xf32, #tpu.memory_space<vmem>>, vector<1x32xf32>
    %c7 = arith.constant 7 : index
    %c0_50 = arith.constant 0 : index
    %138 = vector.load %arg7[%c7, %c0_50] : memref<20x32xf32, #tpu.memory_space<vmem>>, vector<1x32xf32>
    %cst_51 = arith.constant dense<0.000000e+00> : vector<16xf32>
    %139 = vector.multi_reduction <add>, %136, %cst_51 [1] : vector<16x32xf32> to vector<16xf32>
    %140 = vector.shape_cast %139 : vector<16xf32> to vector<16x1xf32>
    %cst_52 = arith.constant 3.200000e+01 : f32
    %141 = vector.broadcast %cst_52 : f32 to vector<16x1xf32>
    %142 = arith.divf %140, %141 : vector<16x1xf32>
    %143 = vector.broadcast %142 : vector<16x1xf32> to vector<16x32xf32>
    %144 = arith.subf %136, %143 : vector<16x32xf32>
    %145 = arith.mulf %144, %144 : vector<16x32xf32>
    %cst_53 = arith.constant dense<0.000000e+00> : vector<16xf32>
    %146 = vector.multi_reduction <add>, %145, %cst_53 [1] : vector<16x32xf32> to vector<16xf32>
    %147 = vector.shape_cast %146 : vector<16xf32> to vector<16x1xf32>
    %cst_54 = arith.constant 3.200000e+01 : f32
    %148 = vector.broadcast %cst_54 : f32 to vector<16x1xf32>
    %149 = arith.divf %147, %148 : vector<16x1xf32>
    %150 = vector.broadcast %142 : vector<16x1xf32> to vector<16x32xf32>
    %151 = arith.subf %136, %150 : vector<16x32xf32>
    %cst_55 = arith.constant 9.99999974E-6 : f32
    %152 = vector.broadcast %cst_55 : f32 to vector<16x1xf32>
    %153 = arith.addf %149, %152 : vector<16x1xf32>
    %154 = math.rsqrt %153 : vector<16x1xf32>
    %155 = vector.broadcast %154 : vector<16x1xf32> to vector<16x32xf32>
    %156 = arith.mulf %151, %155 : vector<16x32xf32>
    %157 = vector.broadcast %137 : vector<1x32xf32> to vector<16x32xf32>
    %158 = arith.mulf %156, %157 : vector<16x32xf32>
    %159 = vector.broadcast %138 : vector<1x32xf32> to vector<16x32xf32>
    %160 = arith.addf %158, %159 : vector<16x32xf32>
    %c1_56 = arith.constant 1 : index
    %161 = memref.load %arg0[%c1_56] : memref<6xf32, #tpu.memory_space<smem>>
    %cst_57 = arith.constant 0.000000e+00 : f32
    %162 = vector.broadcast %cst_57 : f32 to vector<16x32xf32>
    %163 = arith.cmpf oge, %160, %162 : vector<16x32xf32>
    %164 = vector.broadcast %161 : f32 to vector<16x32xf32>
    %165 = arith.mulf %164, %160 : vector<16x32xf32>
    %166 = arith.select %163, %160, %165 : vector<16x32xi1>, vector<16x32xf32>
    %c4_58 = arith.constant 4 : index
    %c0_59 = arith.constant 0 : index
    %c0_60 = arith.constant 0 : index
    %167 = vector.load %arg5[%c4_58, %c0_59, %c0_60] : memref<9x32x32xbf16, #tpu.memory_space<vmem>>, vector<1x32x32xbf16>
    %168 = vector.shape_cast %167 : vector<1x32x32xbf16> to vector<32x32xbf16>
    %169 = arith.truncf %166 : vector<16x32xf32> to vector<16x32xbf16>
    %cst_61 = arith.constant dense<0.000000e+00> : vector<16x32xf32>
    %170 = tpu.matmul %169, %168, %cst_61 {dimension_numbers = #tpu.dot_dimension_numbers<[1], [0], [0], [1], [0, 0, 1, 1], [], []>} : vector<16x32xbf16>, vector<32x32xbf16>, vector<16x32xf32> -> vector<16x32xf32>
    %c8 = arith.constant 8 : index
    %c0_62 = arith.constant 0 : index
    %171 = vector.load %arg7[%c8, %c0_62] : memref<20x32xf32, #tpu.memory_space<vmem>>, vector<1x32xf32>
    %172 = vector.broadcast %171 : vector<1x32xf32> to vector<16x32xf32>
    %173 = arith.addf %170, %172 : vector<16x32xf32>
    %174 = arith.addf %123, %173 : vector<16x32xf32>
    %175 = vector.broadcast %8 : vector<16x1xf32> to vector<16x32xf32>
    %176 = arith.mulf %174, %175 : vector<16x32xf32>
    %cst_63 = arith.constant dense<0.000000e+00> : vector<16x32xf32>
    %177 = tpu.matmul %34, %176, %cst_63 {dimension_numbers = #tpu.dot_dimension_numbers<[1], [0], [0], [1], [0, 0, 1, 1], [], []>, precision = #tpu.contract_precision<fp32>} : vector<16x16xf32>, vector<16x32xf32>, vector<16x32xf32> -> vector<16x32xf32>
    %c9 = arith.constant 9 : index
    %c0_64 = arith.constant 0 : index
    %178 = vector.load %arg7[%c9, %c0_64] : memref<20x32xf32, #tpu.memory_space<vmem>>, vector<1x32xf32>
    %c10 = arith.constant 10 : index
    %c0_65 = arith.constant 0 : index
    %179 = vector.load %arg7[%c10, %c0_65] : memref<20x32xf32, #tpu.memory_space<vmem>>, vector<1x32xf32>
    %cst_66 = arith.constant dense<0.000000e+00> : vector<16xf32>
    %180 = vector.multi_reduction <add>, %177, %cst_66 [1] : vector<16x32xf32> to vector<16xf32>
    %181 = vector.shape_cast %180 : vector<16xf32> to vector<16x1xf32>
    %cst_67 = arith.constant 3.200000e+01 : f32
    %182 = vector.broadcast %cst_67 : f32 to vector<16x1xf32>
    %183 = arith.divf %181, %182 : vector<16x1xf32>
    %184 = vector.broadcast %183 : vector<16x1xf32> to vector<16x32xf32>
    %185 = arith.subf %177, %184 : vector<16x32xf32>
    %186 = arith.mulf %185, %185 : vector<16x32xf32>
    %cst_68 = arith.constant dense<0.000000e+00> : vector<16xf32>
    %187 = vector.multi_reduction <add>, %186, %cst_68 [1] : vector<16x32xf32> to vector<16xf32>
    %188 = vector.shape_cast %187 : vector<16xf32> to vector<16x1xf32>
    %cst_69 = arith.constant 3.200000e+01 : f32
    %189 = vector.broadcast %cst_69 : f32 to vector<16x1xf32>
    %190 = arith.divf %188, %189 : vector<16x1xf32>
    %191 = vector.broadcast %183 : vector<16x1xf32> to vector<16x32xf32>
    %192 = arith.subf %177, %191 : vector<16x32xf32>
    %cst_70 = arith.constant 9.99999974E-6 : f32
    %193 = vector.broadcast %cst_70 : f32 to vector<16x1xf32>
    %194 = arith.addf %190, %193 : vector<16x1xf32>
    %195 = math.rsqrt %194 : vector<16x1xf32>
    %196 = vector.broadcast %195 : vector<16x1xf32> to vector<16x32xf32>
    %197 = arith.mulf %192, %196 : vector<16x32xf32>
    %198 = vector.broadcast %178 : vector<1x32xf32> to vector<16x32xf32>
    %199 = arith.mulf %197, %198 : vector<16x32xf32>
    %200 = vector.broadcast %179 : vector<1x32xf32> to vector<16x32xf32>
    %201 = arith.addf %199, %200 : vector<16x32xf32>
    %c2_71 = arith.constant 2 : index
    %202 = memref.load %arg0[%c2_71] : memref<6xf32, #tpu.memory_space<smem>>
    %cst_72 = arith.constant 0.000000e+00 : f32
    %203 = vector.broadcast %cst_72 : f32 to vector<16x32xf32>
    %204 = arith.cmpf oge, %201, %203 : vector<16x32xf32>
    %205 = vector.broadcast %202 : f32 to vector<16x32xf32>
    %206 = arith.mulf %205, %201 : vector<16x32xf32>
    %207 = arith.select %204, %201, %206 : vector<16x32xi1>, vector<16x32xf32>
    %c5_73 = arith.constant 5 : index
    %c0_74 = arith.constant 0 : index
    %c0_75 = arith.constant 0 : index
    %208 = vector.load %arg5[%c5_73, %c0_74, %c0_75] : memref<9x32x32xbf16, #tpu.memory_space<vmem>>, vector<1x32x32xbf16>
    %209 = vector.shape_cast %208 : vector<1x32x32xbf16> to vector<32x32xbf16>
    %210 = arith.truncf %0 : vector<16x32xf32> to vector<16x32xbf16>
    %cst_76 = arith.constant dense<0.000000e+00> : vector<16x32xf32>
    %211 = tpu.matmul %210, %209, %cst_76 {dimension_numbers = #tpu.dot_dimension_numbers<[1], [0], [0], [1], [0, 0, 1, 1], [], []>} : vector<16x32xbf16>, vector<32x32xbf16>, vector<16x32xf32> -> vector<16x32xf32>
    %c11 = arith.constant 11 : index
    %c0_77 = arith.constant 0 : index
    %212 = vector.load %arg7[%c11, %c0_77] : memref<20x32xf32, #tpu.memory_space<vmem>>, vector<1x32xf32>
    %213 = vector.broadcast %212 : vector<1x32xf32> to vector<16x32xf32>
    %214 = arith.addf %211, %213 : vector<16x32xf32>
    %c12 = arith.constant 12 : index
    %c0_78 = arith.constant 0 : index
    %215 = vector.load %arg7[%c12, %c0_78] : memref<20x32xf32, #tpu.memory_space<vmem>>, vector<1x32xf32>
    %c13 = arith.constant 13 : index
    %c0_79 = arith.constant 0 : index
    %216 = vector.load %arg7[%c13, %c0_79] : memref<20x32xf32, #tpu.memory_space<vmem>>, vector<1x32xf32>
    %cst_80 = arith.constant dense<0.000000e+00> : vector<16xf32>
    %217 = vector.multi_reduction <add>, %214, %cst_80 [1] : vector<16x32xf32> to vector<16xf32>
    %218 = vector.shape_cast %217 : vector<16xf32> to vector<16x1xf32>
    %cst_81 = arith.constant 3.200000e+01 : f32
    %219 = vector.broadcast %cst_81 : f32 to vector<16x1xf32>
    %220 = arith.divf %218, %219 : vector<16x1xf32>
    %221 = vector.broadcast %220 : vector<16x1xf32> to vector<16x32xf32>
    %222 = arith.subf %214, %221 : vector<16x32xf32>
    %223 = arith.mulf %222, %222 : vector<16x32xf32>
    %cst_82 = arith.constant dense<0.000000e+00> : vector<16xf32>
    %224 = vector.multi_reduction <add>, %223, %cst_82 [1] : vector<16x32xf32> to vector<16xf32>
    %225 = vector.shape_cast %224 : vector<16xf32> to vector<16x1xf32>
    %cst_83 = arith.constant 3.200000e+01 : f32
    %226 = vector.broadcast %cst_83 : f32 to vector<16x1xf32>
    %227 = arith.divf %225, %226 : vector<16x1xf32>
    %228 = vector.broadcast %220 : vector<16x1xf32> to vector<16x32xf32>
    %229 = arith.subf %214, %228 : vector<16x32xf32>
    %cst_84 = arith.constant 9.99999974E-6 : f32
    %230 = vector.broadcast %cst_84 : f32 to vector<16x1xf32>
    %231 = arith.addf %227, %230 : vector<16x1xf32>
    %232 = math.rsqrt %231 : vector<16x1xf32>
    %233 = vector.broadcast %232 : vector<16x1xf32> to vector<16x32xf32>
    %234 = arith.mulf %229, %233 : vector<16x32xf32>
    %235 = vector.broadcast %215 : vector<1x32xf32> to vector<16x32xf32>
    %236 = arith.mulf %234, %235 : vector<16x32xf32>
    %237 = vector.broadcast %216 : vector<1x32xf32> to vector<16x32xf32>
    %238 = arith.addf %236, %237 : vector<16x32xf32>
    %c3_85 = arith.constant 3 : index
    %239 = memref.load %arg0[%c3_85] : memref<6xf32, #tpu.memory_space<smem>>
    %cst_86 = arith.constant 0.000000e+00 : f32
    %240 = vector.broadcast %cst_86 : f32 to vector<16x32xf32>
    %241 = arith.cmpf oge, %238, %240 : vector<16x32xf32>
    %242 = vector.broadcast %239 : f32 to vector<16x32xf32>
    %243 = arith.mulf %242, %238 : vector<16x32xf32>
    %244 = arith.select %241, %238, %243 : vector<16x32xi1>, vector<16x32xf32>
    %c6_87 = arith.constant 6 : index
    %c0_88 = arith.constant 0 : index
    %c0_89 = arith.constant 0 : index
    %245 = vector.load %arg5[%c6_87, %c0_88, %c0_89] : memref<9x32x32xbf16, #tpu.memory_space<vmem>>, vector<1x32x32xbf16>
    %246 = vector.shape_cast %245 : vector<1x32x32xbf16> to vector<32x32xbf16>
    %247 = arith.truncf %244 : vector<16x32xf32> to vector<16x32xbf16>
    %cst_90 = arith.constant dense<0.000000e+00> : vector<16x32xf32>
    %248 = tpu.matmul %247, %246, %cst_90 {dimension_numbers = #tpu.dot_dimension_numbers<[1], [0], [0], [1], [0, 0, 1, 1], [], []>} : vector<16x32xbf16>, vector<32x32xbf16>, vector<16x32xf32> -> vector<16x32xf32>
    %c14 = arith.constant 14 : index
    %c0_91 = arith.constant 0 : index
    %249 = vector.load %arg7[%c14, %c0_91] : memref<20x32xf32, #tpu.memory_space<vmem>>, vector<1x32xf32>
    %250 = vector.broadcast %249 : vector<1x32xf32> to vector<16x32xf32>
    %251 = arith.addf %248, %250 : vector<16x32xf32>
    %c15 = arith.constant 15 : index
    %c0_92 = arith.constant 0 : index
    %252 = vector.load %arg7[%c15, %c0_92] : memref<20x32xf32, #tpu.memory_space<vmem>>, vector<1x32xf32>
    %c16 = arith.constant 16 : index
    %c0_93 = arith.constant 0 : index
    %253 = vector.load %arg7[%c16, %c0_93] : memref<20x32xf32, #tpu.memory_space<vmem>>, vector<1x32xf32>
    %cst_94 = arith.constant dense<0.000000e+00> : vector<16xf32>
    %254 = vector.multi_reduction <add>, %251, %cst_94 [1] : vector<16x32xf32> to vector<16xf32>
    %255 = vector.shape_cast %254 : vector<16xf32> to vector<16x1xf32>
    %cst_95 = arith.constant 3.200000e+01 : f32
    %256 = vector.broadcast %cst_95 : f32 to vector<16x1xf32>
    %257 = arith.divf %255, %256 : vector<16x1xf32>
    %258 = vector.broadcast %257 : vector<16x1xf32> to vector<16x32xf32>
    %259 = arith.subf %251, %258 : vector<16x32xf32>
    %260 = arith.mulf %259, %259 : vector<16x32xf32>
    %cst_96 = arith.constant dense<0.000000e+00> : vector<16xf32>
    %261 = vector.multi_reduction <add>, %260, %cst_96 [1] : vector<16x32xf32> to vector<16xf32>
    %262 = vector.shape_cast %261 : vector<16xf32> to vector<16x1xf32>
    %cst_97 = arith.constant 3.200000e+01 : f32
    %263 = vector.broadcast %cst_97 : f32 to vector<16x1xf32>
    %264 = arith.divf %262, %263 : vector<16x1xf32>
    %265 = vector.broadcast %257 : vector<16x1xf32> to vector<16x32xf32>
    %266 = arith.subf %251, %265 : vector<16x32xf32>
    %cst_98 = arith.constant 9.99999974E-6 : f32
    %267 = vector.broadcast %cst_98 : f32 to vector<16x1xf32>
    %268 = arith.addf %264, %267 : vector<16x1xf32>
    %269 = math.rsqrt %268 : vector<16x1xf32>
    %270 = vector.broadcast %269 : vector<16x1xf32> to vector<16x32xf32>
    %271 = arith.mulf %266, %270 : vector<16x32xf32>
    %272 = vector.broadcast %252 : vector<1x32xf32> to vector<16x32xf32>
    %273 = arith.mulf %271, %272 : vector<16x32xf32>
    %274 = vector.broadcast %253 : vector<1x32xf32> to vector<16x32xf32>
    %275 = arith.addf %273, %274 : vector<16x32xf32>
    %c4_99 = arith.constant 4 : index
    %276 = memref.load %arg0[%c4_99] : memref<6xf32, #tpu.memory_space<smem>>
    %cst_100 = arith.constant 0.000000e+00 : f32
    %277 = vector.broadcast %cst_100 : f32 to vector<16x32xf32>
    %278 = arith.cmpf oge, %275, %277 : vector<16x32xf32>
    %279 = vector.broadcast %276 : f32 to vector<16x32xf32>
    %280 = arith.mulf %279, %275 : vector<16x32xf32>
    %281 = arith.select %278, %275, %280 : vector<16x32xi1>, vector<16x32xf32>
    %c7_101 = arith.constant 7 : index
    %c0_102 = arith.constant 0 : index
    %c0_103 = arith.constant 0 : index
    %282 = vector.load %arg5[%c7_101, %c0_102, %c0_103] : memref<9x32x32xbf16, #tpu.memory_space<vmem>>, vector<1x32x32xbf16>
    %283 = vector.shape_cast %282 : vector<1x32x32xbf16> to vector<32x32xbf16>
    %284 = arith.truncf %281 : vector<16x32xf32> to vector<16x32xbf16>
    %cst_104 = arith.constant dense<0.000000e+00> : vector<16x32xf32>
    %285 = tpu.matmul %284, %283, %cst_104 {dimension_numbers = #tpu.dot_dimension_numbers<[1], [0], [0], [1], [0, 0, 1, 1], [], []>} : vector<16x32xbf16>, vector<32x32xbf16>, vector<16x32xf32> -> vector<16x32xf32>
    %c8_105 = arith.constant 8 : index
    %c0_106 = arith.constant 0 : index
    %c0_107 = arith.constant 0 : index
    %286 = vector.load %arg5[%c8_105, %c0_106, %c0_107] : memref<9x32x32xbf16, #tpu.memory_space<vmem>>, vector<1x32x32xbf16>
    %287 = vector.shape_cast %286 : vector<1x32x32xbf16> to vector<32x32xbf16>
    %288 = arith.truncf %207 : vector<16x32xf32> to vector<16x32xbf16>
    %cst_108 = arith.constant dense<0.000000e+00> : vector<16x32xf32>
    %289 = tpu.matmul %288, %287, %cst_108 {dimension_numbers = #tpu.dot_dimension_numbers<[1], [0], [0], [1], [0, 0, 1, 1], [], []>} : vector<16x32xbf16>, vector<32x32xbf16>, vector<16x32xf32> -> vector<16x32xf32>
    %290 = arith.addf %285, %289 : vector<16x32xf32>
    %c17 = arith.constant 17 : index
    %c0_109 = arith.constant 0 : index
    %291 = vector.load %arg7[%c17, %c0_109] : memref<20x32xf32, #tpu.memory_space<vmem>>, vector<1x32xf32>
    %292 = vector.broadcast %291 : vector<1x32xf32> to vector<16x32xf32>
    %293 = arith.addf %290, %292 : vector<16x32xf32>
    %c18 = arith.constant 18 : index
    %c0_110 = arith.constant 0 : index
    %294 = vector.load %arg7[%c18, %c0_110] : memref<20x32xf32, #tpu.memory_space<vmem>>, vector<1x32xf32>
    %c19 = arith.constant 19 : index
    %c0_111 = arith.constant 0 : index
    %295 = vector.load %arg7[%c19, %c0_111] : memref<20x32xf32, #tpu.memory_space<vmem>>, vector<1x32xf32>
    %cst_112 = arith.constant dense<0.000000e+00> : vector<16xf32>
    %296 = vector.multi_reduction <add>, %293, %cst_112 [1] : vector<16x32xf32> to vector<16xf32>
    %297 = vector.shape_cast %296 : vector<16xf32> to vector<16x1xf32>
    %cst_113 = arith.constant 3.200000e+01 : f32
    %298 = vector.broadcast %cst_113 : f32 to vector<16x1xf32>
    %299 = arith.divf %297, %298 : vector<16x1xf32>
    %300 = vector.broadcast %299 : vector<16x1xf32> to vector<16x32xf32>
    %301 = arith.subf %293, %300 : vector<16x32xf32>
    %302 = arith.mulf %301, %301 : vector<16x32xf32>
    %cst_114 = arith.constant dense<0.000000e+00> : vector<16xf32>
    %303 = vector.multi_reduction <add>, %302, %cst_114 [1] : vector<16x32xf32> to vector<16xf32>
    %304 = vector.shape_cast %303 : vector<16xf32> to vector<16x1xf32>
    %cst_115 = arith.constant 3.200000e+01 : f32
    %305 = vector.broadcast %cst_115 : f32 to vector<16x1xf32>
    %306 = arith.divf %304, %305 : vector<16x1xf32>
    %307 = vector.broadcast %299 : vector<16x1xf32> to vector<16x32xf32>
    %308 = arith.subf %293, %307 : vector<16x32xf32>
    %cst_116 = arith.constant 9.99999974E-6 : f32
    %309 = vector.broadcast %cst_116 : f32 to vector<16x1xf32>
    %310 = arith.addf %306, %309 : vector<16x1xf32>
    %311 = math.rsqrt %310 : vector<16x1xf32>
    %312 = vector.broadcast %311 : vector<16x1xf32> to vector<16x32xf32>
    %313 = arith.mulf %308, %312 : vector<16x32xf32>
    %314 = vector.broadcast %294 : vector<1x32xf32> to vector<16x32xf32>
    %315 = arith.mulf %313, %314 : vector<16x32xf32>
    %316 = vector.broadcast %295 : vector<1x32xf32> to vector<16x32xf32>
    %317 = arith.addf %315, %316 : vector<16x32xf32>
    %c5_117 = arith.constant 5 : index
    %318 = memref.load %arg0[%c5_117] : memref<6xf32, #tpu.memory_space<smem>>
    %cst_118 = arith.constant 0.000000e+00 : f32
    %319 = vector.broadcast %cst_118 : f32 to vector<16x32xf32>
    %320 = arith.cmpf oge, %317, %319 : vector<16x32xf32>
    %321 = vector.broadcast %318 : f32 to vector<16x32xf32>
    %322 = arith.mulf %321, %317 : vector<16x32xf32>
    %323 = arith.select %320, %317, %322 : vector<16x32xi1>, vector<16x32xf32>
    %c0_119 = arith.constant 0 : index
    %c0_120 = arith.constant 0 : index
    %324 = vector.load %arg8[%c0_119, %c0_120] : memref<16x32xf32, #tpu.memory_space<vmem>>, vector<16x32xf32>
    tpu.vector_store %arg8[%c0_119, %c0_120], %323 {strides = array<i32>} : memref<16x32xf32, #tpu.memory_space<vmem>>, vector<16x32xf32>,
    return
  }
}

</mosaic_0001>

<llo_original>
// kernel: _mpn_forward_fused.1
$region0: #{_mpn_forward_fused.1}
  #allocation0 [shape = 'u32[]', space=smem, size = 0x4, offset = 0x4, fixed_abs, tag = 'smem constant byte address 0x4 - core index']
  #allocation1 [shape = 'u32[144,128]{1,0:T(1,128)}', space=vmem, size = 0x12000, scoped, tag = 'internal scratch']
  %s0 = inlined_call_operand.vmem [shape: f32[6], index: 0, kind: input, shape index: {}]
  %s1 = inlined_call_operand.vmem [shape: s32[16,4], index: 1, kind: input, shape index: {}]
  %s2 = inlined_call_operand.vmem [shape: s32[16,4], index: 2, kind: input, shape index: {}]
  %s3 = inlined_call_operand.vmem [shape: f32[16,32], index: 3, kind: input, shape index: {}]
  %s4 = inlined_call_operand.vmem [shape: f32[32,16], index: 4, kind: input, shape index: {}]
  %s5 = inlined_call_operand.vmem [shape: bf16[9,32,32], index: 5, kind: input, shape index: {}]
  %s6 = inlined_call_operand.vmem [shape: bf16[2,16,32], index: 6, kind: input, shape index: {}]
  %s7 = inlined_call_operand.vmem [shape: f32[20,32], index: 7, kind: input, shape index: {}]
  %s8 = inlined_call_operand.hbm [shape: f32[16,32], index: 8, kind: output, shape index: {}]
  %s9 = sld [smem:[#allocation0]]
  $region46: #{_mpn_forward_fused.1} parent=0
    _
  %s11 = ssub.s32 1, %s9
  %s12 = scalar_select 0, %s11, %s9
  $region1: #{_mpn_forward_fused.1} parent=0
    #allocation2 [shape = 'u8[512]{0}', space=smem, size = 0x200, scoped, tag = 'input window, operand 0, single buffered']
    #allocation3 [shape = 's32[1]{0}', space=sflag, size = 0x4, scoped, tag = 'scoped memory for _mpn_forward_fused.1']
    #allocation4 [shape = 's32[1]{0}', space=sflag, size = 0x4, scoped, tag = 'scoped memory for _mpn_forward_fused.1']
    #allocation5 [shape = 'u8[8192]{0}', space=vmem, size = 0x2000, scoped, tag = 'output window, operand 0, single buffered']
    %13 = vsyncpa [#allocation4], 0
    %14 = vsyncpa [#allocation3], 0
    // Predicated region
    $region2: #{_mpn_forward_fused.1} parent=1 // pred_check
      _
    $region3: #{_mpn_forward_fused.1} parent=1 // pred_check_branch
      %16 = sbr.rel (0) target = $region5
    $region4: #{_mpn_forward_fused.1} parent=1 // pred_region
      %s18 = ssub.s32 16, 16
      %19 = vsyncadd [#allocation4], %s18
      %s21 = sshll.u32 %s0, 4
      %s22 = int_to_ptr.vmem [resolvable:$true] %s21
      %24 = dma.vmem_to_smem %s22, 16, [#allocation2], [#allocation4]
    $region5: #{_mpn_forward_fused.1} parent=1 // pred_fallthru
      _
    // Predicated region
    $region6: #{_mpn_forward_fused.1} parent=1 // pred_check
      _
    $region7: #{_mpn_forward_fused.1} parent=1 // pred_check_branch
      %26 = sbr.rel (0) target = $region9
    $region8: #{_mpn_forward_fused.1} parent=1 // pred_region
      _
    $region9: #{_mpn_forward_fused.1} parent=1 // pred_fallthru
      _
    // Predicated region
    $region10: #{_mpn_forward_fused.1} parent=1 // pred_check
      _
    $region11: #{_mpn_forward_fused.1} parent=1 // pred_check_branch
      %28 = sbr.rel (0) target = $region13
    $region12: #{_mpn_forward_fused.1} parent=1 // pred_region
      _
    $region13: #{_mpn_forward_fused.1} parent=1 // pred_fallthru
      _
    // Predicated region
    $region14: #{_mpn_forward_fused.1} parent=1 // pred_check
      _
    $region15: #{_mpn_forward_fused.1} parent=1 // pred_check_branch
      %30 = sbr.rel (0) target = $region17
    $region16: #{_mpn_forward_fused.1} parent=1 // pred_region
      _
    $region17: #{_mpn_forward_fused.1} parent=1 // pred_fallthru
      _
    // Predicated region
    $region18: #{_mpn_forward_fused.1} parent=1 // pred_check
      _
    $region19: #{_mpn_forward_fused.1} parent=1 // pred_check_branch
      %32 = sbr.rel (0) target = $region21
    $region20: #{_mpn_forward_fused.1} parent=1 // pred_region
      _
    $region21: #{_mpn_forward_fused.1} parent=1 // pred_fallthru
      _
    // Predicated region
    $region22: #{_mpn_forward_fused.1} parent=1 // pred_check
      _
    $region23: #{_mpn_forward_fused.1} parent=1 // pred_check_branch
      %34 = sbr.rel (0) target = $region25
    $region24: #{_mpn_forward_fused.1} parent=1 // pred_region
      _
    $region25: #{_mpn_forward_fused.1} parent=1 // pred_fallthru
      _
    // Predicated region
    $region26: #{_mpn_forward_fused.1} parent=1 // pred_check
      _
    $region27: #{_mpn_forward_fused.1} parent=1 // pred_check_branch
      %36 = sbr.rel (0) target = $region29
    $region28: #{_mpn_forward_fused.1} parent=1 // pred_region
      _
    $region29: #{_mpn_forward_fused.1} parent=1 // pred_fallthru
      _
    // Predicated region
    $region30: #{_mpn_forward_fused.1} parent=1 // pred_check
      _
    $region31: #{_mpn_forward_fused.1} parent=1 // pred_check_branch
      %38 = sbr.rel (0) target = $region33
    $region32: #{_mpn_forward_fused.1} parent=1 // pred_region
      _
    $region33: #{_mpn_forward_fused.1} parent=1 // pred_fallthru
      _
    // Predicated region
    $region34: #{_mpn_forward_fused.1} parent=1 // pred_check
      _
    $region35: #{_mpn_forward_fused.1} parent=1 // pred_check_branch
      %40 = sbr.rel (0) target = $region37
    $region36: #{_mpn_forward_fused.1} parent=1 // pred_region
      %41 = dma.done [#allocation4], 16
    $region37: #{_mpn_forward_fused.1} parent=1 // pred_fallthru
      _
    %42 = sfence
    %v44 = vld [vmem:[%s3] sm:$0xff]
    %v45 = vld [vmem:[%s3 + $0x8] sm:$0xff]
    %v46 = vld [vmem:[%s4] sm:$0xff]
    %v47 = vld [vmem:[%s4 + $0x8] sm:$0xff]
    %v48 = vld [vmem:[%s4 + $0x10] sm:$0xff]
    %v49 = vld [vmem:[%s4 + $0x18] sm:$0xff]
    %v50 = vld [vmem:[%s1] sm:$0xff]
    %v51 = vld [vmem:[%s1 + $0x8] sm:$0xff]
    %v52 = vld [vmem:[%s2] sm:$0xff]
    %v53 = vld [vmem:[%s2 + $0x8] sm:$0xff]
    %v54 = vlaneseq
    %v55 = vshrl.u32 %v54, 7
    %v56 = vadd.s32 %v55, 8
    %vm57 = vcmp.ne.s32.totalorder %v55, 0
    %vm58 = vcmp.ne.s32.totalorder %v56, 0
    %v59 = vsel %vm57, 1, 0
    %v60 = vsel %vm58, 1, 0
    %v61 = vcvt.s32.f32 %v59
    %v62 = vcvt.s32.f32 %v60
    %v63 = vlaneseq
    %v64 = vand.u32 %v63, 127
    %65 = vset.pattern.permute.xlu0 0
    %66 = vperm.xlu0 %65, %v50
    %v67 = vpop.permute.xlu0 %66
    %68 = vset.pattern.permute.xlu0 0
    %69 = vperm.xlu0 %68, %v51
    %v70 = vpop.permute.xlu0 %69
    %vm71 = vcmp.eq.s32.totalorder %v67, %v64
    %vm72 = vcmp.eq.s32.totalorder %v70, %v64
    %v73 = vsel %vm71, 1, 0
    %v74 = vsel %vm72, 1, 0
    %v75 = vcvt.s32.f32 %v73
    %v76 = vcvt.s32.f32 %v74
    %v77 = vadd.f32 %v75, 0.0
    %v78 = vadd.f32 %v76, 0.0
    %79 = vset.pattern.permute.xlu0 1
    %80 = vperm.xlu0 %79, %v50
    %v81 = vpop.permute.xlu0 %80
    %82 = vset.pattern.permute.xlu0 1
    %83 = vperm.xlu0 %82, %v51
    %v84 = vpop.permute.xlu0 %83
    %vm85 = vcmp.eq.s32.totalorder %v81, %v64
    %vm86 = vcmp.eq.s32.totalorder %v84, %v64
    %v87 = vsel %vm85, 1, 0
    %v88 = vsel %vm86, 1, 0
    %v89 = vcvt.s32.f32 %v87
    %v90 = vcvt.s32.f32 %v88
    %v91 = vadd.f32 %v77, %v89
    %v92 = vadd.f32 %v78, %v90
    %93 = vset.pattern.permute.xlu0 2
    %94 = vperm.xlu0 %93, %v50
    %v95 = vpop.permute.xlu0 %94
    %96 = vset.pattern.permute.xlu0 2
    %97 = vperm.xlu0 %96, %v51
    %v98 = vpop.permute.xlu0 %97
    %vm99 = vcmp.eq.s32.totalorder %v95, %v64
    %vm100 = vcmp.eq.s32.totalorder %v98, %v64
    %v101 = vsel %vm99, 1, 0
    %v102 = vsel %vm100, 1, 0
    %v103 = vcvt.s32.f32 %v101
    %v104 = vcvt.s32.f32 %v102
    %v105 = vadd.f32 %v91, %v103
    %v106 = vadd.f32 %v92, %v104
    %107 = vset.pattern.permute.xlu0 3
    %108 = vperm.xlu0 %107, %v50
    %v109 = vpop.permute.xlu0 %108
    %110 = vset.pattern.permute.xlu0 3
    %111 = vperm.xlu0 %110, %v51
    %v112 = vpop.permute.xlu0 %111
    %vm113 = vcmp.eq.s32.totalorder %v109, %v64
    %vm114 = vcmp.eq.s32.totalorder %v112, %v64
    %v115 = vsel %vm113, 1, 0
    %v116 = vsel %vm114, 1, 0
    %v117 = vcvt.s32.f32 %v115
    %v118 = vcvt.s32.f32 %v116
    %v119 = vadd.f32 %v105, %v117
    %v120 = vadd.f32 %v106, %v118
    %121 = vset.pattern.permute.xlu0 0
    %122 = vperm.xlu0 %121, %v52
    %v123 = vpop.permute.xlu0 %122
    %124 = vset.pattern.permute.xlu0 0
    %125 = vperm.xlu0 %124, %v53
    %v126 = vpop.permute.xlu0 %125
    %vm127 = vcmp.eq.s32.totalorder %v123, %v64
    %vm128 = vcmp.eq.s32.totalorder %v126, %v64
    %v129 = vsel %vm127, 1, 0
    %v130 = vsel %vm128, 1, 0
    %v131 = vcvt.s32.f32 %v129
    %v132 = vcvt.s32.f32 %v130
    %v133 = vadd.f32 %v131, 0.0
    %v134 = vadd.f32 %v132, 0.0
    %135 = vset.pattern.permute.xlu0 1
    %136 = vperm.xlu0 %135, %v52
    %v137 = vpop.permute.xlu0 %136
    %138 = vset.pattern.permute.xlu0 1
    %139 = vperm.xlu0 %138, %v53
    %v140 = vpop.permute.xlu0 %139
    %vm141 = vcmp.eq.s32.totalorder %v137, %v64
    %vm142 = vcmp.eq.s32.totalorder %v140, %v64
    %v143 = vsel %vm141, 1, 0
    %v144 = vsel %vm142, 1, 0
    %v145 = vcvt.s32.f32 %v143
    %v146 = vcvt.s32.f32 %v144
    %v147 = vadd.f32 %v133, %v145
    %v148 = vadd.f32 %v134, %v146
    %149 = vset.pattern.permute.xlu0 2
    %150 = vperm.xlu0 %149, %v52
    %v151 = vpop.permute.xlu0 %150
    %152 = vset.pattern.permute.xlu0 2
    %153 = vperm.xlu0 %152, %v53
    %v154 = vpop.permute.xlu0 %153
    %vm155 = vcmp.eq.s32.totalorder %v151, %v64
    %vm156 = vcmp.eq.s32.totalorder %v154, %v64
    %v157 = vsel %vm155, 1, 0
    %v158 = vsel %vm156, 1, 0
    %v159 = vcvt.s32.f32 %v157
    %v160 = vcvt.s32.f32 %v158
    %v161 = vadd.f32 %v147, %v159
    %v162 = vadd.f32 %v148, %v160
    %163 = vset.pattern.permute.xlu0 3
    %164 = vperm.xlu0 %163, %v52
    %v165 = vpop.permute.xlu0 %164
    %166 = vset.pattern.permute.xlu0 3
    %167 = vperm.xlu0 %166, %v53
    %v168 = vpop.permute.xlu0 %167
    %vm169 = vcmp.eq.s32.totalorder %v165, %v64
    %vm170 = vcmp.eq.s32.totalorder %v168, %v64
    %v171 = vsel %vm169, 1, 0
    %v172 = vsel %vm170, 1, 0
    %v173 = vcvt.s32.f32 %v171
    %v174 = vcvt.s32.f32 %v172
    %v175 = vadd.f32 %v161, %v173
    %v176 = vadd.f32 %v162, %v174
    %v177 = vld [vmem:[%s5] sm:$0xf]
    %v178 = vld [vmem:[%s5 + $0x4] sm:$0xf]
    %v179 = vld [vmem:[%s5 + $0x8] sm:$0xf]
    %v180 = vld [vmem:[%s5 + $0xc] sm:$0xf]
    %v181 = vpack.c.bf16 %v45, %v44
    %v182 = vld [vmem:[%s7] sm:$0x1]
    %v183 = vlaneseq
    %v184 = vshrl.u32 %v183, 7
    %v185 = vsub.s32 0, %v184
    %v186 = vrot.slane %v182, %v185
    %v191 = vunpack.c.l.b16 %v177
    %v192 = vunpack.c.l.b16 %v178
    %v193 = vunpack.c.l.b16 %v179
    %v194 = vunpack.c.l.b16 %v180
    %v195 = vpack.c.b16 %v192, %v191
    %v196 = vpack.c.b16 %v194, %v193
    %vm199 = vcmask 261120
    %v201 = vsel %vm199, %v181, 0
    %203 = vmatprep.subr.bf16.mxu0 0
    %204 = vmatpush1.bf16.msra.mxu0 %v195
    %205 = vmatprep.subr.bf16.mxu0 0
    %206 = vmatpush1.bf16.msra.mxu0 %v196
    %207 = vmatprep.subr.bf16.mxu0 0
    %208 = vmatpush1.bf16.msra.mxu0 0
    %209 = vmatprep.subr.bf16.mxu0 0
    %210 = vmatpush1.bf16.msra.mxu0 0
    %211 = vmatprep.subr.bf16.mxu0 0
    %212 = vmatpush1.bf16.msra.mxu0 0
    %213 = vmatprep.subr.bf16.mxu0 0
    %214 = vmatpush1.bf16.msra.mxu0 0
    %215 = vmatprep.subr.bf16.mxu0 0
    %216 = vmatpush1.bf16.msra.mxu0 0
    %217 = vmatprep.subr.bf16.mxu0 0
    %218 = vmatpush1.bf16.msra.mxu0 0
    %219 = vmatprep.subr.bf16.mxu0 0
    %220 = vmatpush1.bf16.msra.mxu0 0
    %221 = vmatprep.subr.bf16.mxu0 0
    %222 = vmatpush1.bf16.msra.mxu0 0
    %223 = vmatprep.subr.bf16.mxu0 0
    %224 = vmatpush1.bf16.msra.mxu0 0
    %225 = vmatprep.subr.bf16.mxu0 0
    %226 = vmatpush1.bf16.msra.mxu0 0
    %227 = vmatprep.subr.bf16.mxu0 0
    %228 = vmatpush1.bf16.msra.mxu0 0
    %229 = vmatprep.subr.bf16.mxu0 0
    %230 = vmatpush1.bf16.msra.mxu0 0
    %231 = vmatprep.subr.bf16.mxu0 0
    %232 = vmatpush1.bf16.msra.mxu0 0
    %233 = vmatprep.subr.bf16.mxu0 0
    %234 = vmatpush1.bf16.msra.mxu0 0
    %235 = vmatprep.mubr.bf16.mxu0 0
    %236 = vmatmul.mubr.bf16.gmra.mrb[0].mxu0 %v201
    %v237 = vpop.f32.mrb[0].mxu0
    %v238 = vadd.f32 %v186, %v237
    %v239 = vpop.f32.mrb[0].mxu0
    %v240 = vpop.f32.mrb[0].mxu0
    %v241 = vadd.f32 %v186, %v240
    %v242 = vpop.f32.mrb[0].mxu0
    %243 = vdwg.mxu0
    %v244 = vmul.f32 %v238, %v61
    %v245 = vmul.f32 %v241, %v62
    %v247 = vsel %vm199, %v175, 0
    %v250 = vsel %vm199, %v176, 0
    %252 = vmatprep.subr.mxu0 0.0
    %v253 = vand.u32 %v46, 4294901760
    %254 = vmatpush1.msra.mxu0 %v253
    %255 = vmatprep.subr.mxu0 0.0
    %v256 = vand.u32 %v47, 4294901760
    %257 = vmatpush1.msra.mxu0 %v256
    %258 = vmatprep.subr.mxu0 0.0
    %v259 = vand.u32 %v48, 4294901760
    %260 = vmatpush1.msra.mxu0 %v259
    %261 = vmatprep.subr.mxu0 0.0
    %v262 = vand.u32 %v49, 4294901760
    %263 = vmatpush1.msra.mxu0 %v262
    %264 = vmatprep.subr.mxu0 0.0
    %265 = vmatpush1.msra.mxu0 0.0
    %266 = vmatprep.subr.mxu0 0.0
    %267 = vmatpush1.msra.mxu0 0.0
    %268 = vmatprep.subr.mxu0 0.0
    %269 = vmatpush1.msra.mxu0 0.0
    %270 = vmatprep.subr.mxu0 0.0
    %271 = vmatpush1.msra.mxu0 0.0
    %272 = vmatprep.subr.mxu0 0.0
    %273 = vmatpush1.msra.mxu0 0.0
    %274 = vmatprep.subr.mxu0 0.0
    %275 = vmatpush1.msra.mxu0 0.0
    %276 = vmatprep.subr.mxu0 0.0
    %277 = vmatpush1.msra.mxu0 0.0
    %278 = vmatprep.subr.mxu0 0.0
    %279 = vmatpush1.msra.mxu0 0.0
    %280 = vmatprep.subr.mxu0 0.0
    %281 = vmatpush1.msra.mxu0 0.0
    %282 = vmatprep.subr.mxu0 0.0
    %283 = vmatpush1.msra.mxu0 0.0
    %284 = vmatprep.subr.mxu0 0.0
    %285 = vmatpush1.msra.mxu0 0.0
    %286 = vmatprep.subr.mxu0 0.0
    %287 = vmatpush1.msra.mxu0 0.0
    %288 = vmatprep.subr.mxu0 0.0
    %289 = vmatpush1.msra.mxu0 0.0
    %290 = vmatprep.subr.mxu0 0.0
    %291 = vmatpush1.msra.mxu0 0.0
    %292 = vmatprep.subr.mxu0 0.0
    %293 = vmatpush1.msra.mxu0 0.0
    %294 = vmatprep.subr.mxu0 0.0
    %295 = vmatpush1.msra.mxu0 0.0
    %296 = vmatprep.subr.mxu0 0.0
    %297 = vmatpush1.msra.mxu0 0.0
    %298 = vmatprep.subr.mxu0 0.0
    %299 = vmatpush1.msra.mxu0 0.0
    %300 = vmatprep.subr.mxu0 0.0
    %301 = vmatpush1.msra.mxu0 0.0
    %302 = vmatprep.subr.mxu0 0.0
    %303 = vmatpush1.msra.mxu0 0.0
    %304 = vmatprep.subr.mxu0 0.0
    %305 = vmatpush1.msra.mxu0 0.0
    %306 = vmatprep.subr.mxu0 0.0
    %307 = vmatpush1.msra.mxu0 0.0
    %308 = vmatprep.subr.mxu0 0.0
    %309 = vmatpush1.msra.mxu0 0.0
    %310 = vmatprep.subr.mxu0 0.0
    %311 = vmatpush1.msra.mxu0 0.0
    %312 = vmatprep.subr.mxu0 0.0
    %313 = vmatpush1.msra.mxu0 0.0
    %314 = vmatprep.subr.mxu0 0.0
    %315 = vmatpush1.msra.mxu0 0.0
    %316 = vmatprep.subr.mxu0 0.0
    %317 = vmatpush1.msra.mxu0 0.0
    %318 = vmatprep.subr.mxu0 0.0
    %319 = vmatpush1.msra.mxu0 0.0
    %320 = vmatprep.mubr.f32.mxu0 0.0
    %v321 = vand.u32 %v247, 4294901760
    %v322 = vsub.f32 %v247, %v321
    %v323 = vand.u32 %v322, 4294901760
    %v324 = vsub.f32 %v322, %v323
    %v325 = vand.u32 %v324, 4294901760
    %326 = vmatmul.mubr.f32.gmra.mrb[0].mxu0 %v325
    %v327 = vpop.f32.mrb[0].mxu0
    %v328 = vadd.f32 0.0, %v327
    %v329 = vpop.f32.mrb[0].mxu0
    %330 = vmatprep.mubr.f32.mxu0 0.0
    %v331 = vand.u32 %v250, 4294901760
    %v332 = vsub.f32 %v250, %v331
    %v333 = vand.u32 %v332, 4294901760
    %v334 = vsub.f32 %v332, %v333
    %v335 = vand.u32 %v334, 4294901760
    %336 = vmatmul.mubr.f32.gmra.mrb[0].mxu0 %v335
    %v337 = vpop.f32.mrb[0].mxu0
    %v338 = vadd.f32 0.0, %v337
    %v339 = vpop.f32.mrb[0].mxu0
    %340 = vdwg.mxu0
    %341 = vmatprep.subr.mxu0 0.0
    %v342 = vand.u32 %v46, 4294901760
    %v343 = vsub.f32 %v46, %v342
    %v344 = vand.u32 %v343, 4294901760
    %v345 = vsub.f32 %v343, %v344
    %v346 = vand.u32 %v345, 4294901760
    %347 = vmatpush1.msra.mxu0 %v346
    %348 = vmatprep.subr.mxu0 0.0
    %v349 = vand.u32 %v47, 4294901760
    %v350 = vsub.f32 %v47, %v349
    %v351 = vand.u32 %v350, 4294901760
    %v352 = vsub.f32 %v350, %v351
    %v353 = vand.u32 %v352, 4294901760
    %354 = vmatpush1.msra.mxu0 %v353
    %355 = vmatprep.subr.mxu0 0.0
    %v356 = vand.u32 %v48, 4294901760
    %v357 = vsub.f32 %v48, %v356
    %v358 = vand.u32 %v357, 4294901760
    %v359 = vsub.f32 %v357, %v358
    %v360 = vand.u32 %v359, 4294901760
    %361 = vmatpush1.msra.mxu0 %v360
    %362 = vmatprep.subr.mxu0 0.0
    %v363 = vand.u32 %v49, 4294901760
    %v364 = vsub.f32 %v49, %v363
    %v365 = vand.u32 %v364, 4294901760
    %v366 = vsub.f32 %v364, %v365
    %v367 = vand.u32 %v366, 4294901760
    %368 = vmatpush1.msra.mxu0 %v367
    %369 = vmatprep.subr.mxu0 0.0
    %370 = vmatpush1.msra.mxu0 0.0
    %371 = vmatprep.subr.mxu0 0.0
    %372 = vmatpush1.msra.mxu0 0.0
    %373 = vmatprep.subr.mxu0 0.0
    %374 = vmatpush1.msra.mxu0 0.0
    %375 = vmatprep.subr.mxu0 0.0
    %376 = vmatpush1.msra.mxu0 0.0
    %377 = vmatprep.subr.mxu0 0.0
    %378 = vmatpush1.msra.mxu0 0.0
    %379 = vmatprep.subr.mxu0 0.0
    %380 = vmatpush1.msra.mxu0 0.0
    %381 = vmatprep.subr.mxu0 0.0
    %382 = vmatpush1.msra.mxu0 0.0
    %383 = vmatprep.subr.mxu0 0.0
    %384 = vmatpush1.msra.mxu0 0.0
    %385 = vmatprep.subr.mxu0 0.0
    %386 = vmatpush1.msra.mxu0 0.0
    %387 = vmatprep.subr.mxu0 0.0
    %388 = vmatpush1.msra.mxu0 0.0
    %389 = vmatprep.subr.mxu0 0.0
    %390 = vmatpush1.msra.mxu0 0.0
    %391 = vmatprep.subr.mxu0 0.0
    %392 = vmatpush1.msra.mxu0 0.0
    %393 = vmatprep.subr.mxu0 0.0
    %394 = vmatpush1.msra.mxu0 0.0
    %395 = vmatprep.subr.mxu0 0.0
    %396 = vmatpush1.msra.mxu0 0.0
    %397 = vmatprep.subr.mxu0 0.0
    %398 = vmatpush1.msra.mxu0 0.0
    %399 = vmatprep.subr.mxu0 0.0
    %400 = vmatpush1.msra.mxu0 0.0
    %401 = vmatprep.subr.mxu0 0.0
    %402 = vmatpush1.msra.mxu0 0.0
    %403 = vmatprep.subr.mxu0 0.0
    %404 = vmatpush1.msra.mxu0 0.0
    %405 = vmatprep.subr.mxu0 0.0
    %406 = vmatpush1.msra.mxu0 0.0
    %407 = vmatprep.subr.mxu0 0.0
    %408 = vmatpush1.msra.mxu0 0.0
    %409 = vmatprep.subr.mxu0 0.0
    %410 = vmatpush1.msra.mxu0 0.0
    %411 = vmatprep.subr.mxu0 0.0
    %412 = vmatpush1.msra.mxu0 0.0
    %413 = vmatprep.subr.mxu0 0.0
    %414 = vmatpush1.msra.mxu0 0.0
    %415 = vmatprep.subr.mxu0 0.0
    %416 = vmatpush1.msra.mxu0 0.0
    %417 = vmatprep.subr.mxu0 0.0
    %418 = vmatpush1.msra.mxu0 0.0
    %419 = vmatprep.subr.mxu0 0.0
    %420 = vmatpush1.msra.mxu0 0.0
    %421 = vmatprep.subr.mxu0 0.0
    %422 = vmatpush1.msra.mxu0 0.0
    %423 = vmatprep.subr.mxu0 0.0
    %424 = vmatpush1.msra.mxu0 0.0
    %425 = vmatprep.mubr.f32.mxu0 0.0
    %v426 = vand.u32 %v247, 4294901760
    %427 = vmatmul.mubr.f32.gmra.mrb[0].mxu0 %v426
    %v428 = vpop.f32.mrb[0].mxu0
    %v429 = vadd.f32 %v328, %v428
    %v430 = vpop.f32.mrb[0].mxu0
    %431 = vmatprep.mubr.f32.mxu0 0.0
    %v432 = vand.u32 %v250, 4294901760
    %433 = vmatmul.mubr.f32.gmra.mrb[0].mxu0 %v432
    %v434 = vpop.f32.mrb[0].mxu0
    %v435 = vadd.f32 %v338, %v434
    %v436 = vpop.f32.mrb[0].mxu0
    %437 = vdwg.mxu0
    %438 = vmatprep.subr.mxu0 0.0
    %v439 = vand.u32 %v46, 4294901760
    %v440 = vsub.f32 %v46, %v439
    %441 = vmatpush1.msra.mxu0 %v440
    %442 = vmatprep.subr.mxu0 0.0
    %v443 = vand.u32 %v47, 4294901760
    %v444 = vsub.f32 %v47, %v443
    %445 = vmatpush1.msra.mxu0 %v444
    %446 = vmatprep.subr.mxu0 0.0
    %v447 = vand.u32 %v48, 4294901760
    %v448 = vsub.f32 %v48, %v447
    %449 = vmatpush1.msra.mxu0 %v448
    %450 = vmatprep.subr.mxu0 0.0
    %v451 = vand.u32 %v49, 4294901760
    %v452 = vsub.f32 %v49, %v451
    %453 = vmatpush1.msra.mxu0 %v452
    %454 = vmatprep.subr.mxu0 0.0
    %455 = vmatpush1.msra.mxu0 0.0
    %456 = vmatprep.subr.mxu0 0.0
    %457 = vmatpush1.msra.mxu0 0.0
    %458 = vmatprep.subr.mxu0 0.0
    %459 = vmatpush1.msra.mxu0 0.0
    %460 = vmatprep.subr.mxu0 0.0
    %461 = vmatpush1.msra.mxu0 0.0
    %462 = vmatprep.subr.mxu0 0.0
    %463 = vmatpush1.msra.mxu0 0.0
    %464 = vmatprep.subr.mxu0 0.0
    %465 = vmatpush1.msra.mxu0 0.0
    %466 = vmatprep.subr.mxu0 0.0
    %467 = vmatpush1.msra.mxu0 0.0
    %468 = vmatprep.subr.mxu0 0.0
    %469 = vmatpush1.msra.mxu0 0.0
    %470 = vmatprep.subr.mxu0 0.0
    %471 = vmatpush1.msra.mxu0 0.0
    %472 = vmatprep.subr.mxu0 0.0
    %473 = vmatpush1.msra.mxu0 0.0
    %474 = vmatprep.subr.mxu0 0.0
    %475 = vmatpush1.msra.mxu0 0.0
    %476 = vmatprep.subr.mxu0 0.0
    %477 = vmatpush1.msra.mxu0 0.0
    %478 = vmatprep.subr.mxu0 0.0
    %479 = vmatpush1.msra.mxu0 0.0
    %480 = vmatprep.subr.mxu0 0.0
    %481 = vmatpush1.msra.mxu0 0.0
    %482 = vmatprep.subr.mxu0 0.0
    %483 = vmatpush1.msra.mxu0 0.0
    %484 = vmatprep.subr.mxu0 0.0
    %485 = vmatpush1.msra.mxu0 0.0
    %486 = vmatprep.subr.mxu0 0.0
    %487 = vmatpush1.msra.mxu0 0.0
    %488 = vmatprep.subr.mxu0 0.0
    %489 = vmatpush1.msra.mxu0 0.0
    %490 = vmatprep.subr.mxu0 0.0
    %491 = vmatpush1.msra.mxu0 0.0
    %492 = vmatprep.subr.mxu0 0.0
    %493 = vmatpush1.msra.mxu0 0.0
    %494 = vmatprep.subr.mxu0 0.0
    %495 = vmatpush1.msra.mxu0 0.0
    %496 = vmatprep.subr.mxu0 0.0
    %497 = vmatpush1.msra.mxu0 0.0
    %498 = vmatprep.subr.mxu0 0.0
    %499 = vmatpush1.msra.mxu0 0.0
    %500 = vmatprep.subr.mxu0 0.0
    %501 = vmatpush1.msra.mxu0 0.0
    %502 = vmatprep.subr.mxu0 0.0
    %503 = vmatpush1.msra.mxu0 0.0
    %504 = vmatprep.subr.mxu0 0.0
    %505 = vmatpush1.msra.mxu0 0.0
    %506 = vmatprep.subr.mxu0 0.0
    %507 = vmatpush1.msra.mxu0 0.0
    %508 = vmatprep.subr.mxu0 0.0
    %509 = vmatpush1.msra.mxu0 0.0
    %510 = vmatprep.mubr.f32.mxu0 0.0
    %v511 = vand.u32 %v247, 4294901760
    %v512 = vsub.f32 %v247, %v511
    %513 = vmatmul.mubr.f32.gmra.mrb[0].mxu0 %v512
    %v514 = vpop.f32.mrb[0].mxu0
    %v515 = vadd.f32 %v429, %v514
    %v516 = vpop.f32.mrb[0].mxu0
    %517 = vmatprep.mubr.f32.mxu0 0.0
    %v518 = vand.u32 %v250, 4294901760
    %v519 = vsub.f32 %v250, %v518
    %520 = vmatmul.mubr.f32.gmra.mrb[0].mxu0 %v519
    %v521 = vpop.f32.mrb[0].mxu0
    %v522 = vadd.f32 %v435, %v521
    %v523 = vpop.f32.mrb[0].mxu0
    %524 = vdwg.mxu0
    %525 = vmatprep.subr.mxu0 0.0
    %v526 = vand.u32 %v46, 4294901760
    %527 = vmatpush1.msra.mxu0 %v526
    %528 = vmatprep.subr.mxu0 0.0
    %v529 = vand.u32 %v47, 4294901760
    %530 = vmatpush1.msra.mxu0 %v529
    %531 = vmatprep.subr.mxu0 0.0
    %v532 = vand.u32 %v48, 4294901760
    %533 = vmatpush1.msra.mxu0 %v532
    %534 = vmatprep.subr.mxu0 0.0
    %v535 = vand.u32 %v49, 4294901760
    %536 = vmatpush1.msra.mxu0 %v535
    %537 = vmatprep.subr.mxu0 0.0
    %538 = vmatpush1.msra.mxu0 0.0
    %539 = vmatprep.subr.mxu0 0.0
    %540 = vmatpush1.msra.mxu0 0.0
    %541 = vmatprep.subr.mxu0 0.0
    %542 = vmatpush1.msra.mxu0 0.0
    %543 = vmatprep.subr.mxu0 0.0
    %544 = vmatpush1.msra.mxu0 0.0
    %545 = vmatprep.subr.mxu0 0.0
    %546 = vmatpush1.msra.mxu0 0.0
    %547 = vmatprep.subr.mxu0 0.0
    %548 = vmatpush1.msra.mxu0 0.0
    %549 = vmatprep.subr.mxu0 0.0
    %550 = vmatpush1.msra.mxu0 0.0
    %551 = vmatprep.subr.mxu0 0.0
    %552 = vmatpush1.msra.mxu0 0.0
    %553 = vmatprep.subr.mxu0 0.0
    %554 = vmatpush1.msra.mxu0 0.0
    %555 = vmatprep.subr.mxu0 0.0
    %556 = vmatpush1.msra.mxu0 0.0
    %557 = vmatprep.subr.mxu0 0.0
    %558 = vmatpush1.msra.mxu0 0.0
    %559 = vmatprep.subr.mxu0 0.0
    %560 = vmatpush1.msra.mxu0 0.0
    %561 = vmatprep.subr.mxu0 0.0
    %562 = vmatpush1.msra.mxu0 0.0
    %563 = vmatprep.subr.mxu0 0.0
    %564 = vmatpush1.msra.mxu0 0.0
    %565 = vmatprep.subr.mxu0 0.0
    %566 = vmatpush1.msra.mxu0 0.0
    %567 = vmatprep.subr.mxu0 0.0
    %568 = vmatpush1.msra.mxu0 0.0
    %569 = vmatprep.subr.mxu0 0.0
    %570 = vmatpush1.msra.mxu0 0.0
    %571 = vmatprep.subr.mxu0 0.0
    %572 = vmatpush1.msra.mxu0 0.0
    %573 = vmatprep.subr.mxu0 0.0
    %574 = vmatpush1.msra.mxu0 0.0
    %575 = vmatprep.subr.mxu0 0.0
    %576 = vmatpush1.msra.mxu0 0.0
    %577 = vmatprep.subr.mxu0 0.0
    %578 = vmatpush1.msra.mxu0 0.0
    %579 = vmatprep.subr.mxu0 0.0
    %580 = vmatpush1.msra.mxu0 0.0
    %581 = vmatprep.subr.mxu0 0.0
    %582 = vmatpush1.msra.mxu0 0.0
    %583 = vmatprep.subr.mxu0 0.0
    %584 = vmatpush1.msra.mxu0 0.0
    %585 = vmatprep.subr.mxu0 0.0
    %586 = vmatpush1.msra.mxu0 0.0
    %587 = vmatprep.subr.mxu0 0.0
    %588 = vmatpush1.msra.mxu0 0.0
    %589 = vmatprep.subr.mxu0 0.0
    %590 = vmatpush1.msra.mxu0 0.0
    %591 = vmatprep.subr.mxu0 0.0
    %592 = vmatpush1.msra.mxu0 0.0
    %593 = vmatprep.mubr.f32.mxu0 0.0
    %v594 = vand.u32 %v247, 4294901760
    %v595 = vsub.f32 %v247, %v594
    %v596 = vand.u32 %v595, 4294901760
    %597 = vmatmul.mubr.f32.gmra.mrb[0].mxu0 %v596
    %v598 = vpop.f32.mrb[0].mxu0
    %v599 = vadd.f32 %v515, %v598
    %v600 = vpop.f32.mrb[0].mxu0
    %601 = vmatprep.mubr.f32.mxu0 0.0
    %v602 = vand.u32 %v250, 4294901760
    %v603 = vsub.f32 %v250, %v602
    %v604 = vand.u32 %v603, 4294901760
    %605 = vmatmul.mubr.f32.gmra.mrb[0].mxu0 %v604
    %v606 = vpop.f32.mrb[0].mxu0
    %v607 = vadd.f32 %v522, %v606
    %v608 = vpop.f32.mrb[0].mxu0
    %609 = vdwg.mxu0
    %610 = vmatprep.subr.mxu0 0.0
    %v611 = vand.u32 %v46, 4294901760
    %v612 = vsub.f32 %v46, %v611
    %v613 = vand.u32 %v612, 4294901760
    %614 = vmatpush1.msra.mxu0 %v613
    %615 = vmatprep.subr.mxu0 0.0
    %v616 = vand.u32 %v47, 4294901760
    %v617 = vsub.f32 %v47, %v616
    %v618 = vand.u32 %v617, 4294901760
    %619 = vmatpush1.msra.mxu0 %v618
    %620 = vmatprep.subr.mxu0 0.0
    %v621 = vand.u32 %v48, 4294901760
    %v622 = vsub.f32 %v48, %v621
    %v623 = vand.u32 %v622, 4294901760
    %624 = vmatpush1.msra.mxu0 %v623
    %625 = vmatprep.subr.mxu0 0.0
    %v626 = vand.u32 %v49, 4294901760
    %v627 = vsub.f32 %v49, %v626
    %v628 = vand.u32 %v627, 4294901760
    %629 = vmatpush1.msra.mxu0 %v628
    %630 = vmatprep.subr.mxu0 0.0
    %631 = vmatpush1.msra.mxu0 0.0
    %632 = vmatprep.subr.mxu0 0.0
    %633 = vmatpush1.msra.mxu0 0.0
    %634 = vmatprep.subr.mxu0 0.0
    %635 = vmatpush1.msra.mxu0 0.0
    %636 = vmatprep.subr.mxu0 0.0
    %637 = vmatpush1.msra.mxu0 0.0
    %638 = vmatprep.subr.mxu0 0.0
    %639 = vmatpush1.msra.mxu0 0.0
    %640 = vmatprep.subr.mxu0 0.0
    %641 = vmatpush1.msra.mxu0 0.0
    %642 = vmatprep.subr.mxu0 0.0
    %643 = vmatpush1.msra.mxu0 0.0
    %644 = vmatprep.subr.mxu0 0.0
    %645 = vmatpush1.msra.mxu0 0.0
    %646 = vmatprep.subr.mxu0 0.0
    %647 = vmatpush1.msra.mxu0 0.0
    %648 = vmatprep.subr.mxu0 0.0
    %649 = vmatpush1.msra.mxu0 0.0
    %650 = vmatprep.subr.mxu0 0.0
    %651 = vmatpush1.msra.mxu0 0.0
    %652 = vmatprep.subr.mxu0 0.0
    %653 = vmatpush1.msra.mxu0 0.0
    %654 = vmatprep.subr.mxu0 0.0
    %655 = vmatpush1.msra.mxu0 0.0
    %656 = vmatprep.subr.mxu0 0.0
    %657 = vmatpush1.msra.mxu0 0.0
    %658 = vmatprep.subr.mxu0 0.0
    %659 = vmatpush1.msra.mxu0 0.0
    %660 = vmatprep.subr.mxu0 0.0
    %661 = vmatpush1.msra.mxu0 0.0
    %662 = vmatprep.subr.mxu0 0.0
    %663 = vmatpush1.msra.mxu0 0.0
    %664 = vmatprep.subr.mxu0 0.0
    %665 = vmatpush1.msra.mxu0 0.0
    %666 = vmatprep.subr.mxu0 0.0
    %667 = vmatpush1.msra.mxu0 0.0
    %668 = vmatprep.subr.mxu0 0.0
    %669 = vmatpush1.msra.mxu0 0.0
    %670 = vmatprep.subr.mxu0 0.0
    %671 = vmatpush1.msra.mxu0 0.0
    %672 = vmatprep.subr.mxu0 0.0
    %673 = vmatpush1.msra.mxu0 0.0
    %674 = vmatprep.subr.mxu0 0.0
    %675 = vmatpush1.msra.mxu0 0.0
    %676 = vmatprep.subr.mxu0 0.0
    %677 = vmatpush1.msra.mxu0 0.0
    %678 = vmatprep.subr.mxu0 0.0
    %679 = vmatpush1.msra.mxu0 0.0
    %680 = vmatprep.subr.mxu0 0.0
    %681 = vmatpush1.msra.mxu0 0.0
    %682 = vmatprep.subr.mxu0 0.0
    %683 = vmatpush1.msra.mxu0 0.0
    %684 = vmatprep.subr.mxu0 0.0
    %685 = vmatpush1.msra.mxu0 0.0
    %686 = vmatprep.mubr.f32.mxu0 0.0
    %v687 = vand.u32 %v247, 4294901760
    %688 = vmatmul.mubr.f32.gmra.mrb[0].mxu0 %v687
    %v689 = vpop.f32.mrb[0].mxu0
    %v690 = vadd.f32 %v599, %v689
    %v691 = vpop.f32.mrb[0].mxu0
    %692 = vmatprep.mubr.f32.mxu0 0.0
    %v693 = vand.u32 %v250, 4294901760
    %694 = vmatmul.mubr.f32.gmra.mrb[0].mxu0 %v693
    %v695 = vpop.f32.mrb[0].mxu0
    %v696 = vadd.f32 %v607, %v695
    %v697 = vpop.f32.mrb[0].mxu0
    %698 = vdwg.mxu0
    %699 = vmatprep.subr.mxu0 0.0
    %v700 = vand.u32 %v46, 4294901760
    %701 = vmatpush1.msra.mxu0 %v700
    %702 = vmatprep.subr.mxu0 0.0
    %v703 = vand.u32 %v47, 4294901760
    %704 = vmatpush1.msra.mxu0 %v703
    %705 = vmatprep.subr.mxu0 0.0
    %v706 = vand.u32 %v48, 4294901760
    %707 = vmatpush1.msra.mxu0 %v706
    %708 = vmatprep.subr.mxu0 0.0
    %v709 = vand.u32 %v49, 4294901760
    %710 = vmatpush1.msra.mxu0 %v709
    %711 = vmatprep.subr.mxu0 0.0
    %712 = vmatpush1.msra.mxu0 0.0
    %713 = vmatprep.subr.mxu0 0.0
    %714 = vmatpush1.msra.mxu0 0.0
    %715 = vmatprep.subr.mxu0 0.0
    %716 = vmatpush1.msra.mxu0 0.0
    %717 = vmatprep.subr.mxu0 0.0
    %718 = vmatpush1.msra.mxu0 0.0
    %719 = vmatprep.subr.mxu0 0.0
    %720 = vmatpush1.msra.mxu0 0.0
    %721 = vmatprep.subr.mxu0 0.0
    %722 = vmatpush1.msra.mxu0 0.0
    %723 = vmatprep.subr.mxu0 0.0
    %724 = vmatpush1.msra.mxu0 0.0
    %725 = vmatprep.subr.mxu0 0.0
    %726 = vmatpush1.msra.mxu0 0.0
    %727 = vmatprep.subr.mxu0 0.0
    %728 = vmatpush1.msra.mxu0 0.0
    %729 = vmatprep.subr.mxu0 0.0
    %730 = vmatpush1.msra.mxu0 0.0
    %731 = vmatprep.subr.mxu0 0.0
    %732 = vmatpush1.msra.mxu0 0.0
    %733 = vmatprep.subr.mxu0 0.0
    %734 = vmatpush1.msra.mxu0 0.0
    %735 = vmatprep.subr.mxu0 0.0
    %736 = vmatpush1.msra.mxu0 0.0
    %737 = vmatprep.subr.mxu0 0.0
    %738 = vmatpush1.msra.mxu0 0.0
    %739 = vmatprep.subr.mxu0 0.0
    %740 = vmatpush1.msra.mxu0 0.0
    %741 = vmatprep.subr.mxu0 0.0
    %742 = vmatpush1.msra.mxu0 0.0
    %743 = vmatprep.subr.mxu0 0.0
    %744 = vmatpush1.msra.mxu0 0.0
    %745 = vmatprep.subr.mxu0 0.0
    %746 = vmatpush1.msra.mxu0 0.0
    %747 = vmatprep.subr.mxu0 0.0
    %748 = vmatpush1.msra.mxu0 0.0
    %749 = vmatprep.subr.mxu0 0.0
    %750 = vmatpush1.msra.mxu0 0.0
    %751 = vmatprep.subr.mxu0 0.0
    %752 = vmatpush1.msra.mxu0 0.0
    %753 = vmatprep.subr.mxu0 0.0
    %754 = vmatpush1.msra.mxu0 0.0
    %755 = vmatprep.subr.mxu0 0.0
    %756 = vmatpush1.msra.mxu0 0.0
    %757 = vmatprep.subr.mxu0 0.0
    %758 = vmatpush1.msra.mxu0 0.0
    %759 = vmatprep.subr.mxu0 0.0
    %760 = vmatpush1.msra.mxu0 0.0
    %761 = vmatprep.subr.mxu0 0.0
    %762 = vmatpush1.msra.mxu0 0.0
    %763 = vmatprep.subr.mxu0 0.0
    %764 = vmatpush1.msra.mxu0 0.0
    %765 = vmatprep.subr.mxu0 0.0
    %766 = vmatpush1.msra.mxu0 0.0
    %767 = vmatprep.mubr.f32.mxu0 0.0
    %v768 = vand.u32 %v247, 4294901760
    %769 = vmatmul.mubr.f32.gmra.mrb[0].mxu0 %v768
    %v770 = vpop.f32.mrb[0].mxu0
    %v771 = vadd.f32 %v690, %v770
    %v772 = vpop.f32.mrb[0].mxu0
    %773 = vmatprep.mubr.f32.mxu0 0.0
    %v774 = vand.u32 %v250, 4294901760
    %775 = vmatmul.mubr.f32.gmra.mrb[0].mxu0 %v774
    %v776 = vpop.f32.mrb[0].mxu0
    %v777 = vadd.f32 %v696, %v776
    %v778 = vpop.f32.mrb[0].mxu0
    %779 = vdwg.mxu0
    %vm780 = vcmask 130048
    %v782 = vsel %vm780, %v119, 0
    %v785 = vsel %vm780, %v120, 0
    %787 = vmatprep.subr.mxu0 0.0
    %v788 = vand.u32 %v244, 4294901760
    %789 = vmatpush1.msra.mxu0 %v788
    %790 = vmatprep.subr.mxu0 0.0
    %v791 = vand.u32 %v245, 4294901760
    %792 = vmatpush1.msra.mxu0 %v791
    %793 = vmatprep.subr.mxu0 0.0
    %794 = vmatpush1.msra.mxu0 0.0
    %795 = vmatprep.subr.mxu0 0.0
    %796 = vmatpush1.msra.mxu0 0.0
    %797 = vmatprep.subr.mxu0 0.0
    %798 = vmatpush1.msra.mxu0 0.0
    %799 = vmatprep.subr.mxu0 0.0
    %800 = vmatpush1.msra.mxu0 0.0
    %801 = vmatprep.subr.mxu0 0.0
    %802 = vmatpush1.msra.mxu0 0.0
    %803 = vmatprep.subr.mxu0 0.0
    %804 = vmatpush1.msra.mxu0 0.0
    %805 = vmatprep.subr.mxu0 0.0
    %806 = vmatpush1.msra.mxu0 0.0
    %807 = vmatprep.subr.mxu0 0.0
    %808 = vmatpush1.msra.mxu0 0.0
    %809 = vmatprep.subr.mxu0 0.0
    %810 = vmatpush1.msra.mxu0 0.0
    %811 = vmatprep.subr.mxu0 0.0
    %812 = vmatpush1.msra.mxu0 0.0
    %813 = vmatprep.subr.mxu0 0.0
    %814 = vmatpush1.msra.mxu0 0.0
    %815 = vmatprep.subr.mxu0 0.0
    %816 = vmatpush1.msra.mxu0 0.0
    %817 = vmatprep.subr.mxu0 0.0
    %818 = vmatpush1.msra.mxu0 0.0
    %819 = vmatprep.subr.mxu0 0.0
    %820 = vmatpush1.msra.mxu0 0.0
    %821 = vmatprep.subr.mxu0 0.0
    %822 = vmatpush1.msra.mxu0 0.0
    %823 = vmatprep.subr.mxu0 0.0
    %824 = vmatpush1.msra.mxu0 0.0
    %825 = vmatprep.subr.mxu0 0.0
    %826 = vmatpush1.msra.mxu0 0.0
    %827 = vmatprep.subr.mxu0 0.0
    %828 = vmatpush1.msra.mxu0 0.0
    %829 = vmatprep.subr.mxu0 0.0
    %830 = vmatpush1.msra.mxu0 0.0
    %831 = vmatprep.subr.mxu0 0.0
    %832 = vmatpush1.msra.mxu0 0.0
    %833 = vmatprep.subr.mxu0 0.0
    %834 = vmatpush1.msra.mxu0 0.0
    %835 = vmatprep.subr.mxu0 0.0
    %836 = vmatpush1.msra.mxu0 0.0
    %837 = vmatprep.subr.mxu0 0.0
    %838 = vmatpush1.msra.mxu0 0.0
    %839 = vmatprep.subr.mxu0 0.0
    %840 = vmatpush1.msra.mxu0 0.0
    %841 = vmatprep.subr.mxu0 0.0
    %842 = vmatpush1.msra.mxu0 0.0
    %843 = vmatprep.subr.mxu0 0.0
    %844 = vmatpush1.msra.mxu0 0.0
    %845 = vmatprep.subr.mxu0 0.0
    %846 = vmatpush1.msra.mxu0 0.0
    %847 = vmatprep.subr.mxu0 0.0
    %848 = vmatpush1.msra.mxu0 0.0
    %849 = vmatprep.subr.mxu0 0.0
    %850 = vmatpush1.msra.mxu0 0.0
    %851 = vmatprep.subr.mxu0 0.0
    %852 = vmatpush1.msra.mxu0 0.0
    %853 = vmatprep.mubr.f32.mxu0 0.0
    %v854 = vand.u32 %v782, 4294901760
    %v855 = vsub.f32 %v782, %v854
    %v856 = vand.u32 %v855, 4294901760
    %v857 = vsub.f32 %v855, %v856
    %v858 = vand.u32 %v857, 4294901760
    %859 = vmatmul.mubr.f32.gmra.mrb[0].mxu0 %v858
    %v860 = vpop.f32.mrb[0].mxu0
    %v861 = vadd.f32 0.0, %v860
    %v862 = vpop.f32.mrb[0].mxu0
    %863 = vmatprep.mubr.f32.mxu0 0.0
    %v864 = vand.u32 %v785, 4294901760
    %v865 = vsub.f32 %v785, %v864
    %v866 = vand.u32 %v865, 4294901760
    %v867 = vsub.f32 %v865, %v866
    %v868 = vand.u32 %v867, 4294901760
    %869 = vmatmul.mubr.f32.gmra.mrb[0].mxu0 %v868
    %v870 = vpop.f32.mrb[0].mxu0
    %v871 = vadd.f32 0.0, %v870
    %v872 = vpop.f32.mrb[0].mxu0
    %873 = vdwg.mxu0
    %874 = vmatprep.subr.mxu0 0.0
    %v875 = vand.u32 %v244, 4294901760
    %v876 = vsub.f32 %v244, %v875
    %v877 = vand.u32 %v876, 4294901760
    %v878 = vsub.f32 %v876, %v877
    %v879 = vand.u32 %v878, 4294901760
    %880 = vmatpush1.msra.mxu0 %v879
    %881 = vmatprep.subr.mxu0 0.0
    %v882 = vand.u32 %v245, 4294901760
    %v883 = vsub.f32 %v245, %v882
    %v884 = vand.u32 %v883, 4294901760
    %v885 = vsub.f32 %v883, %v884
    %v886 = vand.u32 %v885, 4294901760
    %887 = vmatpush1.msra.mxu0 %v886
    %888 = vmatprep.subr.mxu0 0.0
    %889 = vmatpush1.msra.mxu0 0.0
    %890 = vmatprep.subr.mxu0 0.0
    %891 = vmatpush1.msra.mxu0 0.0
    %892 = vmatprep.subr.mxu0 0.0
    %893 = vmatpush1.msra.mxu0 0.0
    %894 = vmatprep.subr.mxu0 0.0
    %895 = vmatpush1.msra.mxu0 0.0
    %896 = vmatprep.subr.mxu0 0.0
    %897 = vmatpush1.msra.mxu0 0.0
    %898 = vmatprep.subr.mxu0 0.0
    %899 = vmatpush1.msra.mxu0 0.0
    %900 = vmatprep.subr.mxu0 0.0
    %901 = vmatpush1.msra.mxu0 0.0
    %902 = vmatprep.subr.mxu0 0.0
    %903 = vmatpush1.msra.mxu0 0.0
    %904 = vmatprep.subr.mxu0 0.0
    %905 = vmatpush1.msra.mxu0 0.0
    %906 = vmatprep.subr.mxu0 0.0
    %907 = vmatpush1.msra.mxu0 0.0
    %908 = vmatprep.subr.mxu0 0.0
    %909 = vmatpush1.msra.mxu0 0.0
    %910 = vmatprep.subr.mxu0 0.0
    %911 = vmatpush1.msra.mxu0 0.0
    %912 = vmatprep.subr.mxu0 0.0
    %913 = vmatpush1.msra.mxu0 0.0
    %914 = vmatprep.subr.mxu0 0.0
    %915 = vmatpush1.msra.mxu0 0.0
    %916 = vmatprep.subr.mxu0 0.0
    %917 = vmatpush1.msra.mxu0 0.0
    %918 = vmatprep.subr.mxu0 0.0
    %919 = vmatpush1.msra.mxu0 0.0
    %920 = vmatprep.subr.mxu0 0.0
    %921 = vmatpush1.msra.mxu0 0.0
    %922 = vmatprep.subr.mxu0 0.0
    %923 = vmatpush1.msra.mxu0 0.0
    %924 = vmatprep.subr.mxu0 0.0
    %925 = vmatpush1.msra.mxu0 0.0
    %926 = vmatprep.subr.mxu0 0.0
    %927 = vmatpush1.msra.mxu0 0.0
    %928 = vmatprep.subr.mxu0 0.0
    %929 = vmatpush1.msra.mxu0 0.0
    %930 = vmatprep.subr.mxu0 0.0
    %931 = vmatpush1.msra.mxu0 0.0
    %932 = vmatprep.subr.mxu0 0.0
    %933 = vmatpush1.msra.mxu0 0.0
    %934 = vmatprep.subr.mxu0 0.0
    %935 = vmatpush1.msra.mxu0 0.0
    %936 = vmatprep.subr.mxu0 0.0
    %937 = vmatpush1.msra.mxu0 0.0
    %938 = vmatprep.subr.mxu0 0.0
    %939 = vmatpush1.msra.mxu0 0.0
    %940 = vmatprep.subr.mxu0 0.0
    %941 = vmatpush1.msra.mxu0 0.0
    %942 = vmatprep.subr.mxu0 0.0
    %943 = vmatpush1.msra.mxu0 0.0
    %944 = vmatprep.subr.mxu0 0.0
    %945 = vmatpush1.msra.mxu0 0.0
    %946 = vmatprep.subr.mxu0 0.0
    %947 = vmatpush1.msra.mxu0 0.0
    %948 = vmatprep.mubr.f32.mxu0 0.0
    %v949 = vand.u32 %v782, 4294901760
    %950 = vmatmul.mubr.f32.gmra.mrb[0].mxu0 %v949
    %v951 = vpop.f32.mrb[0].mxu0
    %v952 = vadd.f32 %v861, %v951
    %v953 = vpop.f32.mrb[0].mxu0
    %954 = vmatprep.mubr.f32.mxu0 0.0
    %v955 = vand.u32 %v785, 4294901760
    %956 = vmatmul.mubr.f32.gmra.mrb[0].mxu0 %v955
    %v957 = vpop.f32.mrb[0].mxu0
    %v958 = vadd.f32 %v871, %v957
    %v959 = vpop.f32.mrb[0].mxu0
    %960 = vdwg.mxu0
    %961 = vmatprep.subr.mxu0 0.0
    %v962 = vand.u32 %v244, 4294901760
    %v963 = vsub.f32 %v244, %v962
    %964 = vmatpush1.msra.mxu0 %v963
    %965 = vmatprep.subr.mxu0 0.0
    %v966 = vand.u32 %v245, 4294901760
    %v967 = vsub.f32 %v245, %v966
    %968 = vmatpush1.msra.mxu0 %v967
    %969 = vmatprep.subr.mxu0 0.0
    %970 = vmatpush1.msra.mxu0 0.0
    %971 = vmatprep.subr.mxu0 0.0
    %972 = vmatpush1.msra.mxu0 0.0
    %973 = vmatprep.subr.mxu0 0.0
    %974 = vmatpush1.msra.mxu0 0.0
    %975 = vmatprep.subr.mxu0 0.0
    %976 = vmatpush1.msra.mxu0 0.0
    %977 = vmatprep.subr.mxu0 0.0
    %978 = vmatpush1.msra.mxu0 0.0
    %979 = vmatprep.subr.mxu0 0.0
    %980 = vmatpush1.msra.mxu0 0.0
    %981 = vmatprep.subr.mxu0 0.0
    %982 = vmatpush1.msra.mxu0 0.0
    %983 = vmatprep.subr.mxu0 0.0
    %984 = vmatpush1.msra.mxu0 0.0
    %985 = vmatprep.subr.mxu0 0.0
    %986 = vmatpush1.msra.mxu0 0.0
    %987 = vmatprep.subr.mxu0 0.0
    %988 = vmatpush1.msra.mxu0 0.0
    %989 = vmatprep.subr.mxu0 0.0
    %990 = vmatpush1.msra.mxu0 0.0
    %991 = vmatprep.subr.mxu0 0.0
    %992 = vmatpush1.msra.mxu0 0.0
    %993 = vmatprep.subr.mxu0 0.0
    %994 = vmatpush1.msra.mxu0 0.0
    %995 = vmatprep.subr.mxu0 0.0
    %996 = vmatpush1.msra.mxu0 0.0
    %997 = vmatprep.subr.mxu0 0.0
    %998 = vmatpush1.msra.mxu0 0.0
    %999 = vmatprep.subr.mxu0 0.0
    %1000 = vmatpush1.msra.mxu0 0.0
    %1001 = vmatprep.subr.mxu0 0.0
    %1002 = vmatpush1.msra.mxu0 0.0
    %1003 = vmatprep.subr.mxu0 0.0
    %1004 = vmatpush1.msra.mxu0 0.0
    %1005 = vmatprep.subr.mxu0 0.0
    %1006 = vmatpush1.msra.mxu0 0.0
    %1007 = vmatprep.subr.mxu0 0.0
    %1008 = vmatpush1.msra.mxu0 0.0
    %1009 = vmatprep.subr.mxu0 0.0
    %1010 = vmatpush1.msra.mxu0 0.0
    %1011 = vmatprep.subr.mxu0 0.0
    %1012 = vmatpush1.msra.mxu0 0.0
    %1013 = vmatprep.subr.mxu0 0.0
    %1014 = vmatpush1.msra.mxu0 0.0
    %1015 = vmatprep.subr.mxu0 0.0
    %1016 = vmatpush1.msra.mxu0 0.0
    %1017 = vmatprep.subr.mxu0 0.0
    %1018 = vmatpush1.msra.mxu0 0.0
    %1019 = vmatprep.subr.mxu0 0.0
    %1020 = vmatpush1.msra.mxu0 0.0
    %1021 = vmatprep.subr.mxu0 0.0
    %1022 = vmatpush1.msra.mxu0 0.0
    %1023 = vmatprep.subr.mxu0 0.0
    %1024 = vmatpush1.msra.mxu0 0.0
    %1025 = vmatprep.subr.mxu0 0.0
    %1026 = vmatpush1.msra.mxu0 0.0
    %1027 = vmatprep.subr.mxu0 0.0
    %1028 = vmatpush1.msra.mxu0 0.0
    %1029 = vmatprep.mubr.f32.mxu0 0.0
    %v1030 = vand.u32 %v782, 4294901760
    %v1031 = vsub.f32 %v782, %v1030
    %1032 = vmatmul.mubr.f32.gmra.mrb[0].mxu0 %v1031
    %v1033 = vpop.f32.mrb[0].mxu0
    %v1034 = vadd.f32 %v952, %v1033
    %v1035 = vpop.f32.mrb[0].mxu0
    %1036 = vmatprep.mubr.f32.mxu0 0.0
    %v1037 = vand.u32 %v785, 4294901760
    %v1038 = vsub.f32 %v785, %v1037
    %1039 = vmatmul.mubr.f32.gmra.mrb[0].mxu0 %v1038
    %v1040 = vpop.f32.mrb[0].mxu0
    %v1041 = vadd.f32 %v958, %v1040
    %v1042 = vpop.f32.mrb[0].mxu0
    %1043 = vdwg.mxu0
    %1044 = vmatprep.subr.mxu0 0.0
    %v1045 = vand.u32 %v244, 4294901760
    %1046 = vmatpush1.msra.mxu0 %v1045
    %1047 = vmatprep.subr.mxu0 0.0
    %v1048 = vand.u32 %v245, 4294901760
    %1049 = vmatpush1.msra.mxu0 %v1048
    %1050 = vmatprep.subr.mxu0 0.0
    %1051 = vmatpush1.msra.mxu0 0.0
    %1052 = vmatprep.subr.mxu0 0.0
    %1053 = vmatpush1.msra.mxu0 0.0
    %1054 = vmatprep.subr.mxu0 0.0
    %1055 = vmatpush1.msra.mxu0 0.0
    %1056 = vmatprep.subr.mxu0 0.0
    %1057 = vmatpush1.msra.mxu0 0.0
    %1058 = vmatprep.subr.mxu0 0.0
    %1059 = vmatpush1.msra.mxu0 0.0
    %1060 = vmatprep.subr.mxu0 0.0
    %1061 = vmatpush1.msra.mxu0 0.0
    %1062 = vmatprep.subr.mxu0 0.0
    %1063 = vmatpush1.msra.mxu0 0.0
    %1064 = vmatprep.subr.mxu0 0.0
    %1065 = vmatpush1.msra.mxu0 0.0
    %1066 = vmatprep.subr.mxu0 0.0
    %1067 = vmatpush1.msra.mxu0 0.0
    %1068 = vmatprep.subr.mxu0 0.0
    %1069 = vmatpush1.msra.mxu0 0.0
    %1070 = vmatprep.subr.mxu0 0.0
    %1071 = vmatpush1.msra.mxu0 0.0
    %1072 = vmatprep.subr.mxu0 0.0
    %1073 = vmatpush1.msra.mxu0 0.0
    %1074 = vmatprep.subr.mxu0 0.0
    %1075 = vmatpush1.msra.mxu0 0.0
    %1076 = vmatprep.subr.mxu0 0.0
    %1077 = vmatpush1.msra.mxu0 0.0
    %1078 = vmatprep.subr.mxu0 0.0
    %1079 = vmatpush1.msra.mxu0 0.0
    %1080 = vmatprep.subr.mxu0 0.0
    %1081 = vmatpush1.msra.mxu0 0.0
    %1082 = vmatprep.subr.mxu0 0.0
    %1083 = vmatpush1.msra.mxu0 0.0
    %1084 = vmatprep.subr.mxu0 0.0
    %1085 = vmatpush1.msra.mxu0 0.0
    %1086 = vmatprep.subr.mxu0 0.0
    %1087 = vmatpush1.msra.mxu0 0.0
    %1088 = vmatprep.subr.mxu0 0.0
    %1089 = vmatpush1.msra.mxu0 0.0
    %1090 = vmatprep.subr.mxu0 0.0
    %1091 = vmatpush1.msra.mxu0 0.0
    %1092 = vmatprep.subr.mxu0 0.0
    %1093 = vmatpush1.msra.mxu0 0.0
    %1094 = vmatprep.subr.mxu0 0.0
    %1095 = vmatpush1.msra.mxu0 0.0
    %1096 = vmatprep.subr.mxu0 0.0
    %1097 = vmatpush1.msra.mxu0 0.0
    %1098 = vmatprep.subr.mxu0 0.0
    %1099 = vmatpush1.msra.mxu0 0.0
    %1100 = vmatprep.subr.mxu0 0.0
    %1101 = vmatpush1.msra.mxu0 0.0
    %1102 = vmatprep.subr.mxu0 0.0
    %1103 = vmatpush1.msra.mxu0 0.0
    %1104 = vmatprep.subr.mxu0 0.0
    %1105 = vmatpush1.msra.mxu0 0.0
    %1106 = vmatprep.subr.mxu0 0.0
    %1107 = vmatpush1.msra.mxu0 0.0
    %1108 = vmatprep.subr.mxu0 0.0
    %1109 = vmatpush1.msra.mxu0 0.0
    %1110 = vmatprep.mubr.f32.mxu0 0.0
    %v1111 = vand.u32 %v782, 4294901760
    %v1112 = vsub.f32 %v782, %v1111
    %v1113 = vand.u32 %v1112, 4294901760
    %1114 = vmatmul.mubr.f32.gmra.mrb[0].mxu0 %v1113
    %v1115 = vpop.f32.mrb[0].mxu0
    %v1116 = vadd.f32 %v1034, %v1115
    %v1117 = vpop.f32.mrb[0].mxu0
    %1118 = vmatprep.mubr.f32.mxu0 0.0
    %v1119 = vand.u32 %v785, 4294901760
    %v1120 = vsub.f32 %v785, %v1119
    %v1121 = vand.u32 %v1120, 4294901760
    %1122 = vmatmul.mubr.f32.gmra.mrb[0].mxu0 %v1121
    %v1123 = vpop.f32.mrb[0].mxu0
    %v1124 = vadd.f32 %v1041, %v1123
    %v1125 = vpop.f32.mrb[0].mxu0
    %1126 = vdwg.mxu0
    %1127 = vmatprep.subr.mxu0 0.0
    %v1128 = vand.u32 %v244, 4294901760
    %v1129 = vsub.f32 %v244, %v1128
    %v1130 = vand.u32 %v1129, 4294901760
    %1131 = vmatpush1.msra.mxu0 %v1130
    %1132 = vmatprep.subr.mxu0 0.0
    %v1133 = vand.u32 %v245, 4294901760
    %v1134 = vsub.f32 %v245, %v1133
    %v1135 = vand.u32 %v1134, 4294901760
    %1136 = vmatpush1.msra.mxu0 %v1135
    %1137 = vmatprep.subr.mxu0 0.0
    %1138 = vmatpush1.msra.mxu0 0.0
    %1139 = vmatprep.subr.mxu0 0.0
    %1140 = vmatpush1.msra.mxu0 0.0
    %1141 = vmatprep.subr.mxu0 0.0
    %1142 = vmatpush1.msra.mxu0 0.0
    %1143 = vmatprep.subr.mxu0 0.0
    %1144 = vmatpush1.msra.mxu0 0.0
    %1145 = vmatprep.subr.mxu0 0.0
    %1146 = vmatpush1.msra.mxu0 0.0
    %1147 = vmatprep.subr.mxu0 0.0
    %1148 = vmatpush1.msra.mxu0 0.0
    %1149 = vmatprep.subr.mxu0 0.0
    %1150 = vmatpush1.msra.mxu0 0.0
    %1151 = vmatprep.subr.mxu0 0.0
    %1152 = vmatpush1.msra.mxu0 0.0
    %1153 = vmatprep.subr.mxu0 0.0
    %1154 = vmatpush1.msra.mxu0 0.0
    %1155 = vmatprep.subr.mxu0 0.0
    %1156 = vmatpush1.msra.mxu0 0.0
    %1157 = vmatprep.subr.mxu0 0.0
    %1158 = vmatpush1.msra.mxu0 0.0
    %1159 = vmatprep.subr.mxu0 0.0
    %1160 = vmatpush1.msra.mxu0 0.0
    %1161 = vmatprep.subr.mxu0 0.0
    %1162 = vmatpush1.msra.mxu0 0.0
    %1163 = vmatprep.subr.mxu0 0.0
    %1164 = vmatpush1.msra.mxu0 0.0
    %1165 = vmatprep.subr.mxu0 0.0
    %1166 = vmatpush1.msra.mxu0 0.0
    %1167 = vmatprep.subr.mxu0 0.0
    %1168 = vmatpush1.msra.mxu0 0.0
    %1169 = vmatprep.subr.mxu0 0.0
    %1170 = vmatpush1.msra.mxu0 0.0
    %1171 = vmatprep.subr.mxu0 0.0
    %1172 = vmatpush1.msra.mxu0 0.0
    %1173 = vmatprep.subr.mxu0 0.0
    %1174 = vmatpush1.msra.mxu0 0.0
    %1175 = vmatprep.subr.mxu0 0.0
    %1176 = vmatpush1.msra.mxu0 0.0
    %1177 = vmatprep.subr.mxu0 0.0
    %1178 = vmatpush1.msra.mxu0 0.0
    %1179 = vmatprep.subr.mxu0 0.0
    %1180 = vmatpush1.msra.mxu0 0.0
    %1181 = vmatprep.subr.mxu0 0.0
    %1182 = vmatpush1.msra.mxu0 0.0
    %1183 = vmatprep.subr.mxu0 0.0
    %1184 = vmatpush1.msra.mxu0 0.0
    %1185 = vmatprep.subr.mxu0 0.0
    %1186 = vmatpush1.msra.mxu0 0.0
    %1187 = vmatprep.subr.mxu0 0.0
    %1188 = vmatpush1.msra.mxu0 0.0
    %1189 = vmatprep.subr.mxu0 0.0
    %1190 = vmatpush1.msra.mxu0 0.0
    %1191 = vmatprep.subr.mxu0 0.0
    %1192 = vmatpush1.msra.mxu0 0.0
    %1193 = vmatprep.subr.mxu0 0.0
    %1194 = vmatpush1.msra.mxu0 0.0
    %1195 = vmatprep.subr.mxu0 0.0
    %1196 = vmatpush1.msra.mxu0 0.0
    %1197 = vmatprep.mubr.f32.mxu0 0.0
    %v1198 = vand.u32 %v782, 4294901760
    %1199 = vmatmul.mubr.f32.gmra.mrb[0].mxu0 %v1198
    %v1200 = vpop.f32.mrb[0].mxu0
    %v1201 = vadd.f32 %v1116, %v1200
    %v1202 = vpop.f32.mrb[0].mxu0
    %1203 = vmatprep.mubr.f32.mxu0 0.0
    %v1204 = vand.u32 %v785, 4294901760
    %1205 = vmatmul.mubr.f32.gmra.mrb[0].mxu0 %v1204
    %v1206 = vpop.f32.mrb[0].mxu0
    %v1207 = vadd.f32 %v1124, %v1206
    %v1208 = vpop.f32.mrb[0].mxu0
    %1209 = vdwg.mxu0
    %1210 = vmatprep.subr.mxu0 0.0
    %v1211 = vand.u32 %v244, 4294901760
    %1212 = vmatpush1.msra.mxu0 %v1211
    %1213 = vmatprep.subr.mxu0 0.0
    %v1214 = vand.u32 %v245, 4294901760
    %1215 = vmatpush1.msra.mxu0 %v1214
    %1216 = vmatprep.subr.mxu0 0.0
    %1217 = vmatpush1.msra.mxu0 0.0
    %1218 = vmatprep.subr.mxu0 0.0
    %1219 = vmatpush1.msra.mxu0 0.0
    %1220 = vmatprep.subr.mxu0 0.0
    %1221 = vmatpush1.msra.mxu0 0.0
    %1222 = vmatprep.subr.mxu0 0.0
    %1223 = vmatpush1.msra.mxu0 0.0
    %1224 = vmatprep.subr.mxu0 0.0
    %1225 = vmatpush1.msra.mxu0 0.0
    %1226 = vmatprep.subr.mxu0 0.0
    %1227 = vmatpush1.msra.mxu0 0.0
    %1228 = vmatprep.subr.mxu0 0.0
    %1229 = vmatpush1.msra.mxu0 0.0
    %1230 = vmatprep.subr.mxu0 0.0
    %1231 = vmatpush1.msra.mxu0 0.0
    %1232 = vmatprep.subr.mxu0 0.0
    %1233 = vmatpush1.msra.mxu0 0.0
    %1234 = vmatprep.subr.mxu0 0.0
    %1235 = vmatpush1.msra.mxu0 0.0
    %1236 = vmatprep.subr.mxu0 0.0
    %1237 = vmatpush1.msra.mxu0 0.0
    %1238 = vmatprep.subr.mxu0 0.0
    %1239 = vmatpush1.msra.mxu0 0.0
    %1240 = vmatprep.subr.mxu0 0.0
    %1241 = vmatpush1.msra.mxu0 0.0
    %1242 = vmatprep.subr.mxu0 0.0
    %1243 = vmatpush1.msra.mxu0 0.0
    %1244 = vmatprep.subr.mxu0 0.0
    %1245 = vmatpush1.msra.mxu0 0.0
    %1246 = vmatprep.subr.mxu0 0.0
    %1247 = vmatpush1.msra.mxu0 0.0
    %1248 = vmatprep.subr.mxu0 0.0
    %1249 = vmatpush1.msra.mxu0 0.0
    %1250 = vmatprep.subr.mxu0 0.0
    %1251 = vmatpush1.msra.mxu0 0.0
    %1252 = vmatprep.subr.mxu0 0.0
    %1253 = vmatpush1.msra.mxu0 0.0
    %1254 = vmatprep.subr.mxu0 0.0
    %1255 = vmatpush1.msra.mxu0 0.0
    %1256 = vmatprep.subr.mxu0 0.0
    %1257 = vmatpush1.msra.mxu0 0.0
    %1258 = vmatprep.subr.mxu0 0.0
    %1259 = vmatpush1.msra.mxu0 0.0
    %1260 = vmatprep.subr.mxu0 0.0
    %1261 = vmatpush1.msra.mxu0 0.0
    %1262 = vmatprep.subr.mxu0 0.0
    %1263 = vmatpush1.msra.mxu0 0.0
    %1264 = vmatprep.subr.mxu0 0.0
    %1265 = vmatpush1.msra.mxu0 0.0
    %1266 = vmatprep.subr.mxu0 0.0
    %1267 = vmatpush1.msra.mxu0 0.0
    %1268 = vmatprep.subr.mxu0 0.0
    %1269 = vmatpush1.msra.mxu0 0.0
    %1270 = vmatprep.subr.mxu0 0.0
    %1271 = vmatpush1.msra.mxu0 0.0
    %1272 = vmatprep.subr.mxu0 0.0
    %1273 = vmatpush1.msra.mxu0 0.0
    %1274 = vmatprep.subr.mxu0 0.0
    %1275 = vmatpush1.msra.mxu0 0.0
    %1276 = vmatprep.mubr.f32.mxu0 0.0
    %v1277 = vand.u32 %v782, 4294901760
    %1278 = vmatmul.mubr.f32.gmra.mrb[0].mxu0 %v1277
    %v1279 = vpop.f32.mrb[0].mxu0
    %v1280 = vadd.f32 %v1201, %v1279
    %v1281 = vpop.f32.mrb[0].mxu0
    %1282 = vmatprep.mubr.f32.mxu0 0.0
    %v1283 = vand.u32 %v785, 4294901760
    %1284 = vmatmul.mubr.f32.gmra.mrb[0].mxu0 %v1283
    %v1285 = vpop.f32.mrb[0].mxu0
    %v1286 = vadd.f32 %v1207, %v1285
    %v1287 = vpop.f32.mrb[0].mxu0
    %1288 = vdwg.mxu0
    %s1289 = scalar_lea.vmem %s5, 16
    %v1290 = vld [vmem:[%s1289] sm:$0xf]
    %v1291 = vld [vmem:[%s1289 + $0x4] sm:$0xf]
    %v1292 = vld [vmem:[%s1289 + $0x8] sm:$0xf]
    %v1293 = vld [vmem:[%s1289 + $0xc] sm:$0xf]
    %v1294 = vpack.c.bf16 %v1286, %v1280
    %v1295 = vld [vmem:[%s6] sm:$0xf]
    %v1296 = vld [vmem:[%s6 + $0x4] sm:$0xf]
    %v1297 = vpack.c.bf16 %v777, %v771
    %v1300 = vunpack.c.l.b16 %v1295
    %v1301 = vunpack.c.l.b16 %v1296
    %v1302 = vpack.c.b16 %v1301, %v1300
    %v1305 = vsel %vm780, %v1297, 0
    %1307 = vmatprep.subr.bf16.mxu0 0
    %1308 = vmatpush1.bf16.msra.mxu0 %v1302
    %1309 = vmatprep.subr.bf16.mxu0 0
    %1310 = vmatpush1.bf16.msra.mxu0 0
    %1311 = vmatprep.subr.bf16.mxu0 0
    %1312 = vmatpush1.bf16.msra.mxu0 0
    %1313 = vmatprep.subr.bf16.mxu0 0
    %1314 = vmatpush1.bf16.msra.mxu0 0
    %1315 = vmatprep.subr.bf16.mxu0 0
    %1316 = vmatpush1.bf16.msra.mxu0 0
    %1317 = vmatprep.subr.bf16.mxu0 0
    %1318 = vmatpush1.bf16.msra.mxu0 0
    %1319 = vmatprep.subr.bf16.mxu0 0
    %1320 = vmatpush1.bf16.msra.mxu0 0
    %1321 = vmatprep.subr.bf16.mxu0 0
    %1322 = vmatpush1.bf16.msra.mxu0 0
    %1323 = vmatprep.subr.bf16.mxu0 0
    %1324 = vmatpush1.bf16.msra.mxu0 0
    %1325 = vmatprep.subr.bf16.mxu0 0
    %1326 = vmatpush1.bf16.msra.mxu0 0
    %1327 = vmatprep.subr.bf16.mxu0 0
    %1328 = vmatpush1.bf16.msra.mxu0 0
    %1329 = vmatprep.subr.bf16.mxu0 0
    %1330 = vmatpush1.bf16.msra.mxu0 0
    %1331 = vmatprep.subr.bf16.mxu0 0
    %1332 = vmatpush1.bf16.msra.mxu0 0
    %1333 = vmatprep.subr.bf16.mxu0 0
    %1334 = vmatpush1.bf16.msra.mxu0 0
    %1335 = vmatprep.subr.bf16.mxu0 0
    %1336 = vmatpush1.bf16.msra.mxu0 0
    %1337 = vmatprep.subr.bf16.mxu0 0
    %1338 = vmatpush1.bf16.msra.mxu0 0
    %1339 = vmatprep.mubr.bf16.mxu0 0
    %1340 = vmatmul.mubr.bf16.gmra.mrb[0].mxu0 %v1305
    %v1341 = vpop.f32.mrb[0].mxu0
    %v1342 = vadd.f32 0.0, %v1341
    %v1343 = vpop.f32.mrb[0].mxu0
    %v1344 = vpop.f32.mrb[0].mxu0
    %v1345 = vadd.f32 0.0, %v1344
    %v1346 = vpop.f32.mrb[0].mxu0
    %1347 = vdwg.mxu0
    %v1352 = vunpack.c.l.b16 %v1290
    %v1353 = vunpack.c.l.b16 %v1291
    %v1354 = vunpack.c.l.b16 %v1292
    %v1355 = vunpack.c.l.b16 %v1293
    %v1356 = vpack.c.b16 %v1353, %v1352
    %v1357 = vpack.c.b16 %v1355, %v1354
    %v1361 = vsel %vm199, %v1294, 0
    %1363 = vmatprep.subr.bf16.mxu0 0
    %1364 = vmatpush1.bf16.msra.mxu0 %v1356
    %1365 = vmatprep.subr.bf16.mxu0 0
    %1366 = vmatpush1.bf16.msra.mxu0 %v1357
    %1367 = vmatprep.subr.bf16.mxu0 0
    %1368 = vmatpush1.bf16.msra.mxu0 0
    %1369 = vmatprep.subr.bf16.mxu0 0
    %1370 = vmatpush1.bf16.msra.mxu0 0
    %1371 = vmatprep.subr.bf16.mxu0 0
    %1372 = vmatpush1.bf16.msra.mxu0 0
    %1373 = vmatprep.subr.bf16.mxu0 0
    %1374 = vmatpush1.bf16.msra.mxu0 0
    %1375 = vmatprep.subr.bf16.mxu0 0
    %1376 = vmatpush1.bf16.msra.mxu0 0
    %1377 = vmatprep.subr.bf16.mxu0 0
    %1378 = vmatpush1.bf16.msra.mxu0 0
    %1379 = vmatprep.subr.bf16.mxu0 0
    %1380 = vmatpush1.bf16.msra.mxu0 0
    %1381 = vmatprep.subr.bf16.mxu0 0
    %1382 = vmatpush1.bf16.msra.mxu0 0
    %1383 = vmatprep.subr.bf16.mxu0 0
    %1384 = vmatpush1.bf16.msra.mxu0 0
    %1385 = vmatprep.subr.bf16.mxu0 0
    %1386 = vmatpush1.bf16.msra.mxu0 0
    %1387 = vmatprep.subr.bf16.mxu0 0
    %1388 = vmatpush1.bf16.msra.mxu0 0
    %1389 = vmatprep.subr.bf16.mxu0 0
    %1390 = vmatpush1.bf16.msra.mxu0 0
    %1391 = vmatprep.subr.bf16.mxu0 0
    %1392 = vmatpush1.bf16.msra.mxu0 0
    %1393 = vmatprep.subr.bf16.mxu0 0
    %1394 = vmatpush1.bf16.msra.mxu0 0
    %1395 = vmatprep.mubr.bf16.mxu0 0
    %1396 = vmatmul.mubr.bf16.gmra.mrb[0].mxu0 %v1361
    %v1397 = vpop.f32.mrb[0].mxu0
    %v1398 = vadd.f32 %v1342, %v1397
    %v1399 = vpop.f32.mrb[0].mxu0
    %v1400 = vpop.f32.mrb[0].mxu0
    %v1401 = vadd.f32 %v1345, %v1400
    %v1402 = vpop.f32.mrb[0].mxu0
    %1403 = vdwg.mxu0
    %v1404 = vld [vmem:[%s7 + $0x1] sm:$0x1]
    %v1405 = vlaneseq
    %v1406 = vshrl.u32 %v1405, 7
    %v1407 = vsub.s32 0, %v1406
    %v1408 = vrot.slane %v1404, %v1407
    %v1409 = vadd.f32 %v1398, %v1408
    %v1410 = vadd.f32 %v1401, %v1408
    %v1411 = vld [vmem:[%s7 + $0x2] sm:$0x1]
    %v1412 = vld [vmem:[%s7 + $0x3] sm:$0x1]
    %v1413 = vsel %vm199, %v1409, 0.0
    %1414 = vadd.xlane.f32.xlu0 %v1413
    %v1415 = vpop.xlane.xlu0 %1414
    %v1416 = vsel %vm199, %v1410, 0.0
    %1417 = vadd.xlane.f32.xlu0 %v1416
    %v1418 = vpop.xlane.xlu0 %1417
    %v1419 = vrcp.pop 32.0
    %v1420 = vmul.f32 %v1415, %v1419
    %v1421 = vmul.f32 %v1418, %v1419
    %v1422 = vsub.f32 %v1409, %v1420
    %v1423 = vsub.f32 %v1410, %v1421
    %v1424 = vmul.f32 %v1422, %v1422
    %v1425 = vmul.f32 %v1423, %v1423
    %v1426 = vsel %vm199, %v1424, 0.0
    %1427 = vadd.xlane.f32.xlu0 %v1426
    %v1428 = vpop.xlane.xlu0 %1427
    %v1429 = vsel %vm199, %v1425, 0.0
    %1430 = vadd.xlane.f32.xlu0 %v1429
    %v1431 = vpop.xlane.xlu0 %1430
    %v1432 = vmul.f32 %v1428, %v1419
    %v1433 = vmul.f32 %v1431, %v1419
    %v1434 = vadd.f32 %v1432, 1e-05
    %v1435 = vadd.f32 %v1433, 1e-05
    %v1436 = vrsqrt.pop %v1434
    %v1437 = vrsqrt.pop %v1435
    %v1438 = vmul.f32 %v1422, %v1436
    %v1439 = vmul.f32 %v1423, %v1437
    %v1440 = vlaneseq
    %v1441 = vshrl.u32 %v1440, 7
    %v1442 = vsub.s32 0, %v1441
    %v1443 = vrot.slane %v1411, %v1442
    %v1444 = vmul.f32 %v1438, %v1443
    %v1445 = vmul.f32 %v1439, %v1443
    %v1446 = vlaneseq
    %v1447 = vshrl.u32 %v1446, 7
    %v1448 = vsub.s32 0, %v1447
    %v1449 = vrot.slane %v1412, %v1448
    %v1450 = vadd.f32 %v1444, %v1449
    %v1451 = vadd.f32 %v1445, %v1449
    %s1452 = sld [smem:[#allocation2]]
    %vm1453 = vcmp.ge.f32.partialorder %v1450, 0.0
    %vm1454 = vcmp.ge.f32.partialorder %v1451, 0.0
    %v1455 = vstv %s1452
    %v1456 = vmul.f32 %v1455, %v1450
    %v1457 = vmul.f32 %v1455, %v1451
    %v1458 = vsel %vm1453, %v1450, %v1456
    %v1459 = vsel %vm1454, %v1451, %v1457
    %s1460 = scalar_lea.vmem %s5, 32
    %v1461 = vld [vmem:[%s1460] sm:$0xf]
    %v1462 = vld [vmem:[%s1460 + $0x4] sm:$0xf]
    %v1463 = vld [vmem:[%s1460 + $0x8] sm:$0xf]
    %v1464 = vld [vmem:[%s1460 + $0xc] sm:$0xf]
    %v1465 = vpack.c.bf16 %v1459, %v1458
    %v1466 = vld [vmem:[%s7 + $0x4] sm:$0x1]
    %v1467 = vlaneseq
    %v1468 = vshrl.u32 %v1467, 7
    %v1469 = vsub.s32 0, %v1468
    %v1470 = vrot.slane %v1466, %v1469
    %v1475 = vunpack.c.l.b16 %v1461
    %v1476 = vunpack.c.l.b16 %v1462
    %v1477 = vunpack.c.l.b16 %v1463
    %v1478 = vunpack.c.l.b16 %v1464
    %v1479 = vpack.c.b16 %v1476, %v1475
    %v1480 = vpack.c.b16 %v1478, %v1477
    %v1484 = vsel %vm199, %v1465, 0
    %1486 = vmatprep.subr.bf16.mxu0 0
    %1487 = vmatpush1.bf16.msra.mxu0 %v1479
    %1488 = vmatprep.subr.bf16.mxu0 0
    %1489 = vmatpush1.bf16.msra.mxu0 %v1480
    %1490 = vmatprep.subr.bf16.mxu0 0
    %1491 = vmatpush1.bf16.msra.mxu0 0
    %1492 = vmatprep.subr.bf16.mxu0 0
    %1493 = vmatpush1.bf16.msra.mxu0 0
    %1494 = vmatprep.subr.bf16.mxu0 0
    %1495 = vmatpush1.bf16.msra.mxu0 0
    %1496 = vmatprep.subr.bf16.mxu0 0
    %1497 = vmatpush1.bf16.msra.mxu0 0
    %1498 = vmatprep.subr.bf16.mxu0 0
    %1499 = vmatpush1.bf16.msra.mxu0 0
    %1500 = vmatprep.subr.bf16.mxu0 0
    %1501 = vmatpush1.bf16.msra.mxu0 0
    %1502 = vmatprep.subr.bf16.mxu0 0
    %1503 = vmatpush1.bf16.msra.mxu0 0
    %1504 = vmatprep.subr.bf16.mxu0 0
    %1505 = vmatpush1.bf16.msra.mxu0 0
    %1506 = vmatprep.subr.bf16.mxu0 0
    %1507 = vmatpush1.bf16.msra.mxu0 0
    %1508 = vmatprep.subr.bf16.mxu0 0
    %1509 = vmatpush1.bf16.msra.mxu0 0
    %1510 = vmatprep.subr.bf16.mxu0 0
    %1511 = vmatpush1.bf16.msra.mxu0 0
    %1512 = vmatprep.subr.bf16.mxu0 0
    %1513 = vmatpush1.bf16.msra.mxu0 0
    %1514 = vmatprep.subr.bf16.mxu0 0
    %1515 = vmatpush1.bf16.msra.mxu0 0
    %1516 = vmatprep.subr.bf16.mxu0 0
    %1517 = vmatpush1.bf16.msra.mxu0 0
    %1518 = vmatprep.mubr.bf16.mxu0 0
    %1519 = vmatmul.mubr.bf16.gmra.mrb[0].mxu0 %v1484
    %v1520 = vpop.f32.mrb[0].mxu0
    %v1521 = vadd.f32 %v1470, %v1520
    %v1522 = vpop.f32.mrb[0].mxu0
    %v1523 = vpop.f32.mrb[0].mxu0
    %v1524 = vadd.f32 %v1470, %v1523
    %v1525 = vpop.f32.mrb[0].mxu0
    %1526 = vdwg.mxu0
    %v1527 = vadd.f32 %v244, %v1521
    %v1528 = vadd.f32 %v245, %v1524
    %v1529 = vmul.f32 %v1527, %v61
    %v1530 = vmul.f32 %v1528, %v62
    %1531 = vmatprep.subr.mxu0 0.0
    %v1532 = vand.u32 %v1529, 4294901760
    %1533 = vmatpush1.msra.mxu0 %v1532
    %1534 = vmatprep.subr.mxu0 0.0
    %v1535 = vand.u32 %v1530, 4294901760
    %1536 = vmatpush1.msra.mxu0 %v1535
    %1537 = vmatprep.subr.mxu0 0.0
    %1538 = vmatpush1.msra.mxu0 0.0
    %1539 = vmatprep.subr.mxu0 0.0
    %1540 = vmatpush1.msra.mxu0 0.0
    %1541 = vmatprep.subr.mxu0 0.0
    %1542 = vmatpush1.msra.mxu0 0.0
    %1543 = vmatprep.subr.mxu0 0.0
    %1544 = vmatpush1.msra.mxu0 0.0
    %1545 = vmatprep.subr.mxu0 0.0
    %1546 = vmatpush1.msra.mxu0 0.0
    %1547 = vmatprep.subr.mxu0 0.0
    %1548 = vmatpush1.msra.mxu0 0.0
    %1549 = vmatprep.subr.mxu0 0.0
    %1550 = vmatpush1.msra.mxu0 0.0
    %1551 = vmatprep.subr.mxu0 0.0
    %1552 = vmatpush1.msra.mxu0 0.0
    %1553 = vmatprep.subr.mxu0 0.0
    %1554 = vmatpush1.msra.mxu0 0.0
    %1555 = vmatprep.subr.mxu0 0.0
    %1556 = vmatpush1.msra.mxu0 0.0
    %1557 = vmatprep.subr.mxu0 0.0
    %1558 = vmatpush1.msra.mxu0 0.0
    %1559 = vmatprep.subr.mxu0 0.0
    %1560 = vmatpush1.msra.mxu0 0.0
    %1561 = vmatprep.subr.mxu0 0.0
    %1562 = vmatpush1.msra.mxu0 0.0
    %1563 = vmatprep.subr.mxu0 0.0
    %1564 = vmatpush1.msra.mxu0 0.0
    %1565 = vmatprep.subr.mxu0 0.0
    %1566 = vmatpush1.msra.mxu0 0.0
    %1567 = vmatprep.subr.mxu0 0.0
    %1568 = vmatpush1.msra.mxu0 0.0
    %1569 = vmatprep.subr.mxu0 0.0
    %1570 = vmatpush1.msra.mxu0 0.0
    %1571 = vmatprep.subr.mxu0 0.0
    %1572 = vmatpush1.msra.mxu0 0.0
    %1573 = vmatprep.subr.mxu0 0.0
    %1574 = vmatpush1.msra.mxu0 0.0
    %1575 = vmatprep.subr.mxu0 0.0
    %1576 = vmatpush1.msra.mxu0 0.0
    %1577 = vmatprep.subr.mxu0 0.0
    %1578 = vmatpush1.msra.mxu0 0.0
    %1579 = vmatprep.subr.mxu0 0.0
    %1580 = vmatpush1.msra.mxu0 0.0
    %1581 = vmatprep.subr.mxu0 0.0
    %1582 = vmatpush1.msra.mxu0 0.0
    %1583 = vmatprep.subr.mxu0 0.0
    %1584 = vmatpush1.msra.mxu0 0.0
    %1585 = vmatprep.subr.mxu0 0.0
    %1586 = vmatpush1.msra.mxu0 0.0
    %1587 = vmatprep.subr.mxu0 0.0
    %1588 = vmatpush1.msra.mxu0 0.0
    %1589 = vmatprep.subr.mxu0 0.0
    %1590 = vmatpush1.msra.mxu0 0.0
    %1591 = vmatprep.subr.mxu0 0.0
    %1592 = vmatpush1.msra.mxu0 0.0
    %1593 = vmatprep.subr.mxu0 0.0
    %1594 = vmatpush1.msra.mxu0 0.0
    %1595 = vmatprep.subr.mxu0 0.0
    %1596 = vmatpush1.msra.mxu0 0.0
    %1597 = vmatprep.mubr.f32.mxu0 0.0
    %v1598 = vand.u32 %v782, 4294901760
    %v1599 = vsub.f32 %v782, %v1598
    %v1600 = vand.u32 %v1599, 4294901760
    %v1601 = vsub.f32 %v1599, %v1600
    %v1602 = vand.u32 %v1601, 4294901760
    %1603 = vmatmul.mubr.f32.gmra.mrb[0].mxu0 %v1602
    %v1604 = vpop.f32.mrb[0].mxu0
    %v1605 = vadd.f32 0.0, %v1604
    %v1606 = vpop.f32.mrb[0].mxu0
    %1607 = vmatprep.mubr.f32.mxu0 0.0
    %v1608 = vand.u32 %v785, 4294901760
    %v1609 = vsub.f32 %v785, %v1608
    %v1610 = vand.u32 %v1609, 4294901760
    %v1611 = vsub.f32 %v1609, %v1610
    %v1612 = vand.u32 %v1611, 4294901760
    %1613 = vmatmul.mubr.f32.gmra.mrb[0].mxu0 %v1612
    %v1614 = vpop.f32.mrb[0].mxu0
    %v1615 = vadd.f32 0.0, %v1614
    %v1616 = vpop.f32.mrb[0].mxu0
    %1617 = vdwg.mxu0
    %1618 = vmatprep.subr.mxu0 0.0
    %v1619 = vand.u32 %v1529, 4294901760
    %v1620 = vsub.f32 %v1529, %v1619
    %v1621 = vand.u32 %v1620, 4294901760
    %v1622 = vsub.f32 %v1620, %v1621
    %v1623 = vand.u32 %v1622, 4294901760
    %1624 = vmatpush1.msra.mxu0 %v1623
    %1625 = vmatprep.subr.mxu0 0.0
    %v1626 = vand.u32 %v1530, 4294901760
    %v1627 = vsub.f32 %v1530, %v1626
    %v1628 = vand.u32 %v1627, 4294901760
    %v1629 = vsub.f32 %v1627, %v1628
    %v1630 = vand.u32 %v1629, 4294901760
    %1631 = vmatpush1.msra.mxu0 %v1630
    %1632 = vmatprep.subr.mxu0 0.0
    %1633 = vmatpush1.msra.mxu0 0.0
    %1634 = vmatprep.subr.mxu0 0.0
    %1635 = vmatpush1.msra.mxu0 0.0
    %1636 = vmatprep.subr.mxu0 0.0
    %1637 = vmatpush1.msra.mxu0 0.0
    %1638 = vmatprep.subr.mxu0 0.0
    %1639 = vmatpush1.msra.mxu0 0.0
    %1640 = vmatprep.subr.mxu0 0.0
    %1641 = vmatpush1.msra.mxu0 0.0
    %1642 = vmatprep.subr.mxu0 0.0
    %1643 = vmatpush1.msra.mxu0 0.0
    %1644 = vmatprep.subr.mxu0 0.0
    %1645 = vmatpush1.msra.mxu0 0.0
    %1646 = vmatprep.subr.mxu0 0.0
    %1647 = vmatpush1.msra.mxu0 0.0
    %1648 = vmatprep.subr.mxu0 0.0
    %1649 = vmatpush1.msra.mxu0 0.0
    %1650 = vmatprep.subr.mxu0 0.0
    %1651 = vmatpush1.msra.mxu0 0.0
    %1652 = vmatprep.subr.mxu0 0.0
    %1653 = vmatpush1.msra.mxu0 0.0
    %1654 = vmatprep.subr.mxu0 0.0
    %1655 = vmatpush1.msra.mxu0 0.0
    %1656 = vmatprep.subr.mxu0 0.0
    %1657 = vmatpush1.msra.mxu0 0.0
    %1658 = vmatprep.subr.mxu0 0.0
    %1659 = vmatpush1.msra.mxu0 0.0
    %1660 = vmatprep.subr.mxu0 0.0
    %1661 = vmatpush1.msra.mxu0 0.0
    %1662 = vmatprep.subr.mxu0 0.0
    %1663 = vmatpush1.msra.mxu0 0.0
    %1664 = vmatprep.subr.mxu0 0.0
    %1665 = vmatpush1.msra.mxu0 0.0
    %1666 = vmatprep.subr.mxu0 0.0
    %1667 = vmatpush1.msra.mxu0 0.0
    %1668 = vmatprep.subr.mxu0 0.0
    %1669 = vmatpush1.msra.mxu0 0.0
    %1670 = vmatprep.subr.mxu0 0.0
    %1671 = vmatpush1.msra.mxu0 0.0
    %1672 = vmatprep.subr.mxu0 0.0
    %1673 = vmatpush1.msra.mxu0 0.0
    %1674 = vmatprep.subr.mxu0 0.0
    %1675 = vmatpush1.msra.mxu0 0.0
    %1676 = vmatprep.subr.mxu0 0.0
    %1677 = vmatpush1.msra.mxu0 0.0
    %1678 = vmatprep.subr.mxu0 0.0
    %1679 = vmatpush1.msra.mxu0 0.0
    %1680 = vmatprep.subr.mxu0 0.0
    %1681 = vmatpush1.msra.mxu0 0.0
    %1682 = vmatprep.subr.mxu0 0.0
    %1683 = vmatpush1.msra.mxu0 0.0
    %1684 = vmatprep.subr.mxu0 0.0
    %1685 = vmatpush1.msra.mxu0 0.0
    %1686 = vmatprep.subr.mxu0 0.0
    %1687 = vmatpush1.msra.mxu0 0.0
    %1688 = vmatprep.subr.mxu0 0.0
    %1689 = vmatpush1.msra.mxu0 0.0
    %1690 = vmatprep.subr.mxu0 0.0
    %1691 = vmatpush1.msra.mxu0 0.0
    %1692 = vmatprep.mubr.f32.mxu0 0.0
    %v1693 = vand.u32 %v782, 4294901760
    %1694 = vmatmul.mubr.f32.gmra.mrb[0].mxu0 %v1693
    %v1695 = vpop.f32.mrb[0].mxu0
    %v1696 = vadd.f32 %v1605, %v1695
    %v1697 = vpop.f32.mrb[0].mxu0
    %1698 = vmatprep.mubr.f32.mxu0 0.0
    %v1699 = vand.u32 %v785, 4294901760
    %1700 = vmatmul.mubr.f32.gmra.mrb[0].mxu0 %v1699
    %v1701 = vpop.f32.mrb[0].mxu0
    %v1702 = vadd.f32 %v1615, %v1701
    %v1703 = vpop.f32.mrb[0].mxu0
    %1704 = vdwg.mxu0
    %1705 = vmatprep.subr.mxu0 0.0
    %v1706 = vand.u32 %v1529, 4294901760
    %v1707 = vsub.f32 %v1529, %v1706
    %1708 = vmatpush1.msra.mxu0 %v1707
    %1709 = vmatprep.subr.mxu0 0.0
    %v1710 = vand.u32 %v1530, 4294901760
    %v1711 = vsub.f32 %v1530, %v1710
    %1712 = vmatpush1.msra.mxu0 %v1711
    %1713 = vmatprep.subr.mxu0 0.0
    %1714 = vmatpush1.msra.mxu0 0.0
    %1715 = vmatprep.subr.mxu0 0.0
    %1716 = vmatpush1.msra.mxu0 0.0
    %1717 = vmatprep.subr.mxu0 0.0
    %1718 = vmatpush1.msra.mxu0 0.0
    %1719 = vmatprep.subr.mxu0 0.0
    %1720 = vmatpush1.msra.mxu0 0.0
    %1721 = vmatprep.subr.mxu0 0.0
    %1722 = vmatpush1.msra.mxu0 0.0
    %1723 = vmatprep.subr.mxu0 0.0
    %1724 = vmatpush1.msra.mxu0 0.0
    %1725 = vmatprep.subr.mxu0 0.0
    %1726 = vmatpush1.msra.mxu0 0.0
    %1727 = vmatprep.subr.mxu0 0.0
    %1728 = vmatpush1.msra.mxu0 0.0
    %1729 = vmatprep.subr.mxu0 0.0
    %1730 = vmatpush1.msra.mxu0 0.0
    %1731 = vmatprep.subr.mxu0 0.0
    %1732 = vmatpush1.msra.mxu0 0.0
    %1733 = vmatprep.subr.mxu0 0.0
    %1734 = vmatpush1.msra.mxu0 0.0
    %1735 = vmatprep.subr.mxu0 0.0
    %1736 = vmatpush1.msra.mxu0 0.0
    %1737 = vmatprep.subr.mxu0 0.0
    %1738 = vmatpush1.msra.mxu0 0.0
    %1739 = vmatprep.subr.mxu0 0.0
    %1740 = vmatpush1.msra.mxu0 0.0
    %1741 = vmatprep.subr.mxu0 0.0
    %1742 = vmatpush1.msra.mxu0 0.0
    %1743 = vmatprep.subr.mxu0 0.0
    %1744 = vmatpush1.msra.mxu0 0.0
    %1745 = vmatprep.subr.mxu0 0.0
    %1746 = vmatpush1.msra.mxu0 0.0
    %1747 = vmatprep.subr.mxu0 0.0
    %1748 = vmatpush1.msra.mxu0 0.0
    %1749 = vmatprep.subr.mxu0 0.0
    %1750 = vmatpush1.msra.mxu0 0.0
    %1751 = vmatprep.subr.mxu0 0.0
    %1752 = vmatpush1.msra.mxu0 0.0
    %1753 = vmatprep.subr.mxu0 0.0
    %1754 = vmatpush1.msra.mxu0 0.0
    %1755 = vmatprep.subr.mxu0 0.0
    %1756 = vmatpush1.msra.mxu0 0.0
    %1757 = vmatprep.subr.mxu0 0.0
    %1758 = vmatpush1.msra.mxu0 0.0
    %1759 = vmatprep.subr.mxu0 0.0
    %1760 = vmatpush1.msra.mxu0 0.0
    %1761 = vmatprep.subr.mxu0 0.0
    %1762 = vmatpush1.msra.mxu0 0.0
    %1763 = vmatprep.subr.mxu0 0.0
    %1764 = vmatpush1.msra.mxu0 0.0
    %1765 = vmatprep.subr.mxu0 0.0
    %1766 = vmatpush1.msra.mxu0 0.0
    %1767 = vmatprep.subr.mxu0 0.0
    %1768 = vmatpush1.msra.mxu0 0.0
    %1769 = vmatprep.subr.mxu0 0.0
    %1770 = vmatpush1.msra.mxu0 0.0
    %1771 = vmatprep.subr.mxu0 0.0
    %1772 = vmatpush1.msra.mxu0 0.0
    %1773 = vmatprep.mubr.f32.mxu0 0.0
    %v1774 = vand.u32 %v782, 4294901760
    %v1775 = vsub.f32 %v782, %v1774
    %1776 = vmatmul.mubr.f32.gmra.mrb[0].mxu0 %v1775
    %v1777 = vpop.f32.mrb[0].mxu0
    %v1778 = vadd.f32 %v1696, %v1777
    %v1779 = vpop.f32.mrb[0].mxu0
    %1780 = vmatprep.mubr.f32.mxu0 0.0
    %v1781 = vand.u32 %v785, 4294901760
    %v1782 = vsub.f32 %v785, %v1781
    %1783 = vmatmul.mubr.f32.gmra.mrb[0].mxu0 %v1782
    %v1784 = vpop.f32.mrb[0].mxu0
    %v1785 = vadd.f32 %v1702, %v1784
    %v1786 = vpop.f32.mrb[0].mxu0
    %1787 = vdwg.mxu0
    %1788 = vmatprep.subr.mxu0 0.0
    %v1789 = vand.u32 %v1529, 4294901760
    %1790 = vmatpush1.msra.mxu0 %v1789
    %1791 = vmatprep.subr.mxu0 0.0
    %v1792 = vand.u32 %v1530, 4294901760
    %1793 = vmatpush1.msra.mxu0 %v1792
    %1794 = vmatprep.subr.mxu0 0.0
    %1795 = vmatpush1.msra.mxu0 0.0
    %1796 = vmatprep.subr.mxu0 0.0
    %1797 = vmatpush1.msra.mxu0 0.0
    %1798 = vmatprep.subr.mxu0 0.0
    %1799 = vmatpush1.msra.mxu0 0.0
    %1800 = vmatprep.subr.mxu0 0.0
    %1801 = vmatpush1.msra.mxu0 0.0
    %1802 = vmatprep.subr.mxu0 0.0
    %1803 = vmatpush1.msra.mxu0 0.0
    %1804 = vmatprep.subr.mxu0 0.0
    %1805 = vmatpush1.msra.mxu0 0.0
    %1806 = vmatprep.subr.mxu0 0.0
    %1807 = vmatpush1.msra.mxu0 0.0
    %1808 = vmatprep.subr.mxu0 0.0
    %1809 = vmatpush1.msra.mxu0 0.0
    %1810 = vmatprep.subr.mxu0 0.0
    %1811 = vmatpush1.msra.mxu0 0.0
    %1812 = vmatprep.subr.mxu0 0.0
    %1813 = vmatpush1.msra.mxu0 0.0
    %1814 = vmatprep.subr.mxu0 0.0
    %1815 = vmatpush1.msra.mxu0 0.0
    %1816 = vmatprep.subr.mxu0 0.0
    %1817 = vmatpush1.msra.mxu0 0.0
    %1818 = vmatprep.subr.mxu0 0.0
    %1819 = vmatpush1.msra.mxu0 0.0
    %1820 = vmatprep.subr.mxu0 0.0
    %1821 = vmatpush1.msra.mxu0 0.0
    %1822 = vmatprep.subr.mxu0 0.0
    %1823 = vmatpush1.msra.mxu0 0.0
    %1824 = vmatprep.subr.mxu0 0.0
    %1825 = vmatpush1.msra.mxu0 0.0
    %1826 = vmatprep.subr.mxu0 0.0
    %1827 = vmatpush1.msra.mxu0 0.0
    %1828 = vmatprep.subr.mxu0 0.0
    %1829 = vmatpush1.msra.mxu0 0.0
    %1830 = vmatprep.subr.mxu0 0.0
    %1831 = vmatpush1.msra.mxu0 0.0
    %1832 = vmatprep.subr.mxu0 0.0
    %1833 = vmatpush1.msra.mxu0 0.0
    %1834 = vmatprep.subr.mxu0 0.0
    %1835 = vmatpush1.msra.mxu0 0.0
    %1836 = vmatprep.subr.mxu0 0.0
    %1837 = vmatpush1.msra.mxu0 0.0
    %1838 = vmatprep.subr.mxu0 0.0
    %1839 = vmatpush1.msra.mxu0 0.0
    %1840 = vmatprep.subr.mxu0 0.0
    %1841 = vmatpush1.msra.mxu0 0.0
    %1842 = vmatprep.subr.mxu0 0.0
    %1843 = vmatpush1.msra.mxu0 0.0
    %1844 = vmatprep.subr.mxu0 0.0
    %1845 = vmatpush1.msra.mxu0 0.0
    %1846 = vmatprep.subr.mxu0 0.0
    %1847 = vmatpush1.msra.mxu0 0.0
    %1848 = vmatprep.subr.mxu0 0.0
    %1849 = vmatpush1.msra.mxu0 0.0
    %1850 = vmatprep.subr.mxu0 0.0
    %1851 = vmatpush1.msra.mxu0 0.0
    %1852 = vmatprep.subr.mxu0 0.0
    %1853 = vmatpush1.msra.mxu0 0.0
    %1854 = vmatprep.mubr.f32.mxu0 0.0
    %v1855 = vand.u32 %v782, 4294901760
    %v1856 = vsub.f32 %v782, %v1855
    %v1857 = vand.u32 %v1856, 4294901760
    %1858 = vmatmul.mubr.f32.gmra.mrb[0].mxu0 %v1857
    %v1859 = vpop.f32.mrb[0].mxu0
    %v1860 = vadd.f32 %v1778, %v1859
    %v1861 = vpop.f32.mrb[0].mxu0
    %1862 = vmatprep.mubr.f32.mxu0 0.0
    %v1863 = vand.u32 %v785, 4294901760
    %v1864 = vsub.f32 %v785, %v1863
    %v1865 = vand.u32 %v1864, 4294901760
    %1866 = vmatmul.mubr.f32.gmra.mrb[0].mxu0 %v1865
    %v1867 = vpop.f32.mrb[0].mxu0
    %v1868 = vadd.f32 %v1785, %v1867
    %v1869 = vpop.f32.mrb[0].mxu0
    %1870 = vdwg.mxu0
    %1871 = vmatprep.subr.mxu0 0.0
    %v1872 = vand.u32 %v1529, 4294901760
    %v1873 = vsub.f32 %v1529, %v1872
    %v1874 = vand.u32 %v1873, 4294901760
    %1875 = vmatpush1.msra.mxu0 %v1874
    %1876 = vmatprep.subr.mxu0 0.0
    %v1877 = vand.u32 %v1530, 4294901760
    %v1878 = vsub.f32 %v1530, %v1877
    %v1879 = vand.u32 %v1878, 4294901760
    %1880 = vmatpush1.msra.mxu0 %v1879
    %1881 = vmatprep.subr.mxu0 0.0
    %1882 = vmatpush1.msra.mxu0 0.0
    %1883 = vmatprep.subr.mxu0 0.0
    %1884 = vmatpush1.msra.mxu0 0.0
    %1885 = vmatprep.subr.mxu0 0.0
    %1886 = vmatpush1.msra.mxu0 0.0
    %1887 = vmatprep.subr.mxu0 0.0
    %1888 = vmatpush1.msra.mxu0 0.0
    %1889 = vmatprep.subr.mxu0 0.0
    %1890 = vmatpush1.msra.mxu0 0.0
    %1891 = vmatprep.subr.mxu0 0.0
    %1892 = vmatpush1.msra.mxu0 0.0
    %1893 = vmatprep.subr.mxu0 0.0
    %1894 = vmatpush1.msra.mxu0 0.0
    %1895 = vmatprep.subr.mxu0 0.0
    %1896 = vmatpush1.msra.mxu0 0.0
    %1897 = vmatprep.subr.mxu0 0.0
    %1898 = vmatpush1.msra.mxu0 0.0
    %1899 = vmatprep.subr.mxu0 0.0
    %1900 = vmatpush1.msra.mxu0 0.0
    %1901 = vmatprep.subr.mxu0 0.0
    %1902 = vmatpush1.msra.mxu0 0.0
    %1903 = vmatprep.subr.mxu0 0.0
    %1904 = vmatpush1.msra.mxu0 0.0
    %1905 = vmatprep.subr.mxu0 0.0
    %1906 = vmatpush1.msra.mxu0 0.0
    %1907 = vmatprep.subr.mxu0 0.0
    %1908 = vmatpush1.msra.mxu0 0.0
    %1909 = vmatprep.subr.mxu0 0.0
    %1910 = vmatpush1.msra.mxu0 0.0
    %1911 = vmatprep.subr.mxu0 0.0
    %1912 = vmatpush1.msra.mxu0 0.0
    %1913 = vmatprep.subr.mxu0 0.0
    %1914 = vmatpush1.msra.mxu0 0.0
    %1915 = vmatprep.subr.mxu0 0.0
    %1916 = vmatpush1.msra.mxu0 0.0
    %1917 = vmatprep.subr.mxu0 0.0
    %1918 = vmatpush1.msra.mxu0 0.0
    %1919 = vmatprep.subr.mxu0 0.0
    %1920 = vmatpush1.msra.mxu0 0.0
    %1921 = vmatprep.subr.mxu0 0.0
    %1922 = vmatpush1.msra.mxu0 0.0
    %1923 = vmatprep.subr.mxu0 0.0
    %1924 = vmatpush1.msra.mxu0 0.0
    %1925 = vmatprep.subr.mxu0 0.0
    %1926 = vmatpush1.msra.mxu0 0.0
    %1927 = vmatprep.subr.mxu0 0.0
    %1928 = vmatpush1.msra.mxu0 0.0
    %1929 = vmatprep.subr.mxu0 0.0
    %1930 = vmatpush1.msra.mxu0 0.0
    %1931 = vmatprep.subr.mxu0 0.0
    %1932 = vmatpush1.msra.mxu0 0.0
    %1933 = vmatprep.subr.mxu0 0.0
    %1934 = vmatpush1.msra.mxu0 0.0
    %1935 = vmatprep.subr.mxu0 0.0
    %1936 = vmatpush1.msra.mxu0 0.0
    %1937 = vmatprep.subr.mxu0 0.0
    %1938 = vmatpush1.msra.mxu0 0.0
    %1939 = vmatprep.subr.mxu0 0.0
    %1940 = vmatpush1.msra.mxu0 0.0
    %1941 = vmatprep.mubr.f32.mxu0 0.0
    %v1942 = vand.u32 %v782, 4294901760
    %1943 = vmatmul.mubr.f32.gmra.mrb[0].mxu0 %v1942
    %v1944 = vpop.f32.mrb[0].mxu0
    %v1945 = vadd.f32 %v1860, %v1944
    %v1946 = vpop.f32.mrb[0].mxu0
    %1947 = vmatprep.mubr.f32.mxu0 0.0
    %v1948 = vand.u32 %v785, 4294901760
    %1949 = vmatmul.mubr.f32.gmra.mrb[0].mxu0 %v1948
    %v1950 = vpop.f32.mrb[0].mxu0
    %v1951 = vadd.f32 %v1868, %v1950
    %v1952 = vpop.f32.mrb[0].mxu0
    %1953 = vdwg.mxu0
    %1954 = vmatprep.subr.mxu0 0.0
    %v1955 = vand.u32 %v1529, 4294901760
    %1956 = vmatpush1.msra.mxu0 %v1955
    %1957 = vmatprep.subr.mxu0 0.0
    %v1958 = vand.u32 %v1530, 4294901760
    %1959 = vmatpush1.msra.mxu0 %v1958
    %1960 = vmatprep.subr.mxu0 0.0
    %1961 = vmatpush1.msra.mxu0 0.0
    %1962 = vmatprep.subr.mxu0 0.0
    %1963 = vmatpush1.msra.mxu0 0.0
    %1964 = vmatprep.subr.mxu0 0.0
    %1965 = vmatpush1.msra.mxu0 0.0
    %1966 = vmatprep.subr.mxu0 0.0
    %1967 = vmatpush1.msra.mxu0 0.0
    %1968 = vmatprep.subr.mxu0 0.0
    %1969 = vmatpush1.msra.mxu0 0.0
    %1970 = vmatprep.subr.mxu0 0.0
    %1971 = vmatpush1.msra.mxu0 0.0
    %1972 = vmatprep.subr.mxu0 0.0
    %1973 = vmatpush1.msra.mxu0 0.0
    %1974 = vmatprep.subr.mxu0 0.0
    %1975 = vmatpush1.msra.mxu0 0.0
    %1976 = vmatprep.subr.mxu0 0.0
    %1977 = vmatpush1.msra.mxu0 0.0
    %1978 = vmatprep.subr.mxu0 0.0
    %1979 = vmatpush1.msra.mxu0 0.0
    %1980 = vmatprep.subr.mxu0 0.0
    %1981 = vmatpush1.msra.mxu0 0.0
    %1982 = vmatprep.subr.mxu0 0.0
    %1983 = vmatpush1.msra.mxu0 0.0
    %1984 = vmatprep.subr.mxu0 0.0
    %1985 = vmatpush1.msra.mxu0 0.0
    %1986 = vmatprep.subr.mxu0 0.0
    %1987 = vmatpush1.msra.mxu0 0.0
    %1988 = vmatprep.subr.mxu0 0.0
    %1989 = vmatpush1.msra.mxu0 0.0
    %1990 = vmatprep.subr.mxu0 0.0
    %1991 = vmatpush1.msra.mxu0 0.0
    %1992 = vmatprep.subr.mxu0 0.0
    %1993 = vmatpush1.msra.mxu0 0.0
    %1994 = vmatprep.subr.mxu0 0.0
    %1995 = vmatpush1.msra.mxu0 0.0
    %1996 = vmatprep.subr.mxu0 0.0
    %1997 = vmatpush1.msra.mxu0 0.0
    %1998 = vmatprep.subr.mxu0 0.0
    %1999 = vmatpush1.msra.mxu0 0.0
    %2000 = vmatprep.subr.mxu0 0.0
    %2001 = vmatpush1.msra.mxu0 0.0
    %2002 = vmatprep.subr.mxu0 0.0
    %2003 = vmatpush1.msra.mxu0 0.0
    %2004 = vmatprep.subr.mxu0 0.0
    %2005 = vmatpush1.msra.mxu0 0.0
    %2006 = vmatprep.subr.mxu0 0.0
    %2007 = vmatpush1.msra.mxu0 0.0
    %2008 = vmatprep.subr.mxu0 0.0
    %2009 = vmatpush1.msra.mxu0 0.0
    %2010 = vmatprep.subr.mxu0 0.0
    %2011 = vmatpush1.msra.mxu0 0.0
    %2012 = vmatprep.subr.mxu0 0.0
    %2013 = vmatpush1.msra.mxu0 0.0
    %2014 = vmatprep.subr.mxu0 0.0
    %2015 = vmatpush1.msra.mxu0 0.0
    %2016 = vmatprep.subr.mxu0 0.0
    %2017 = vmatpush1.msra.mxu0 0.0
    %2018 = vmatprep.subr.mxu0 0.0
    %2019 = vmatpush1.msra.mxu0 0.0
    %2020 = vmatprep.mubr.f32.mxu0 0.0
    %v2021 = vand.u32 %v782, 4294901760
    %2022 = vmatmul.mubr.f32.gmra.mrb[0].mxu0 %v2021
    %v2023 = vpop.f32.mrb[0].mxu0
    %v2024 = vadd.f32 %v1945, %v2023
    %v2025 = vpop.f32.mrb[0].mxu0
    %2026 = vmatprep.mubr.f32.mxu0 0.0
    %v2027 = vand.u32 %v785, 4294901760
    %2028 = vmatmul.mubr.f32.gmra.mrb[0].mxu0 %v2027
    %v2029 = vpop.f32.mrb[0].mxu0
    %v2030 = vadd.f32 %v1951, %v2029
    %v2031 = vpop.f32.mrb[0].mxu0
    %2032 = vdwg.mxu0
    %s2033 = scalar_lea.vmem %s5, 48
    %v2034 = vld [vmem:[%s2033] sm:$0xf]
    %v2035 = vld [vmem:[%s2033 + $0x4] sm:$0xf]
    %v2036 = vld [vmem:[%s2033 + $0x8] sm:$0xf]
    %v2037 = vld [vmem:[%s2033 + $0xc] sm:$0xf]
    %v2038 = vpack.c.bf16 %v2030, %v2024
    %s2039 = scalar_lea.vmem %s6, 8
    %v2040 = vld [vmem:[%s2039] sm:$0xf]
    %v2041 = vld [vmem:[%s2039 + $0x4] sm:$0xf]
    %v2044 = vunpack.c.l.b16 %v2040
    %v2045 = vunpack.c.l.b16 %v2041
    %v2046 = vpack.c.b16 %v2045, %v2044
    %2048 = vmatprep.subr.bf16.mxu0 0
    %2049 = vmatpush1.bf16.msra.mxu0 %v2046
    %2050 = vmatprep.subr.bf16.mxu0 0
    %2051 = vmatpush1.bf16.msra.mxu0 0
    %2052 = vmatprep.subr.bf16.mxu0 0
    %2053 = vmatpush1.bf16.msra.mxu0 0
    %2054 = vmatprep.subr.bf16.mxu0 0
    %2055 = vmatpush1.bf16.msra.mxu0 0
    %2056 = vmatprep.subr.bf16.mxu0 0
    %2057 = vmatpush1.bf16.msra.mxu0 0
    %2058 = vmatprep.subr.bf16.mxu0 0
    %2059 = vmatpush1.bf16.msra.mxu0 0
    %2060 = vmatprep.subr.bf16.mxu0 0
    %2061 = vmatpush1.bf16.msra.mxu0 0
    %2062 = vmatprep.subr.bf16.mxu0 0
    %2063 = vmatpush1.bf16.msra.mxu0 0
    %2064 = vmatprep.subr.bf16.mxu0 0
    %2065 = vmatpush1.bf16.msra.mxu0 0
    %2066 = vmatprep.subr.bf16.mxu0 0
    %2067 = vmatpush1.bf16.msra.mxu0 0
    %2068 = vmatprep.subr.bf16.mxu0 0
    %2069 = vmatpush1.bf16.msra.mxu0 0
    %2070 = vmatprep.subr.bf16.mxu0 0
    %2071 = vmatpush1.bf16.msra.mxu0 0
    %2072 = vmatprep.subr.bf16.mxu0 0
    %2073 = vmatpush1.bf16.msra.mxu0 0
    %2074 = vmatprep.subr.bf16.mxu0 0
    %2075 = vmatpush1.bf16.msra.mxu0 0
    %2076 = vmatprep.subr.bf16.mxu0 0
    %2077 = vmatpush1.bf16.msra.mxu0 0
    %2078 = vmatprep.subr.bf16.mxu0 0
    %2079 = vmatpush1.bf16.msra.mxu0 0
    %2080 = vmatprep.mubr.bf16.mxu0 0
    %2081 = vmatmul.mubr.bf16.gmra.mrb[0].mxu0 %v1305
    %v2082 = vpop.f32.mrb[0].mxu0
    %v2083 = vadd.f32 0.0, %v2082
    %v2084 = vpop.f32.mrb[0].mxu0
    %v2085 = vpop.f32.mrb[0].mxu0
    %v2086 = vadd.f32 0.0, %v2085
    %v2087 = vpop.f32.mrb[0].mxu0
    %2088 = vdwg.mxu0
    %v2093 = vunpack.c.l.b16 %v2034
    %v2094 = vunpack.c.l.b16 %v2035
    %v2095 = vunpack.c.l.b16 %v2036
    %v2096 = vunpack.c.l.b16 %v2037
    %v2097 = vpack.c.b16 %v2094, %v2093
    %v2098 = vpack.c.b16 %v2096, %v2095
    %v2102 = vsel %vm199, %v2038, 0
    %2104 = vmatprep.subr.bf16.mxu0 0
    %2105 = vmatpush1.bf16.msra.mxu0 %v2097
    %2106 = vmatprep.subr.bf16.mxu0 0
    %2107 = vmatpush1.bf16.msra.mxu0 %v2098
    %2108 = vmatprep.subr.bf16.mxu0 0
    %2109 = vmatpush1.bf16.msra.mxu0 0
    %2110 = vmatprep.subr.bf16.mxu0 0
    %2111 = vmatpush1.bf16.msra.mxu0 0
    %2112 = vmatprep.subr.bf16.mxu0 0
    %2113 = vmatpush1.bf16.msra.mxu0 0
    %2114 = vmatprep.subr.bf16.mxu0 0
    %2115 = vmatpush1.bf16.msra.mxu0 0
    %2116 = vmatprep.subr.bf16.mxu0 0
    %2117 = vmatpush1.bf16.msra.mxu0 0
    %2118 = vmatprep.subr.bf16.mxu0 0
    %2119 = vmatpush1.bf16.msra.mxu0 0
    %2120 = vmatprep.subr.bf16.mxu0 0
    %2121 = vmatpush1.bf16.msra.mxu0 0
    %2122 = vmatprep.subr.bf16.mxu0 0
    %2123 = vmatpush1.bf16.msra.mxu0 0
    %2124 = vmatprep.subr.bf16.mxu0 0
    %2125 = vmatpush1.bf16.msra.mxu0 0
    %2126 = vmatprep.subr.bf16.mxu0 0
    %2127 = vmatpush1.bf16.msra.mxu0 0
    %2128 = vmatprep.subr.bf16.mxu0 0
    %2129 = vmatpush1.bf16.msra.mxu0 0
    %2130 = vmatprep.subr.bf16.mxu0 0
    %2131 = vmatpush1.bf16.msra.mxu0 0
    %2132 = vmatprep.subr.bf16.mxu0 0
    %2133 = vmatpush1.bf16.msra.mxu0 0
    %2134 = vmatprep.subr.bf16.mxu0 0
    %2135 = vmatpush1.bf16.msra.mxu0 0
    %2136 = vmatprep.mubr.bf16.mxu0 0
    %2137 = vmatmul.mubr.bf16.gmra.mrb[0].mxu0 %v2102
    %v2138 = vpop.f32.mrb[0].mxu0
    %v2139 = vadd.f32 %v2083, %v2138
    %v2140 = vpop.f32.mrb[0].mxu0
    %v2141 = vpop.f32.mrb[0].mxu0
    %v2142 = vadd.f32 %v2086, %v2141
    %v2143 = vpop.f32.mrb[0].mxu0
    %2144 = vdwg.mxu0
    %v2145 = vld [vmem:[%s7 + $0x5] sm:$0x1]
    %v2146 = vlaneseq
    %v2147 = vshrl.u32 %v2146, 7
    %v2148 = vsub.s32 0, %v2147
    %v2149 = vrot.slane %v2145, %v2148
    %v2150 = vadd.f32 %v2139, %v2149
    %v2151 = vadd.f32 %v2142, %v2149
    %v2152 = vld [vmem:[%s7 + $0x6] sm:$0x1]
    %v2153 = vld [vmem:[%s7 + $0x7] sm:$0x1]
    %v2154 = vsel %vm199, %v2150, 0.0
    %2155 = vadd.xlane.f32.xlu0 %v2154
    %v2156 = vpop.xlane.xlu0 %2155
    %v2157 = vsel %vm199, %v2151, 0.0
    %2158 = vadd.xlane.f32.xlu0 %v2157
    %v2159 = vpop.xlane.xlu0 %2158
    %v2160 = vmul.f32 %v2156, %v1419
    %v2161 = vmul.f32 %v2159, %v1419
    %v2162 = vsub.f32 %v2150, %v2160
    %v2163 = vsub.f32 %v2151, %v2161
    %v2164 = vmul.f32 %v2162, %v2162
    %v2165 = vmul.f32 %v2163, %v2163
    %v2166 = vsel %vm199, %v2164, 0.0
    %2167 = vadd.xlane.f32.xlu0 %v2166
    %v2168 = vpop.xlane.xlu0 %2167
    %v2169 = vsel %vm199, %v2165, 0.0
    %2170 = vadd.xlane.f32.xlu0 %v2169
    %v2171 = vpop.xlane.xlu0 %2170
    %v2172 = vmul.f32 %v2168, %v1419
    %v2173 = vmul.f32 %v2171, %v1419
    %v2174 = vadd.f32 %v2172, 1e-05
    %v2175 = vadd.f32 %v2173, 1e-05
    %v2176 = vrsqrt.pop %v2174
    %v2177 = vrsqrt.pop %v2175
    %v2178 = vmul.f32 %v2162, %v2176
    %v2179 = vmul.f32 %v2163, %v2177
    %v2180 = vlaneseq
    %v2181 = vshrl.u32 %v2180, 7
    %v2182 = vsub.s32 0, %v2181
    %v2183 = vrot.slane %v2152, %v2182
    %v2184 = vmul.f32 %v2178, %v2183
    %v2185 = vmul.f32 %v2179, %v2183
    %v2186 = vlaneseq
    %v2187 = vshrl.u32 %v2186, 7
    %v2188 = vsub.s32 0, %v2187
    %v2189 = vrot.slane %v2153, %v2188
    %v2190 = vadd.f32 %v2184, %v2189
    %v2191 = vadd.f32 %v2185, %v2189
    %s2192 = sld [smem:[#allocation2 + $0x1]]
    %vm2193 = vcmp.ge.f32.partialorder %v2190, 0.0
    %vm2194 = vcmp.ge.f32.partialorder %v2191, 0.0
    %v2195 = vstv %s2192
    %v2196 = vmul.f32 %v2195, %v2190
    %v2197 = vmul.f32 %v2195, %v2191
    %v2198 = vsel %vm2193, %v2190, %v2196
    %v2199 = vsel %vm2194, %v2191, %v2197
    %s2200 = scalar_lea.vmem %s5, 64
    %v2201 = vld [vmem:[%s2200] sm:$0xf]
    %v2202 = vld [vmem:[%s2200 + $0x4] sm:$0xf]
    %v2203 = vld [vmem:[%s2200 + $0x8] sm:$0xf]
    %v2204 = vld [vmem:[%s2200 + $0xc] sm:$0xf]
    %v2205 = vpack.c.bf16 %v2199, %v2198
    %v2206 = vld [vmem:[%s7 + $0x8] sm:$0x1]
    %v2207 = vlaneseq
    %v2208 = vshrl.u32 %v2207, 7
    %v2209 = vsub.s32 0, %v2208
    %v2210 = vrot.slane %v2206, %v2209
    %v2215 = vunpack.c.l.b16 %v2201
    %v2216 = vunpack.c.l.b16 %v2202
    %v2217 = vunpack.c.l.b16 %v2203
    %v2218 = vunpack.c.l.b16 %v2204
    %v2219 = vpack.c.b16 %v2216, %v2215
    %v2220 = vpack.c.b16 %v2218, %v2217
    %v2224 = vsel %vm199, %v2205, 0
    %2226 = vmatprep.subr.bf16.mxu0 0
    %2227 = vmatpush1.bf16.msra.mxu0 %v2219
    %2228 = vmatprep.subr.bf16.mxu0 0
    %2229 = vmatpush1.bf16.msra.mxu0 %v2220
    %2230 = vmatprep.subr.bf16.mxu0 0
    %2231 = vmatpush1.bf16.msra.mxu0 0
    %2232 = vmatprep.subr.bf16.mxu0 0
    %2233 = vmatpush1.bf16.msra.mxu0 0
    %2234 = vmatprep.subr.bf16.mxu0 0
    %2235 = vmatpush1.bf16.msra.mxu0 0
    %2236 = vmatprep.subr.bf16.mxu0 0
    %2237 = vmatpush1.bf16.msra.mxu0 0
    %2238 = vmatprep.subr.bf16.mxu0 0
    %2239 = vmatpush1.bf16.msra.mxu0 0
    %2240 = vmatprep.subr.bf16.mxu0 0
    %2241 = vmatpush1.bf16.msra.mxu0 0
    %2242 = vmatprep.subr.bf16.mxu0 0
    %2243 = vmatpush1.bf16.msra.mxu0 0
    %2244 = vmatprep.subr.bf16.mxu0 0
    %2245 = vmatpush1.bf16.msra.mxu0 0
    %2246 = vmatprep.subr.bf16.mxu0 0
    %2247 = vmatpush1.bf16.msra.mxu0 0
    %2248 = vmatprep.subr.bf16.mxu0 0
    %2249 = vmatpush1.bf16.msra.mxu0 0
    %2250 = vmatprep.subr.bf16.mxu0 0
    %2251 = vmatpush1.bf16.msra.mxu0 0
    %2252 = vmatprep.subr.bf16.mxu0 0
    %2253 = vmatpush1.bf16.msra.mxu0 0
    %2254 = vmatprep.subr.bf16.mxu0 0
    %2255 = vmatpush1.bf16.msra.mxu0 0
    %2256 = vmatprep.subr.bf16.mxu0 0
    %2257 = vmatpush1.bf16.msra.mxu0 0
    %2258 = vmatprep.mubr.bf16.mxu0 0
    %2259 = vmatmul.mubr.bf16.gmra.mrb[0].mxu0 %v2224
    %v2260 = vpop.f32.mrb[0].mxu0
    %v2261 = vadd.f32 %v2210, %v2260
    %v2262 = vpop.f32.mrb[0].mxu0
    %v2263 = vpop.f32.mrb[0].mxu0
    %v2264 = vadd.f32 %v2210, %v2263
    %v2265 = vpop.f32.mrb[0].mxu0
    %2266 = vdwg.mxu0
    %v2267 = vadd.f32 %v1529, %v2261
    %v2268 = vadd.f32 %v1530, %v2264
    %v2269 = vmul.f32 %v2267, %v61
    %v2270 = vmul.f32 %v2268, %v62
    %2271 = vmatprep.subr.mxu0 0.0
    %v2272 = vand.u32 %v2269, 4294901760
    %2273 = vmatpush1.msra.mxu0 %v2272
    %2274 = vmatprep.subr.mxu0 0.0
    %v2275 = vand.u32 %v2270, 4294901760
    %2276 = vmatpush1.msra.mxu0 %v2275
    %2277 = vmatprep.subr.mxu0 0.0
    %2278 = vmatpush1.msra.mxu0 0.0
    %2279 = vmatprep.subr.mxu0 0.0
    %2280 = vmatpush1.msra.mxu0 0.0
    %2281 = vmatprep.subr.mxu0 0.0
    %2282 = vmatpush1.msra.mxu0 0.0
    %2283 = vmatprep.subr.mxu0 0.0
    %2284 = vmatpush1.msra.mxu0 0.0
    %2285 = vmatprep.subr.mxu0 0.0
    %2286 = vmatpush1.msra.mxu0 0.0
    %2287 = vmatprep.subr.mxu0 0.0
    %2288 = vmatpush1.msra.mxu0 0.0
    %2289 = vmatprep.subr.mxu0 0.0
    %2290 = vmatpush1.msra.mxu0 0.0
    %2291 = vmatprep.subr.mxu0 0.0
    %2292 = vmatpush1.msra.mxu0 0.0
    %2293 = vmatprep.subr.mxu0 0.0
    %2294 = vmatpush1.msra.mxu0 0.0
    %2295 = vmatprep.subr.mxu0 0.0
    %2296 = vmatpush1.msra.mxu0 0.0
    %2297 = vmatprep.subr.mxu0 0.0
    %2298 = vmatpush1.msra.mxu0 0.0
    %2299 = vmatprep.subr.mxu0 0.0
    %2300 = vmatpush1.msra.mxu0 0.0
    %2301 = vmatprep.subr.mxu0 0.0
    %2302 = vmatpush1.msra.mxu0 0.0
    %2303 = vmatprep.subr.mxu0 0.0
    %2304 = vmatpush1.msra.mxu0 0.0
    %2305 = vmatprep.subr.mxu0 0.0
    %2306 = vmatpush1.msra.mxu0 0.0
    %2307 = vmatprep.subr.mxu0 0.0
    %2308 = vmatpush1.msra.mxu0 0.0
    %2309 = vmatprep.subr.mxu0 0.0
    %2310 = vmatpush1.msra.mxu0 0.0
    %2311 = vmatprep.subr.mxu0 0.0
    %2312 = vmatpush1.msra.mxu0 0.0
    %2313 = vmatprep.subr.mxu0 0.0
    %2314 = vmatpush1.msra.mxu0 0.0
    %2315 = vmatprep.subr.mxu0 0.0
    %2316 = vmatpush1.msra.mxu0 0.0
    %2317 = vmatprep.subr.mxu0 0.0
    %2318 = vmatpush1.msra.mxu0 0.0
    %2319 = vmatprep.subr.mxu0 0.0
    %2320 = vmatpush1.msra.mxu0 0.0
    %2321 = vmatprep.subr.mxu0 0.0
    %2322 = vmatpush1.msra.mxu0 0.0
    %2323 = vmatprep.subr.mxu0 0.0
    %2324 = vmatpush1.msra.mxu0 0.0
    %2325 = vmatprep.subr.mxu0 0.0
    %2326 = vmatpush1.msra.mxu0 0.0
    %2327 = vmatprep.subr.mxu0 0.0
    %2328 = vmatpush1.msra.mxu0 0.0
    %2329 = vmatprep.subr.mxu0 0.0
    %2330 = vmatpush1.msra.mxu0 0.0
    %2331 = vmatprep.subr.mxu0 0.0
    %2332 = vmatpush1.msra.mxu0 0.0
    %2333 = vmatprep.subr.mxu0 0.0
    %2334 = vmatpush1.msra.mxu0 0.0
    %2335 = vmatprep.subr.mxu0 0.0
    %2336 = vmatpush1.msra.mxu0 0.0
    %2337 = vmatprep.mubr.f32.mxu0 0.0
    %v2338 = vand.u32 %v782, 4294901760
    %v2339 = vsub.f32 %v782, %v2338
    %v2340 = vand.u32 %v2339, 4294901760
    %v2341 = vsub.f32 %v2339, %v2340
    %v2342 = vand.u32 %v2341, 4294901760
    %2343 = vmatmul.mubr.f32.gmra.mrb[0].mxu0 %v2342
    %v2344 = vpop.f32.mrb[0].mxu0
    %v2345 = vadd.f32 0.0, %v2344
    %v2346 = vpop.f32.mrb[0].mxu0
    %2347 = vmatprep.mubr.f32.mxu0 0.0
    %v2348 = vand.u32 %v785, 4294901760
    %v2349 = vsub.f32 %v785, %v2348
    %v2350 = vand.u32 %v2349, 4294901760
    %v2351 = vsub.f32 %v2349, %v2350
    %v2352 = vand.u32 %v2351, 4294901760
    %2353 = vmatmul.mubr.f32.gmra.mrb[0].mxu0 %v2352
    %v2354 = vpop.f32.mrb[0].mxu0
    %v2355 = vadd.f32 0.0, %v2354
    %v2356 = vpop.f32.mrb[0].mxu0
    %2357 = vdwg.mxu0
    %2358 = vmatprep.subr.mxu0 0.0
    %v2359 = vand.u32 %v2269, 4294901760
    %v2360 = vsub.f32 %v2269, %v2359
    %v2361 = vand.u32 %v2360, 4294901760
    %v2362 = vsub.f32 %v2360, %v2361
    %v2363 = vand.u32 %v2362, 4294901760
    %2364 = vmatpush1.msra.mxu0 %v2363
    %2365 = vmatprep.subr.mxu0 0.0
    %v2366 = vand.u32 %v2270, 4294901760
    %v2367 = vsub.f32 %v2270, %v2366
    %v2368 = vand.u32 %v2367, 4294901760
    %v2369 = vsub.f32 %v2367, %v2368
    %v2370 = vand.u32 %v2369, 4294901760
    %2371 = vmatpush1.msra.mxu0 %v2370
    %2372 = vmatprep.subr.mxu0 0.0
    %2373 = vmatpush1.msra.mxu0 0.0
    %2374 = vmatprep.subr.mxu0 0.0
    %2375 = vmatpush1.msra.mxu0 0.0
    %2376 = vmatprep.subr.mxu0 0.0
    %2377 = vmatpush1.msra.mxu0 0.0
    %2378 = vmatprep.subr.mxu0 0.0
    %2379 = vmatpush1.msra.mxu0 0.0
    %2380 = vmatprep.subr.mxu0 0.0
    %2381 = vmatpush1.msra.mxu0 0.0
    %2382 = vmatprep.subr.mxu0 0.0
    %2383 = vmatpush1.msra.mxu0 0.0
    %2384 = vmatprep.subr.mxu0 0.0
    %2385 = vmatpush1.msra.mxu0 0.0
    %2386 = vmatprep.subr.mxu0 0.0
    %2387 = vmatpush1.msra.mxu0 0.0
    %2388 = vmatprep.subr.mxu0 0.0
    %2389 = vmatpush1.msra.mxu0 0.0
    %2390 = vmatprep.subr.mxu0 0.0
    %2391 = vmatpush1.msra.mxu0 0.0
    %2392 = vmatprep.subr.mxu0 0.0
    %2393 = vmatpush1.msra.mxu0 0.0
    %2394 = vmatprep.subr.mxu0 0.0
    %2395 = vmatpush1.msra.mxu0 0.0
    %2396 = vmatprep.subr.mxu0 0.0
    %2397 = vmatpush1.msra.mxu0 0.0
    %2398 = vmatprep.subr.mxu0 0.0
    %2399 = vmatpush1.msra.mxu0 0.0
    %2400 = vmatprep.subr.mxu0 0.0
    %2401 = vmatpush1.msra.mxu0 0.0
    %2402 = vmatprep.subr.mxu0 0.0
    %2403 = vmatpush1.msra.mxu0 0.0
    %2404 = vmatprep.subr.mxu0 0.0
    %2405 = vmatpush1.msra.mxu0 0.0
    %2406 = vmatprep.subr.mxu0 0.0
    %2407 = vmatpush1.msra.mxu0 0.0
    %2408 = vmatprep.subr.mxu0 0.0
    %2409 = vmatpush1.msra.mxu0 0.0
    %2410 = vmatprep.subr.mxu0 0.0
    %2411 = vmatpush1.msra.mxu0 0.0
    %2412 = vmatprep.subr.mxu0 0.0
    %2413 = vmatpush1.msra.mxu0 0.0
    %2414 = vmatprep.subr.mxu0 0.0
    %2415 = vmatpush1.msra.mxu0 0.0
    %2416 = vmatprep.subr.mxu0 0.0
    %2417 = vmatpush1.msra.mxu0 0.0
    %2418 = vmatprep.subr.mxu0 0.0
    %2419 = vmatpush1.msra.mxu0 0.0
    %2420 = vmatprep.subr.mxu0 0.0
    %2421 = vmatpush1.msra.mxu0 0.0
    %2422 = vmatprep.subr.mxu0 0.0
    %2423 = vmatpush1.msra.mxu0 0.0
    %2424 = vmatprep.subr.mxu0 0.0
    %2425 = vmatpush1.msra.mxu0 0.0
    %2426 = vmatprep.subr.mxu0 0.0
    %2427 = vmatpush1.msra.mxu0 0.0
    %2428 = vmatprep.subr.mxu0 0.0
    %2429 = vmatpush1.msra.mxu0 0.0
    %2430 = vmatprep.subr.mxu0 0.0
    %2431 = vmatpush1.msra.mxu0 0.0
    %2432 = vmatprep.mubr.f32.mxu0 0.0
    %v2433 = vand.u32 %v782, 4294901760
    %2434 = vmatmul.mubr.f32.gmra.mrb[0].mxu0 %v2433
    %v2435 = vpop.f32.mrb[0].mxu0
    %v2436 = vadd.f32 %v2345, %v2435
    %v2437 = vpop.f32.mrb[0].mxu0
    %2438 = vmatprep.mubr.f32.mxu0 0.0
    %v2439 = vand.u32 %v785, 4294901760
    %2440 = vmatmul.mubr.f32.gmra.mrb[0].mxu0 %v2439
    %v2441 = vpop.f32.mrb[0].mxu0
    %v2442 = vadd.f32 %v2355, %v2441
    %v2443 = vpop.f32.mrb[0].mxu0
    %2444 = vdwg.mxu0
    %2445 = vmatprep.subr.mxu0 0.0
    %v2446 = vand.u32 %v2269, 4294901760
    %v2447 = vsub.f32 %v2269, %v2446
    %2448 = vmatpush1.msra.mxu0 %v2447
    %2449 = vmatprep.subr.mxu0 0.0
    %v2450 = vand.u32 %v2270, 4294901760
    %v2451 = vsub.f32 %v2270, %v2450
    %2452 = vmatpush1.msra.mxu0 %v2451
    %2453 = vmatprep.subr.mxu0 0.0
    %2454 = vmatpush1.msra.mxu0 0.0
    %2455 = vmatprep.subr.mxu0 0.0
    %2456 = vmatpush1.msra.mxu0 0.0
    %2457 = vmatprep.subr.mxu0 0.0
    %2458 = vmatpush1.msra.mxu0 0.0
    %2459 = vmatprep.subr.mxu0 0.0
    %2460 = vmatpush1.msra.mxu0 0.0
    %2461 = vmatprep.subr.mxu0 0.0
    %2462 = vmatpush1.msra.mxu0 0.0
    %2463 = vmatprep.subr.mxu0 0.0
    %2464 = vmatpush1.msra.mxu0 0.0
    %2465 = vmatprep.subr.mxu0 0.0
    %2466 = vmatpush1.msra.mxu0 0.0
    %2467 = vmatprep.subr.mxu0 0.0
    %2468 = vmatpush1.msra.mxu0 0.0
    %2469 = vmatprep.subr.mxu0 0.0
    %2470 = vmatpush1.msra.mxu0 0.0
    %2471 = vmatprep.subr.mxu0 0.0
    %2472 = vmatpush1.msra.mxu0 0.0
    %2473 = vmatprep.subr.mxu0 0.0
    %2474 = vmatpush1.msra.mxu0 0.0
    %2475 = vmatprep.subr.mxu0 0.0
    %2476 = vmatpush1.msra.mxu0 0.0
    %2477 = vmatprep.subr.mxu0 0.0
    %2478 = vmatpush1.msra.mxu0 0.0
    %2479 = vmatprep.subr.mxu0 0.0
    %2480 = vmatpush1.msra.mxu0 0.0
    %2481 = vmatprep.subr.mxu0 0.0
    %2482 = vmatpush1.msra.mxu0 0.0
    %2483 = vmatprep.subr.mxu0 0.0
    %2484 = vmatpush1.msra.mxu0 0.0
    %2485 = vmatprep.subr.mxu0 0.0
    %2486 = vmatpush1.msra.mxu0 0.0
    %2487 = vmatprep.subr.mxu0 0.0
    %2488 = vmatpush1.msra.mxu0 0.0
    %2489 = vmatprep.subr.mxu0 0.0
    %2490 = vmatpush1.msra.mxu0 0.0
    %2491 = vmatprep.subr.mxu0 0.0
    %2492 = vmatpush1.msra.mxu0 0.0
    %2493 = vmatprep.subr.mxu0 0.0
    %2494 = vmatpush1.msra.mxu0 0.0
    %2495 = vmatprep.subr.mxu0 0.0
    %2496 = vmatpush1.msra.mxu0 0.0
    %2497 = vmatprep.subr.mxu0 0.0
    %2498 = vmatpush1.msra.mxu0 0.0
    %2499 = vmatprep.subr.mxu0 0.0
    %2500 = vmatpush1.msra.mxu0 0.0
    %2501 = vmatprep.subr.mxu0 0.0
    %2502 = vmatpush1.msra.mxu0 0.0
    %2503 = vmatprep.subr.mxu0 0.0
    %2504 = vmatpush1.msra.mxu0 0.0
    %2505 = vmatprep.subr.mxu0 0.0
    %2506 = vmatpush1.msra.mxu0 0.0
    %2507 = vmatprep.subr.mxu0 0.0
    %2508 = vmatpush1.msra.mxu0 0.0
    %2509 = vmatprep.subr.mxu0 0.0
    %2510 = vmatpush1.msra.mxu0 0.0
    %2511 = vmatprep.subr.mxu0 0.0
    %2512 = vmatpush1.msra.mxu0 0.0
    %2513 = vmatprep.mubr.f32.mxu0 0.0
    %v2514 = vand.u32 %v782, 4294901760
    %v2515 = vsub.f32 %v782, %v2514
    %2516 = vmatmul.mubr.f32.gmra.mrb[0].mxu0 %v2515
    %v2517 = vpop.f32.mrb[0].mxu0
    %v2518 = vadd.f32 %v2436, %v2517
    %v2519 = vpop.f32.mrb[0].mxu0
    %2520 = vmatprep.mubr.f32.mxu0 0.0
    %v2521 = vand.u32 %v785, 4294901760
    %v2522 = vsub.f32 %v785, %v2521
    %2523 = vmatmul.mubr.f32.gmra.mrb[0].mxu0 %v2522
    %v2524 = vpop.f32.mrb[0].mxu0
    %v2525 = vadd.f32 %v2442, %v2524
    %v2526 = vpop.f32.mrb[0].mxu0
    %2527 = vdwg.mxu0
    %2528 = vmatprep.subr.mxu0 0.0
    %v2529 = vand.u32 %v2269, 4294901760
    %2530 = vmatpush1.msra.mxu0 %v2529
    %2531 = vmatprep.subr.mxu0 0.0
    %v2532 = vand.u32 %v2270, 4294901760
    %2533 = vmatpush1.msra.mxu0 %v2532
    %2534 = vmatprep.subr.mxu0 0.0
    %2535 = vmatpush1.msra.mxu0 0.0
    %2536 = vmatprep.subr.mxu0 0.0
    %2537 = vmatpush1.msra.mxu0 0.0
    %2538 = vmatprep.subr.mxu0 0.0
    %2539 = vmatpush1.msra.mxu0 0.0
    %2540 = vmatprep.subr.mxu0 0.0
    %2541 = vmatpush1.msra.mxu0 0.0
    %2542 = vmatprep.subr.mxu0 0.0
    %2543 = vmatpush1.msra.mxu0 0.0
    %2544 = vmatprep.subr.mxu0 0.0
    %2545 = vmatpush1.msra.mxu0 0.0
    %2546 = vmatprep.subr.mxu0 0.0
    %2547 = vmatpush1.msra.mxu0 0.0
    %2548 = vmatprep.subr.mxu0 0.0
    %2549 = vmatpush1.msra.mxu0 0.0
    %2550 = vmatprep.subr.mxu0 0.0
    %2551 = vmatpush1.msra.mxu0 0.0
    %2552 = vmatprep.subr.mxu0 0.0
    %2553 = vmatpush1.msra.mxu0 0.0
    %2554 = vmatprep.subr.mxu0 0.0
    %2555 = vmatpush1.msra.mxu0 0.0
    %2556 = vmatprep.subr.mxu0 0.0
    %2557 = vmatpush1.msra.mxu0 0.0
    %2558 = vmatprep.subr.mxu0 0.0
    %2559 = vmatpush1.msra.mxu0 0.0
    %2560 = vmatprep.subr.mxu0 0.0
    %2561 = vmatpush1.msra.mxu0 0.0
    %2562 = vmatprep.subr.mxu0 0.0
    %2563 = vmatpush1.msra.mxu0 0.0
    %2564 = vmatprep.subr.mxu0 0.0
    %2565 = vmatpush1.msra.mxu0 0.0
    %2566 = vmatprep.subr.mxu0 0.0
    %2567 = vmatpush1.msra.mxu0 0.0
    %2568 = vmatprep.subr.mxu0 0.0
    %2569 = vmatpush1.msra.mxu0 0.0
    %2570 = vmatprep.subr.mxu0 0.0
    %2571 = vmatpush1.msra.mxu0 0.0
    %2572 = vmatprep.subr.mxu0 0.0
    %2573 = vmatpush1.msra.mxu0 0.0
    %2574 = vmatprep.subr.mxu0 0.0
    %2575 = vmatpush1.msra.mxu0 0.0
    %2576 = vmatprep.subr.mxu0 0.0
    %2577 = vmatpush1.msra.mxu0 0.0
    %2578 = vmatprep.subr.mxu0 0.0
    %2579 = vmatpush1.msra.mxu0 0.0
    %2580 = vmatprep.subr.mxu0 0.0
    %2581 = vmatpush1.msra.mxu0 0.0
    %2582 = vmatprep.subr.mxu0 0.0
    %2583 = vmatpush1.msra.mxu0 0.0
    %2584 = vmatprep.subr.mxu0 0.0
    %2585 = vmatpush1.msra.mxu0 0.0
    %2586 = vmatprep.subr.mxu0 0.0
    %2587 = vmatpush1.msra.mxu0 0.0
    %2588 = vmatprep.subr.mxu0 0.0
    %2589 = vmatpush1.msra.mxu0 0.0
    %2590 = vmatprep.subr.mxu0 0.0
    %2591 = vmatpush1.msra.mxu0 0.0
    %2592 = vmatprep.subr.mxu0 0.0
    %2593 = vmatpush1.msra.mxu0 0.0
    %2594 = vmatprep.mubr.f32.mxu0 0.0
    %v2595 = vand.u32 %v782, 4294901760
    %v2596 = vsub.f32 %v782, %v2595
    %v2597 = vand.u32 %v2596, 4294901760
    %2598 = vmatmul.mubr.f32.gmra.mrb[0].mxu0 %v2597
    %v2599 = vpop.f32.mrb[0].mxu0
    %v2600 = vadd.f32 %v2518, %v2599
    %v2601 = vpop.f32.mrb[0].mxu0
    %2602 = vmatprep.mubr.f32.mxu0 0.0
    %v2603 = vand.u32 %v785, 4294901760
    %v2604 = vsub.f32 %v785, %v2603
    %v2605 = vand.u32 %v2604, 4294901760
    %2606 = vmatmul.mubr.f32.gmra.mrb[0].mxu0 %v2605
    %v2607 = vpop.f32.mrb[0].mxu0
    %v2608 = vadd.f32 %v2525, %v2607
    %v2609 = vpop.f32.mrb[0].mxu0
    %2610 = vdwg.mxu0
    %2611 = vmatprep.subr.mxu0 0.0
    %v2612 = vand.u32 %v2269, 4294901760
    %v2613 = vsub.f32 %v2269, %v2612
    %v2614 = vand.u32 %v2613, 4294901760
    %2615 = vmatpush1.msra.mxu0 %v2614
    %2616 = vmatprep.subr.mxu0 0.0
    %v2617 = vand.u32 %v2270, 4294901760
    %v2618 = vsub.f32 %v2270, %v2617
    %v2619 = vand.u32 %v2618, 4294901760
    %2620 = vmatpush1.msra.mxu0 %v2619
    %2621 = vmatprep.subr.mxu0 0.0
    %2622 = vmatpush1.msra.mxu0 0.0
    %2623 = vmatprep.subr.mxu0 0.0
    %2624 = vmatpush1.msra.mxu0 0.0
    %2625 = vmatprep.subr.mxu0 0.0
    %2626 = vmatpush1.msra.mxu0 0.0
    %2627 = vmatprep.subr.mxu0 0.0
    %2628 = vmatpush1.msra.mxu0 0.0
    %2629 = vmatprep.subr.mxu0 0.0
    %2630 = vmatpush1.msra.mxu0 0.0
    %2631 = vmatprep.subr.mxu0 0.0
    %2632 = vmatpush1.msra.mxu0 0.0
    %2633 = vmatprep.subr.mxu0 0.0
    %2634 = vmatpush1.msra.mxu0 0.0
    %2635 = vmatprep.subr.mxu0 0.0
    %2636 = vmatpush1.msra.mxu0 0.0
    %2637 = vmatprep.subr.mxu0 0.0
    %2638 = vmatpush1.msra.mxu0 0.0
    %2639 = vmatprep.subr.mxu0 0.0
    %2640 = vmatpush1.msra.mxu0 0.0
    %2641 = vmatprep.subr.mxu0 0.0
    %2642 = vmatpush1.msra.mxu0 0.0
    %2643 = vmatprep.subr.mxu0 0.0
    %2644 = vmatpush1.msra.mxu0 0.0
    %2645 = vmatprep.subr.mxu0 0.0
    %2646 = vmatpush1.msra.mxu0 0.0
    %2647 = vmatprep.subr.mxu0 0.0
    %2648 = vmatpush1.msra.mxu0 0.0
    %2649 = vmatprep.subr.mxu0 0.0
    %2650 = vmatpush1.msra.mxu0 0.0
    %2651 = vmatprep.subr.mxu0 0.0
    %2652 = vmatpush1.msra.mxu0 0.0
    %2653 = vmatprep.subr.mxu0 0.0
    %2654 = vmatpush1.msra.mxu0 0.0
    %2655 = vmatprep.subr.mxu0 0.0
    %2656 = vmatpush1.msra.mxu0 0.0
    %2657 = vmatprep.subr.mxu0 0.0
    %2658 = vmatpush1.msra.mxu0 0.0
    %2659 = vmatprep.subr.mxu0 0.0
    %2660 = vmatpush1.msra.mxu0 0.0
    %2661 = vmatprep.subr.mxu0 0.0
    %2662 = vmatpush1.msra.mxu0 0.0
    %2663 = vmatprep.subr.mxu0 0.0
    %2664 = vmatpush1.msra.mxu0 0.0
    %2665 = vmatprep.subr.mxu0 0.0
    %2666 = vmatpush1.msra.mxu0 0.0
    %2667 = vmatprep.subr.mxu0 0.0
    %2668 = vmatpush1.msra.mxu0 0.0
    %2669 = vmatprep.subr.mxu0 0.0
    %2670 = vmatpush1.msra.mxu0 0.0
    %2671 = vmatprep.subr.mxu0 0.0
    %2672 = vmatpush1.msra.mxu0 0.0
    %2673 = vmatprep.subr.mxu0 0.0
    %2674 = vmatpush1.msra.mxu0 0.0
    %2675 = vmatprep.subr.mxu0 0.0
    %2676 = vmatpush1.msra.mxu0 0.0
    %2677 = vmatprep.subr.mxu0 0.0
    %2678 = vmatpush1.msra.mxu0 0.0
    %2679 = vmatprep.subr.mxu0 0.0
    %2680 = vmatpush1.msra.mxu0 0.0
    %2681 = vmatprep.mubr.f32.mxu0 0.0
    %v2682 = vand.u32 %v782, 4294901760
    %2683 = vmatmul.mubr.f32.gmra.mrb[0].mxu0 %v2682
    %v2684 = vpop.f32.mrb[0].mxu0
    %v2685 = vadd.f32 %v2600, %v2684
    %v2686 = vpop.f32.mrb[0].mxu0
    %2687 = vmatprep.mubr.f32.mxu0 0.0
    %v2688 = vand.u32 %v785, 4294901760
    %2689 = vmatmul.mubr.f32.gmra.mrb[0].mxu0 %v2688
    %v2690 = vpop.f32.mrb[0].mxu0
    %v2691 = vadd.f32 %v2608, %v2690
    %v2692 = vpop.f32.mrb[0].mxu0
    %2693 = vdwg.mxu0
    %2694 = vmatprep.subr.mxu0 0.0
    %v2695 = vand.u32 %v2269, 4294901760
    %2696 = vmatpush1.msra.mxu0 %v2695
    %2697 = vmatprep.subr.mxu0 0.0
    %v2698 = vand.u32 %v2270, 4294901760
    %2699 = vmatpush1.msra.mxu0 %v2698
    %2700 = vmatprep.subr.mxu0 0.0
    %2701 = vmatpush1.msra.mxu0 0.0
    %2702 = vmatprep.subr.mxu0 0.0
    %2703 = vmatpush1.msra.mxu0 0.0
    %2704 = vmatprep.subr.mxu0 0.0
    %2705 = vmatpush1.msra.mxu0 0.0
    %2706 = vmatprep.subr.mxu0 0.0
    %2707 = vmatpush1.msra.mxu0 0.0
    %2708 = vmatprep.subr.mxu0 0.0
    %2709 = vmatpush1.msra.mxu0 0.0
    %2710 = vmatprep.subr.mxu0 0.0
    %2711 = vmatpush1.msra.mxu0 0.0
    %2712 = vmatprep.subr.mxu0 0.0
    %2713 = vmatpush1.msra.mxu0 0.0
    %2714 = vmatprep.subr.mxu0 0.0
    %2715 = vmatpush1.msra.mxu0 0.0
    %2716 = vmatprep.subr.mxu0 0.0
    %2717 = vmatpush1.msra.mxu0 0.0
    %2718 = vmatprep.subr.mxu0 0.0
    %2719 = vmatpush1.msra.mxu0 0.0
    %2720 = vmatprep.subr.mxu0 0.0
    %2721 = vmatpush1.msra.mxu0 0.0
    %2722 = vmatprep.subr.mxu0 0.0
    %2723 = vmatpush1.msra.mxu0 0.0
    %2724 = vmatprep.subr.mxu0 0.0
    %2725 = vmatpush1.msra.mxu0 0.0
    %2726 = vmatprep.subr.mxu0 0.0
    %2727 = vmatpush1.msra.mxu0 0.0
    %2728 = vmatprep.subr.mxu0 0.0
    %2729 = vmatpush1.msra.mxu0 0.0
    %2730 = vmatprep.subr.mxu0 0.0
    %2731 = vmatpush1.msra.mxu0 0.0
    %2732 = vmatprep.subr.mxu0 0.0
    %2733 = vmatpush1.msra.mxu0 0.0
    %2734 = vmatprep.subr.mxu0 0.0
    %2735 = vmatpush1.msra.mxu0 0.0
    %2736 = vmatprep.subr.mxu0 0.0
    %2737 = vmatpush1.msra.mxu0 0.0
    %2738 = vmatprep.subr.mxu0 0.0
    %2739 = vmatpush1.msra.mxu0 0.0
    %2740 = vmatprep.subr.mxu0 0.0
    %2741 = vmatpush1.msra.mxu0 0.0
    %2742 = vmatprep.subr.mxu0 0.0
    %2743 = vmatpush1.msra.mxu0 0.0
    %2744 = vmatprep.subr.mxu0 0.0
    %2745 = vmatpush1.msra.mxu0 0.0
    %2746 = vmatprep.subr.mxu0 0.0
    %2747 = vmatpush1.msra.mxu0 0.0
    %2748 = vmatprep.subr.mxu0 0.0
    %2749 = vmatpush1.msra.mxu0 0.0
    %2750 = vmatprep.subr.mxu0 0.0
    %2751 = vmatpush1.msra.mxu0 0.0
    %2752 = vmatprep.subr.mxu0 0.0
    %2753 = vmatpush1.msra.mxu0 0.0
    %2754 = vmatprep.subr.mxu0 0.0
    %2755 = vmatpush1.msra.mxu0 0.0
    %2756 = vmatprep.subr.mxu0 0.0
    %2757 = vmatpush1.msra.mxu0 0.0
    %2758 = vmatprep.subr.mxu0 0.0
    %2759 = vmatpush1.msra.mxu0 0.0
    %2760 = vmatprep.mubr.f32.mxu0 0.0
    %v2761 = vand.u32 %v782, 4294901760
    %2762 = vmatmul.mubr.f32.gmra.mrb[0].mxu0 %v2761
    %v2763 = vpop.f32.mrb[0].mxu0
    %v2764 = vadd.f32 %v2685, %v2763
    %v2765 = vpop.f32.mrb[0].mxu0
    %2766 = vmatprep.mubr.f32.mxu0 0.0
    %v2767 = vand.u32 %v785, 4294901760
    %2768 = vmatmul.mubr.f32.gmra.mrb[0].mxu0 %v2767
    %v2769 = vpop.f32.mrb[0].mxu0
    %v2770 = vadd.f32 %v2691, %v2769
    %v2771 = vpop.f32.mrb[0].mxu0
    %2772 = vdwg.mxu0
    %v2773 = vld [vmem:[%s7 + $0x9] sm:$0x1]
    %v2774 = vld [vmem:[%s7 + $0xa] sm:$0x1]
    %v2775 = vsel %vm199, %v2764, 0.0
    %2776 = vadd.xlane.f32.xlu0 %v2775
    %v2777 = vpop.xlane.xlu0 %2776
    %v2778 = vsel %vm199, %v2770, 0.0
    %2779 = vadd.xlane.f32.xlu0 %v2778
    %v2780 = vpop.xlane.xlu0 %2779
    %v2781 = vmul.f32 %v2777, %v1419
    %v2782 = vmul.f32 %v2780, %v1419
    %v2783 = vsub.f32 %v2764, %v2781
    %v2784 = vsub.f32 %v2770, %v2782
    %v2785 = vmul.f32 %v2783, %v2783
    %v2786 = vmul.f32 %v2784, %v2784
    %v2787 = vsel %vm199, %v2785, 0.0
    %2788 = vadd.xlane.f32.xlu0 %v2787
    %v2789 = vpop.xlane.xlu0 %2788
    %v2790 = vsel %vm199, %v2786, 0.0
    %2791 = vadd.xlane.f32.xlu0 %v2790
    %v2792 = vpop.xlane.xlu0 %2791
    %v2793 = vmul.f32 %v2789, %v1419
    %v2794 = vmul.f32 %v2792, %v1419
    %v2795 = vadd.f32 %v2793, 1e-05
    %v2796 = vadd.f32 %v2794, 1e-05
    %v2797 = vrsqrt.pop %v2795
    %v2798 = vrsqrt.pop %v2796
    %v2799 = vmul.f32 %v2783, %v2797
    %v2800 = vmul.f32 %v2784, %v2798
    %v2801 = vlaneseq
    %v2802 = vshrl.u32 %v2801, 7
    %v2803 = vsub.s32 0, %v2802
    %v2804 = vrot.slane %v2773, %v2803
    %v2805 = vmul.f32 %v2799, %v2804
    %v2806 = vmul.f32 %v2800, %v2804
    %v2807 = vlaneseq
    %v2808 = vshrl.u32 %v2807, 7
    %v2809 = vsub.s32 0, %v2808
    %v2810 = vrot.slane %v2774, %v2809
    %v2811 = vadd.f32 %v2805, %v2810
    %v2812 = vadd.f32 %v2806, %v2810
    %s2813 = sld [smem:[#allocation2 + $0x2]]
    %vm2814 = vcmp.ge.f32.partialorder %v2811, 0.0
    %vm2815 = vcmp.ge.f32.partialorder %v2812, 0.0
    %v2816 = vstv %s2813
    %v2817 = vmul.f32 %v2816, %v2811
    %v2818 = vmul.f32 %v2816, %v2812
    %v2819 = vsel %vm2814, %v2811, %v2817
    %v2820 = vsel %vm2815, %v2812, %v2818
    %s2821 = scalar_lea.vmem %s5, 80
    %v2822 = vld [vmem:[%s2821] sm:$0xf]
    %v2823 = vld [vmem:[%s2821 + $0x4] sm:$0xf]
    %v2824 = vld [vmem:[%s2821 + $0x8] sm:$0xf]
    %v2825 = vld [vmem:[%s2821 + $0xc] sm:$0xf]
    %v2826 = vld [vmem:[%s7 + $0xb] sm:$0x1]
    %v2827 = vlaneseq
    %v2828 = vshrl.u32 %v2827, 7
    %v2829 = vsub.s32 0, %v2828
    %v2830 = vrot.slane %v2826, %v2829
    %v2835 = vunpack.c.l.b16 %v2822
    %v2836 = vunpack.c.l.b16 %v2823
    %v2837 = vunpack.c.l.b16 %v2824
    %v2838 = vunpack.c.l.b16 %v2825
    %v2839 = vpack.c.b16 %v2836, %v2835
    %v2840 = vpack.c.b16 %v2838, %v2837
    %2843 = vmatprep.subr.bf16.mxu0 0
    %2844 = vmatpush1.bf16.msra.mxu0 %v2839
    %2845 = vmatprep.subr.bf16.mxu0 0
    %2846 = vmatpush1.bf16.msra.mxu0 %v2840
    %2847 = vmatprep.subr.bf16.mxu0 0
    %2848 = vmatpush1.bf16.msra.mxu0 0
    %2849 = vmatprep.subr.bf16.mxu0 0
    %2850 = vmatpush1.bf16.msra.mxu0 0
    %2851 = vmatprep.subr.bf16.mxu0 0
    %2852 = vmatpush1.bf16.msra.mxu0 0
    %2853 = vmatprep.subr.bf16.mxu0 0
    %2854 = vmatpush1.bf16.msra.mxu0 0
    %2855 = vmatprep.subr.bf16.mxu0 0
    %2856 = vmatpush1.bf16.msra.mxu0 0
    %2857 = vmatprep.subr.bf16.mxu0 0
    %2858 = vmatpush1.bf16.msra.mxu0 0
    %2859 = vmatprep.subr.bf16.mxu0 0
    %2860 = vmatpush1.bf16.msra.mxu0 0
    %2861 = vmatprep.subr.bf16.mxu0 0
    %2862 = vmatpush1.bf16.msra.mxu0 0
    %2863 = vmatprep.subr.bf16.mxu0 0
    %2864 = vmatpush1.bf16.msra.mxu0 0
    %2865 = vmatprep.subr.bf16.mxu0 0
    %2866 = vmatpush1.bf16.msra.mxu0 0
    %2867 = vmatprep.subr.bf16.mxu0 0
    %2868 = vmatpush1.bf16.msra.mxu0 0
    %2869 = vmatprep.subr.bf16.mxu0 0
    %2870 = vmatpush1.bf16.msra.mxu0 0
    %2871 = vmatprep.subr.bf16.mxu0 0
    %2872 = vmatpush1.bf16.msra.mxu0 0
    %2873 = vmatprep.subr.bf16.mxu0 0
    %2874 = vmatpush1.bf16.msra.mxu0 0
    %2875 = vmatprep.mubr.bf16.mxu0 0
    %2876 = vmatmul.mubr.bf16.gmra.mrb[0].mxu0 %v201
    %v2877 = vpop.f32.mrb[0].mxu0
    %v2878 = vadd.f32 %v2830, %v2877
    %v2879 = vpop.f32.mrb[0].mxu0
    %v2880 = vpop.f32.mrb[0].mxu0
    %v2881 = vadd.f32 %v2830, %v2880
    %v2882 = vpop.f32.mrb[0].mxu0
    %2883 = vdwg.mxu0
    %v2884 = vld [vmem:[%s7 + $0xc] sm:$0x1]
    %v2885 = vld [vmem:[%s7 + $0xd] sm:$0x1]
    %v2886 = vsel %vm199, %v2878, 0.0
    %2887 = vadd.xlane.f32.xlu0 %v2886
    %v2888 = vpop.xlane.xlu0 %2887
    %v2889 = vsel %vm199, %v2881, 0.0
    %2890 = vadd.xlane.f32.xlu0 %v2889
    %v2891 = vpop.xlane.xlu0 %2890
    %v2892 = vmul.f32 %v2888, %v1419
    %v2893 = vmul.f32 %v2891, %v1419
    %v2894 = vsub.f32 %v2878, %v2892
    %v2895 = vsub.f32 %v2881, %v2893
    %v2896 = vmul.f32 %v2894, %v2894
    %v2897 = vmul.f32 %v2895, %v2895
    %v2898 = vsel %vm199, %v2896, 0.0
    %2899 = vadd.xlane.f32.xlu0 %v2898
    %v2900 = vpop.xlane.xlu0 %2899
    %v2901 = vsel %vm199, %v2897, 0.0
    %2902 = vadd.xlane.f32.xlu0 %v2901
    %v2903 = vpop.xlane.xlu0 %2902
    %v2904 = vmul.f32 %v2900, %v1419
    %v2905 = vmul.f32 %v2903, %v1419
    %v2906 = vadd.f32 %v2904, 1e-05
    %v2907 = vadd.f32 %v2905, 1e-05
    %v2908 = vrsqrt.pop %v2906
    %v2909 = vrsqrt.pop %v2907
    %v2910 = vmul.f32 %v2894, %v2908
    %v2911 = vmul.f32 %v2895, %v2909
    %v2912 = vlaneseq
    %v2913 = vshrl.u32 %v2912, 7
    %v2914 = vsub.s32 0, %v2913
    %v2915 = vrot.slane %v2884, %v2914
    %v2916 = vmul.f32 %v2910, %v2915
    %v2917 = vmul.f32 %v2911, %v2915
    %v2918 = vlaneseq
    %v2919 = vshrl.u32 %v2918, 7
    %v2920 = vsub.s32 0, %v2919
    %v2921 = vrot.slane %v2885, %v2920
    %v2922 = vadd.f32 %v2916, %v2921
    %v2923 = vadd.f32 %v2917, %v2921
    %s2924 = sld [smem:[#allocation2 + $0x3]]
    %vm2925 = vcmp.ge.f32.partialorder %v2922, 0.0
    %vm2926 = vcmp.ge.f32.partialorder %v2923, 0.0
    %v2927 = vstv %s2924
    %v2928 = vmul.f32 %v2927, %v2922
    %v2929 = vmul.f32 %v2927, %v2923
    %v2930 = vsel %vm2925, %v2922, %v2928
    %v2931 = vsel %vm2926, %v2923, %v2929
    %s2932 = scalar_lea.vmem %s5, 96
    %v2933 = vld [vmem:[%s2932] sm:$0xf]
    %v2934 = vld [vmem:[%s2932 + $0x4] sm:$0xf]
    %v2935 = vld [vmem:[%s2932 + $0x8] sm:$0xf]
    %v2936 = vld [vmem:[%s2932 + $0xc] sm:$0xf]
    %v2937 = vpack.c.bf16 %v2931, %v2930
    %v2938 = vld [vmem:[%s7 + $0xe] sm:$0x1]
    %v2939 = vlaneseq
    %v2940 = vshrl.u32 %v2939, 7
    %v2941 = vsub.s32 0, %v2940
    %v2942 = vrot.slane %v2938, %v2941
    %v2947 = vunpack.c.l.b16 %v2933
    %v2948 = vunpack.c.l.b16 %v2934
    %v2949 = vunpack.c.l.b16 %v2935
    %v2950 = vunpack.c.l.b16 %v2936
    %v2951 = vpack.c.b16 %v2948, %v2947
    %v2952 = vpack.c.b16 %v2950, %v2949
    %v2956 = vsel %vm199, %v2937, 0
    %2958 = vmatprep.subr.bf16.mxu0 0
    %2959 = vmatpush1.bf16.msra.mxu0 %v2951
    %2960 = vmatprep.subr.bf16.mxu0 0
    %2961 = vmatpush1.bf16.msra.mxu0 %v2952
    %2962 = vmatprep.subr.bf16.mxu0 0
    %2963 = vmatpush1.bf16.msra.mxu0 0
    %2964 = vmatprep.subr.bf16.mxu0 0
    %2965 = vmatpush1.bf16.msra.mxu0 0
    %2966 = vmatprep.subr.bf16.mxu0 0
    %2967 = vmatpush1.bf16.msra.mxu0 0
    %2968 = vmatprep.subr.bf16.mxu0 0
    %2969 = vmatpush1.bf16.msra.mxu0 0
    %2970 = vmatprep.subr.bf16.mxu0 0
    %2971 = vmatpush1.bf16.msra.mxu0 0
    %2972 = vmatprep.subr.bf16.mxu0 0
    %2973 = vmatpush1.bf16.msra.mxu0 0
    %2974 = vmatprep.subr.bf16.mxu0 0
    %2975 = vmatpush1.bf16.msra.mxu0 0
    %2976 = vmatprep.subr.bf16.mxu0 0
    %2977 = vmatpush1.bf16.msra.mxu0 0
    %2978 = vmatprep.subr.bf16.mxu0 0
    %2979 = vmatpush1.bf16.msra.mxu0 0
    %2980 = vmatprep.subr.bf16.mxu0 0
    %2981 = vmatpush1.bf16.msra.mxu0 0
    %2982 = vmatprep.subr.bf16.mxu0 0
    %2983 = vmatpush1.bf16.msra.mxu0 0
    %2984 = vmatprep.subr.bf16.mxu0 0
    %2985 = vmatpush1.bf16.msra.mxu0 0
    %2986 = vmatprep.subr.bf16.mxu0 0
    %2987 = vmatpush1.bf16.msra.mxu0 0
    %2988 = vmatprep.subr.bf16.mxu0 0
    %2989 = vmatpush1.bf16.msra.mxu0 0
    %2990 = vmatprep.mubr.bf16.mxu0 0
    %2991 = vmatmul.mubr.bf16.gmra.mrb[0].mxu0 %v2956
    %v2992 = vpop.f32.mrb[0].mxu0
    %v2993 = vadd.f32 %v2942, %v2992
    %v2994 = vpop.f32.mrb[0].mxu0
    %v2995 = vpop.f32.mrb[0].mxu0
    %v2996 = vadd.f32 %v2942, %v2995
    %v2997 = vpop.f32.mrb[0].mxu0
    %2998 = vdwg.mxu0
    %v2999 = vld [vmem:[%s7 + $0xf] sm:$0x1]
    %v3000 = vld [vmem:[%s7 + $0x10] sm:$0x1]
    %v3001 = vsel %vm199, %v2993, 0.0
    %3002 = vadd.xlane.f32.xlu0 %v3001
    %v3003 = vpop.xlane.xlu0 %3002
    %v3004 = vsel %vm199, %v2996, 0.0
    %3005 = vadd.xlane.f32.xlu0 %v3004
    %v3006 = vpop.xlane.xlu0 %3005
    %v3007 = vmul.f32 %v3003, %v1419
    %v3008 = vmul.f32 %v3006, %v1419
    %v3009 = vsub.f32 %v2993, %v3007
    %v3010 = vsub.f32 %v2996, %v3008
    %v3011 = vmul.f32 %v3009, %v3009
    %v3012 = vmul.f32 %v3010, %v3010
    %v3013 = vsel %vm199, %v3011, 0.0
    %3014 = vadd.xlane.f32.xlu0 %v3013
    %v3015 = vpop.xlane.xlu0 %3014
    %v3016 = vsel %vm199, %v3012, 0.0
    %3017 = vadd.xlane.f32.xlu0 %v3016
    %v3018 = vpop.xlane.xlu0 %3017
    %v3019 = vmul.f32 %v3015, %v1419
    %v3020 = vmul.f32 %v3018, %v1419
    %v3021 = vadd.f32 %v3019, 1e-05
    %v3022 = vadd.f32 %v3020, 1e-05
    %v3023 = vrsqrt.pop %v3021
    %v3024 = vrsqrt.pop %v3022
    %v3025 = vmul.f32 %v3009, %v3023
    %v3026 = vmul.f32 %v3010, %v3024
    %v3027 = vlaneseq
    %v3028 = vshrl.u32 %v3027, 7
    %v3029 = vsub.s32 0, %v3028
    %v3030 = vrot.slane %v2999, %v3029
    %v3031 = vmul.f32 %v3025, %v3030
    %v3032 = vmul.f32 %v3026, %v3030
    %v3033 = vlaneseq
    %v3034 = vshrl.u32 %v3033, 7
    %v3035 = vsub.s32 0, %v3034
    %v3036 = vrot.slane %v3000, %v3035
    %v3037 = vadd.f32 %v3031, %v3036
    %v3038 = vadd.f32 %v3032, %v3036
    %s3039 = sld [smem:[#allocation2 + $0x4]]
    %vm3040 = vcmp.ge.f32.partialorder %v3037, 0.0
    %vm3041 = vcmp.ge.f32.partialorder %v3038, 0.0
    %v3042 = vstv %s3039
    %v3043 = vmul.f32 %v3042, %v3037
    %v3044 = vmul.f32 %v3042, %v3038
    %v3045 = vsel %vm3040, %v3037, %v3043
    %v3046 = vsel %vm3041, %v3038, %v3044
    %s3047 = scalar_lea.vmem %s5, 112
    %v3048 = vld [vmem:[%s3047] sm:$0xf]
    %v3049 = vld [vmem:[%s3047 + $0x4] sm:$0xf]
    %v3050 = vld [vmem:[%s3047 + $0x8] sm:$0xf]
    %v3051 = vld [vmem:[%s3047 + $0xc] sm:$0xf]
    %v3052 = vpack.c.bf16 %v3046, %v3045
    %s3053 = scalar_lea.vmem %s5, 128
    %v3054 = vld [vmem:[%s3053] sm:$0xf]
    %v3055 = vld [vmem:[%s3053 + $0x4] sm:$0xf]
    %v3056 = vld [vmem:[%s3053 + $0x8] sm:$0xf]
    %v3057 = vld [vmem:[%s3053 + $0xc] sm:$0xf]
    %v3058 = vpack.c.bf16 %v2820, %v2819
    %v3063 = vunpack.c.l.b16 %v3054
    %v3064 = vunpack.c.l.b16 %v3055
    %v3065 = vunpack.c.l.b16 %v3056
    %v3066 = vunpack.c.l.b16 %v3057
    %v3067 = vpack.c.b16 %v3064, %v3063
    %v3068 = vpack.c.b16 %v3066, %v3065
    %v3072 = vsel %vm199, %v3058, 0
    %3074 = vmatprep.subr.bf16.mxu0 0
    %3075 = vmatpush1.bf16.msra.mxu0 %v3067
    %3076 = vmatprep.subr.bf16.mxu0 0
    %3077 = vmatpush1.bf16.msra.mxu0 %v3068
    %3078 = vmatprep.subr.bf16.mxu0 0
    %3079 = vmatpush1.bf16.msra.mxu0 0
    %3080 = vmatprep.subr.bf16.mxu0 0
    %3081 = vmatpush1.bf16.msra.mxu0 0
    %3082 = vmatprep.subr.bf16.mxu0 0
    %3083 = vmatpush1.bf16.msra.mxu0 0
    %3084 = vmatprep.subr.bf16.mxu0 0
    %3085 = vmatpush1.bf16.msra.mxu0 0
    %3086 = vmatprep.subr.bf16.mxu0 0
    %3087 = vmatpush1.bf16.msra.mxu0 0
    %3088 = vmatprep.subr.bf16.mxu0 0
    %3089 = vmatpush1.bf16.msra.mxu0 0
    %3090 = vmatprep.subr.bf16.mxu0 0
    %3091 = vmatpush1.bf16.msra.mxu0 0
    %3092 = vmatprep.subr.bf16.mxu0 0
    %3093 = vmatpush1.bf16.msra.mxu0 0
    %3094 = vmatprep.subr.bf16.mxu0 0
    %3095 = vmatpush1.bf16.msra.mxu0 0
    %3096 = vmatprep.subr.bf16.mxu0 0
    %3097 = vmatpush1.bf16.msra.mxu0 0
    %3098 = vmatprep.subr.bf16.mxu0 0
    %3099 = vmatpush1.bf16.msra.mxu0 0
    %3100 = vmatprep.subr.bf16.mxu0 0
    %3101 = vmatpush1.bf16.msra.mxu0 0
    %3102 = vmatprep.subr.bf16.mxu0 0
    %3103 = vmatpush1.bf16.msra.mxu0 0
    %3104 = vmatprep.subr.bf16.mxu0 0
    %3105 = vmatpush1.bf16.msra.mxu0 0
    %3106 = vmatprep.mubr.bf16.mxu0 0
    %3107 = vmatmul.mubr.bf16.gmra.mrb[0].mxu0 %v3072
    %v3108 = vpop.f32.mrb[0].mxu0
    %v3109 = vadd.f32 0.0, %v3108
    %v3110 = vpop.f32.mrb[0].mxu0
    %v3111 = vpop.f32.mrb[0].mxu0
    %v3112 = vadd.f32 0.0, %v3111
    %v3113 = vpop.f32.mrb[0].mxu0
    %3114 = vdwg.mxu0
    %v3119 = vunpack.c.l.b16 %v3048
    %v3120 = vunpack.c.l.b16 %v3049
    %v3121 = vunpack.c.l.b16 %v3050
    %v3122 = vunpack.c.l.b16 %v3051
    %v3123 = vpack.c.b16 %v3120, %v3119
    %v3124 = vpack.c.b16 %v3122, %v3121
    %v3128 = vsel %vm199, %v3052, 0
    %3130 = vmatprep.subr.bf16.mxu0 0
    %3131 = vmatpush1.bf16.msra.mxu0 %v3123
    %3132 = vmatprep.subr.bf16.mxu0 0
    %3133 = vmatpush1.bf16.msra.mxu0 %v3124
    %3134 = vmatprep.subr.bf16.mxu0 0
    %3135 = vmatpush1.bf16.msra.mxu0 0
    %3136 = vmatprep.subr.bf16.mxu0 0
    %3137 = vmatpush1.bf16.msra.mxu0 0
    %3138 = vmatprep.subr.bf16.mxu0 0
    %3139 = vmatpush1.bf16.msra.mxu0 0
    %3140 = vmatprep.subr.bf16.mxu0 0
    %3141 = vmatpush1.bf16.msra.mxu0 0
    %3142 = vmatprep.subr.bf16.mxu0 0
    %3143 = vmatpush1.bf16.msra.mxu0 0
    %3144 = vmatprep.subr.bf16.mxu0 0
    %3145 = vmatpush1.bf16.msra.mxu0 0
    %3146 = vmatprep.subr.bf16.mxu0 0
    %3147 = vmatpush1.bf16.msra.mxu0 0
    %3148 = vmatprep.subr.bf16.mxu0 0
    %3149 = vmatpush1.bf16.msra.mxu0 0
    %3150 = vmatprep.subr.bf16.mxu0 0
    %3151 = vmatpush1.bf16.msra.mxu0 0
    %3152 = vmatprep.subr.bf16.mxu0 0
    %3153 = vmatpush1.bf16.msra.mxu0 0
    %3154 = vmatprep.subr.bf16.mxu0 0
    %3155 = vmatpush1.bf16.msra.mxu0 0
    %3156 = vmatprep.subr.bf16.mxu0 0
    %3157 = vmatpush1.bf16.msra.mxu0 0
    %3158 = vmatprep.subr.bf16.mxu0 0
    %3159 = vmatpush1.bf16.msra.mxu0 0
    %3160 = vmatprep.subr.bf16.mxu0 0
    %3161 = vmatpush1.bf16.msra.mxu0 0
    %3162 = vmatprep.mubr.bf16.mxu0 0
    %3163 = vmatmul.mubr.bf16.gmra.mrb[0].mxu0 %v3128
    %v3164 = vpop.f32.mrb[0].mxu0
    %v3165 = vadd.f32 %v3109, %v3164
    %v3166 = vpop.f32.mrb[0].mxu0
    %v3167 = vpop.f32.mrb[0].mxu0
    %v3168 = vadd.f32 %v3112, %v3167
    %v3169 = vpop.f32.mrb[0].mxu0
    %3170 = vdwg.mxu0
    %v3171 = vld [vmem:[%s7 + $0x11] sm:$0x1]
    %v3172 = vlaneseq
    %v3173 = vshrl.u32 %v3172, 7
    %v3174 = vsub.s32 0, %v3173
    %v3175 = vrot.slane %v3171, %v3174
    %v3176 = vadd.f32 %v3165, %v3175
    %v3177 = vadd.f32 %v3168, %v3175
    %v3178 = vld [vmem:[%s7 + $0x12] sm:$0x1]
    %v3179 = vld [vmem:[%s7 + $0x13] sm:$0x1]
    %v3180 = vsel %vm199, %v3176, 0.0
    %3181 = vadd.xlane.f32.xlu0 %v3180
    %v3182 = vpop.xlane.xlu0 %3181
    %v3183 = vsel %vm199, %v3177, 0.0
    %3184 = vadd.xlane.f32.xlu0 %v3183
    %v3185 = vpop.xlane.xlu0 %3184
    %v3186 = vmul.f32 %v3182, %v1419
    %v3187 = vmul.f32 %v3185, %v1419
    %v3188 = vsub.f32 %v3176, %v3186
    %v3189 = vsub.f32 %v3177, %v3187
    %v3190 = vmul.f32 %v3188, %v3188
    %v3191 = vmul.f32 %v3189, %v3189
    %v3192 = vsel %vm199, %v3190, 0.0
    %3193 = vadd.xlane.f32.xlu0 %v3192
    %v3194 = vpop.xlane.xlu0 %3193
    %v3195 = vsel %vm199, %v3191, 0.0
    %3196 = vadd.xlane.f32.xlu0 %v3195
    %v3197 = vpop.xlane.xlu0 %3196
    %v3198 = vmul.f32 %v3194, %v1419
    %v3199 = vmul.f32 %v3197, %v1419
    %v3200 = vadd.f32 %v3198, 1e-05
    %v3201 = vadd.f32 %v3199, 1e-05
    %v3202 = vrsqrt.pop %v3200
    %v3203 = vrsqrt.pop %v3201
    %v3204 = vmul.f32 %v3188, %v3202
    %v3205 = vmul.f32 %v3189, %v3203
    %v3206 = vlaneseq
    %v3207 = vshrl.u32 %v3206, 7
    %v3208 = vsub.s32 0, %v3207
    %v3209 = vrot.slane %v3178, %v3208
    %v3210 = vmul.f32 %v3204, %v3209
    %v3211 = vmul.f32 %v3205, %v3209
    %v3212 = vlaneseq
    %v3213 = vshrl.u32 %v3212, 7
    %v3214 = vsub.s32 0, %v3213
    %v3215 = vrot.slane %v3179, %v3214
    %v3216 = vadd.f32 %v3210, %v3215
    %v3217 = vadd.f32 %v3211, %v3215
    %s3218 = sld [smem:[#allocation2 + $0x5]]
    %vm3219 = vcmp.ge.f32.partialorder %v3216, 0.0
    %vm3220 = vcmp.ge.f32.partialorder %v3217, 0.0
    %v3221 = vstv %s3218
    %v3222 = vmul.f32 %v3221, %v3216
    %v3223 = vmul.f32 %v3221, %v3217
    %v3224 = vsel %vm3219, %v3216, %v3222
    %v3225 = vsel %vm3220, %v3217, %v3223
    %3226 = vst.msk [vmem:[#allocation5] sm:$0xff] %vm199, %v3224
    %3227 = vst.msk [vmem:[#allocation5 + $0x8] sm:$0xff] %vm199, %v3225
    // Predicated region
    $region38: #{_mpn_forward_fused.1} parent=1 // pred_check
      _
    $region39: #{_mpn_forward_fused.1} parent=1 // pred_check_branch
      %3229 = sbr.rel (0) target = $region41
    $region40: #{_mpn_forward_fused.1} parent=1 // pred_region
      %s3231 = ssub.s32 256, 256
      %3232 = vsyncadd [#allocation3], %s3231
      %s3233 = sshll.u32 [#allocation5], 4
      %s3234 = int_to_ptr.vmem [resolvable:$true] %s3233
      %3239 = dma.vmem_to_hbm [thread:$0]  %s3234, 256, %s8, [#allocation3], 128, 128, 8
    $region41: #{_mpn_forward_fused.1} parent=1 // pred_fallthru
      _
    // Predicated region
    $region42: #{_mpn_forward_fused.1} parent=1 // pred_check
      _
    $region43: #{_mpn_forward_fused.1} parent=1 // pred_check_branch
      %3241 = sbr.rel (0) target = $region45
    $region44: #{_mpn_forward_fused.1} parent=1 // pred_region
      %3242 = dma.done [#allocation3], 256
    $region45: #{_mpn_forward_fused.1} parent=1 // pred_fallthru
      _
    %3243 = vsyncpa [#allocation3], 1
    %3244 = vsyncpa [#allocation4], 1

</llo_original>
